<compile_context>
chip_gen: v6e
topology: v6e:2x2x1
jax: 0.10.0
libtpu: 0.0.40
codegen_flags: <defaults>
</compile_context>

<pallas_src>
import functools

import jax
import jax.numpy as jnp
from jax.experimental import pallas as pl
from jax.experimental.pallas import tpu as pltpu


# ----------------------------- Pallas kernel ------------------------------ #
def _lstm_predictor_kernel(
    x_ref,     # (T*Bp, D_in)  time-major, flattened over (T, Bp), zero-padded batch
    slab_ref,  # (rows, 4H)    all parameters packed (see wrapper for layout)
    out_ref,   # (Bp, 3)       [point | interval_lo | interval_hi]
    *,
    T, Bp, H, L, D_in, offs,
):
    f32 = jnp.float32
    fourH = 4 * H

    # Static slab slices (weights are re-read from VMEM where used inside the
    # unrolled loop -- vld slots have slack, vregs do not).
    def w_ih0():
        return slab_ref[offs["w_ih0"]:offs["w_ih0"] + D_in, :]

    def w_hh(l):
        r = offs["w_hh"] + l * H
        return slab_ref[r:r + H, :]

    def w_ih(l):  # layers >= 1
        r = offs["w_ih_rest"] + (l - 1) * H
        return slab_ref[r:r + H, :]

    # ---- Layer-0 input projection for ALL timesteps: one MXU call, with the
    # layer-0 bias folded in (g-gate columns pre-scaled by 2 in the wrapper).
    gates0_all = (
        jnp.dot(x_ref[...], w_ih0(), preferred_element_type=f32)
        + slab_ref[offs["bias"]:offs["bias"] + 1, :]
    )  # (T*Bp, 4H)

    # Hoist the tiny per-layer bias broadcasts out of the unrolled loop
    # (JAX does not CSE broadcast_in_dim).
    bias_hi = [
        jnp.broadcast_to(
            slab_ref[offs["bias"] + l:offs["bias"] + l + 1, :], (Bp, fourH))
        for l in range(1, L)
    ]

    def cell(gates, c_prev):
        # One full-width sigmoid; g recovered via tanh(x) = 2*sigmoid(2x) - 1
        # (g-gate pre-activations were pre-scaled by 2 in the wrapper).
        # PyTorch gate order: i, f, g, o.
        sig = jax.nn.sigmoid(gates)
        i_g = sig[:, 0 * H:1 * H]
        f_g = sig[:, 1 * H:2 * H]
        g_g = 2.0 * sig[:, 2 * H:3 * H] - 1.0
        o_g = sig[:, 3 * H:4 * H]
        c_new = i_g * g_g if c_prev is None else f_g * c_prev + i_g * g_g
        h_new = o_g * jnp.tanh(c_new)
        return h_new, c_new

    # Fully unrolled recurrence over time (T is small and static).  h/c start
    # as None == exact zero state, so the recurrent matmuls at t == 0 are
    # skipped.  Stacked LSTM: layer l at time t depends on layer l-1 at time t
    # and its own state at t-1, so all layers advance inside one step.
    h = [None] * L
    c = [None] * L
    for t in range(T):
        # Layer 0: input projection precomputed; one recurrent matmul.
        g0 = gates0_all[t * Bp:(t + 1) * Bp, :]
        if h[0] is not None:
            g0 = g0 + jnp.dot(h[0], w_hh(0), preferred_element_type=f32)
        h[0], c[0] = cell(g0, c[0])
        # Layers >= 1: two accumulating matmuls instead of concat([h_{l-1}, h_l])
        # -- removes a cross-lane shuffle from the serial dependence chain.
        for l in range(1, L):
            g = (jnp.dot(h[l - 1], w_ih(l), preferred_element_type=f32)
                 + bias_hi[l - 1])
            if h[l] is not None:
                g = g + jnp.dot(h[l], w_hh(l), preferred_element_type=f32)
            h[l], c[l] = cell(g, c[l])

    # ---- LayerNorm over the hidden dim of the last timestep, top layer
    # (eps = 1e-5, PyTorch default).
    h_last = h[L - 1]                                        # (Bp, H)
    mean = jnp.mean(h_last, axis=-1, keepdims=True)
    var = jnp.mean((h_last - mean) ** 2, axis=-1, keepdims=True)
    gamma = slab_ref[offs["misc"] + 0:offs["misc"] + 1, 0:H]
    beta = slab_ref[offs["misc"] + 1:offs["misc"] + 2, 0:H]
    enc = (h_last - mean) * jax.lax.rsqrt(var + 1e-5) * gamma + beta

    # ---- Fused point + interval heads: one (Bp, H) x (H, 4H-padded) matmul;
    # only the first 3 output lanes are meaningful (padding columns are zero).
    w_head = slab_ref[offs["w_head"]:offs["w_head"] + H, :]
    b_head = slab_ref[offs["misc"] + 2:offs["misc"] + 3, :]
    out = jnp.dot(enc, w_head, preferred_element_type=f32) + b_head  # (Bp, 4H)

    point = out[:, 0:1]
    # torch.sort(dim=-1) on 2 elements == (min, max)
    lo = jnp.minimum(out[:, 1:2], out[:, 2:3])
    hi = jnp.maximum(out[:, 1:2], out[:, 2:3])
    out_ref[...] = jnp.concatenate([point, lo, hi], axis=-1)


# ------------------------------- Wrapper ----------------------------------- #
def enhanced_bitcoin_predictor(x, params):
    """x: (B, T, D_in) float32. Returns (point_pred (B,), interval_pred (B, 2))."""
    B, T, D_in = x.shape
    L, H, fourH = params["w_hh"].shape
    assert fourH == 4 * H
    r8 = lambda n: -(-n // 8) * 8
    Bp = r8(B)  # pad batch to the f32 sublane tile (8)

    # --- Static weight re-layout (layout plumbing, not compute) -------------
    # tanh(x) = 2*sigmoid(2x) - 1  =>  pre-scale the g-gate columns by 2 so the
    # kernel needs a single full-width sigmoid per cell.
    g_cols = slice(2 * H, 3 * H)
    scale_g = lambda w: w.at[..., g_cols].multiply(2.0)
    w_ih0 = scale_g(params["w_ih0"])                    # (D_in, 4H)
    w_hh = scale_g(params["w_hh"])                      # (L, H, 4H)
    w_ih_rest = scale_g(params["w_ih_rest"])            # (L-1, H, 4H)
    bias = scale_g(params["bias"])                      # (L, 4H)  (b_ih + b_hh)

    pad_lanes = lambda a: jnp.pad(a, ((0, 0), (0, fourH - a.shape[1])))
    pad_rows = lambda a, r: jnp.pad(a, ((0, r - a.shape[0]), (0, 0)))

    misc = jnp.concatenate([
        pad_lanes(params["gamma"]),                                        # row 0
        pad_lanes(params["beta"]),                                         # row 1
        pad_lanes(jnp.concatenate([params["bp"], params["bi"]], axis=1)),  # row 2
    ], axis=0)
    w_head = pad_lanes(jnp.concatenate([params["wp"], params["wi"]], axis=1))

    # One parameter slab = one startup DMA.  Each section starts at a multiple
    # of 8 rows so every in-kernel slice is sublane-aligned.
    sections = [
        ("w_ih0", w_ih0),
        ("w_hh", w_hh.reshape(L * H, fourH)),
        ("w_ih_rest", w_ih_rest.reshape((L - 1) * H, fourH)),
        ("bias", bias),
        ("misc", misc),
        ("w_head", w_head),
    ]
    offs, padded, row = {}, [], 0
    for name, a in sections:
        offs[name] = row
        rows = r8(a.shape[0])
        padded.append(pad_rows(a, rows))
        row += rows
    slab = jnp.concatenate(padded, axis=0)              # (rows, 4H) float32

    # Time-major, batch-padded, flattened over (T, Bp): the layer-0 input
    # projection becomes one in-kernel matmul and every per-step slice is a
    # whole (8, 128) vreg.
    x_tm = jnp.transpose(x, (1, 0, 2))                   # (T, B, D_in)
    x_tm = jnp.pad(x_tm, ((0, 0), (0, Bp - B), (0, 0))).reshape(T * Bp, D_in)

    kernel = functools.partial(
        _lstm_predictor_kernel, T=T, Bp=Bp, H=H, L=L, D_in=D_in, offs=offs)

    out = pl.pallas_call(
        kernel,
        out_shape=jax.ShapeDtypeStruct((Bp, 3), jnp.float32),
        grid=(1,),  # collapsed time grid: single invocation, whole-array blocks
        in_specs=[
            pl.BlockSpec((T * Bp, D_in), lambda i: (0, 0)),   # x (time-major)
            pl.BlockSpec(slab.shape, lambda i: (0, 0)),       # packed params
        ],
        out_specs=pl.BlockSpec((Bp, 3), lambda i: (0, 0)),    # fused outputs
        compiler_params=pltpu.CompilerParams(
            dimension_semantics=("arbitrary",),
        ),
        # TODO(synk): for B >= 16 add a leading "parallel" batch grid axis so
        # v7x's second TensorCore gets work; at B=2 it would only add sync.
    )(x_tm, slab)

    # point_pred.squeeze() in torch: (B, 1) -> (B,) for B > 1
    # TODO(synk): torch's .squeeze() yields a 0-d scalar when B == 1.
    return out[:B, 0], out[:B, 1:3]


# --------------------------- Pure-JAX reference ---------------------------- #
def reference_forward(x, params):
    B, T, D_in = x.shape
    L, H, _ = params["w_hh"].shape
    h = [jnp.zeros((B, H), jnp.float32) for _ in range(L)]
    c = [jnp.zeros((B, H), jnp.float32) for _ in range(L)]
    for t in range(T):
        inp = x[:, t, :]
        for l in range(L):
            w_ih = params["w_ih0"] if l == 0 else params["w_ih_rest"][l - 1]
            gates = inp @ w_ih + h[l] @ params["w_hh"][l] + params["bias"][l]
            i_g = jax.nn.sigmoid(gates[:, 0 * H: 1 * H])
            f_g = jax.nn.sigmoid(gates[:, 1 * H: 2 * H])
            g_g = jnp.tanh(gates[:, 2 * H: 3 * H])
            o_g = jax.nn.sigmoid(gates[:, 3 * H: 4 * H])
            c[l] = f_g * c[l] + i_g * g_g
            h[l] = o_g * jnp.tanh(c[l])
            inp = h[l]
    h_last = h[-1]
    mean = jnp.mean(h_last, axis=-1, keepdims=True)
    var = jnp.mean((h_last - mean) ** 2, axis=-1, keepdims=True)
    enc = (h_last - mean) / jnp.sqrt(var + 1e-5)
    enc = enc * params["gamma"] + params["beta"]
    point = enc @ params["wp"] + params["bp"]
    interval = enc @ params["wi"] + params["bi"]
    interval = jnp.sort(interval, axis=-1)
    return point[:, 0], interval


# ------------------------------- Main -------------------------------------- #
if __name__ == "__main__":
    # Small shapes consistent with the module: seq=8, input_size=4, hidden=32, 3 layers.
    B, T, D_in, H, L = 2, 8, 4, 32, 3

    key = jax.random.PRNGKey(0)
    keys = jax.random.split(key, 12)
    scale = 1.0 / jnp.sqrt(H)  # PyTorch LSTM default init range

    u = lambda k, shape: jax.random.uniform(k, shape, jnp.float32, -scale, scale)

    params = {
        "w_ih0": u(keys[0], (D_in, 4 * H)),
        "w_ih_rest": u(keys[1], (L - 1, H, 4 * H)),
        "w_hh": u(keys[2], (L, H, 4 * H)),
        "bias": u(keys[3], (L, 4 * H)) + u(keys[4], (L, 4 * H)),  # b_ih + b_hh
        "gamma": jnp.ones((1, H), jnp.float32),
        "beta": jnp.zeros((1, H), jnp.float32),
        "wp": u(keys[5], (H, 1)),
        "bp": u(keys[6], (1, 1)),
        "wi": u(keys[7], (H, 2)),
        "bi": u(keys[8], (1, 2)),
    }

    x = jax.random.normal(keys[9], (B, T, D_in), jnp.float32)

    point, interval = jax.jit(enhanced_bitcoin_predictor)(x, params)
    jax.block_until_ready((point, interval))

    # Validate against the pure-JAX reference (original, unscaled params).
    ref_point, ref_interval = reference_forward(x, params)
    assert point.shape == (B,) and interval.shape == (B, 2)
    assert jnp.allclose(point, ref_point, atol=1e-4, rtol=1e-4), (point, ref_point)
    assert jnp.allclose(interval, ref_interval, atol=1e-4, rtol=1e-4), (interval, ref_interval)

    print("KERNEL_OK")
</pallas_src>

<mosaic_0001>
module attributes {stable_mosaic.version = 11 : i64} {
  func.func @_lstm_predictor_kernel(%arg0: i32, %arg1: memref<64x4xf32, #tpu.memory_space<vmem>>, %arg2: memref<216x128xf32, #tpu.memory_space<vmem>>, %arg3: memref<8x3xf32, #tpu.memory_space<vmem>>) attributes {dimension_semantics = [#tpu.dimension_semantics<arbitrary>], iteration_bounds = array<i64: 1>, scalar_prefetch = 0 : i64, scratch_operands = 0 : i64, tpu.core_type = #tpu.core_type<tc>, window_params = [{pipeline_mode = #tpu.pipeline_mode<synchronous>, transform_indices = @transform_0, window_bounds = array<i64: 64, 4>}, {pipeline_mode = #tpu.pipeline_mode<synchronous>, transform_indices = @transform_1, window_bounds = array<i64: 216, 128>}, {pipeline_mode = #tpu.pipeline_mode<synchronous>, transform_indices = @transform_2, window_bounds = array<i64: 8, 3>}]} {
    %c0 = arith.constant 0 : index
    %c0_0 = arith.constant 0 : index
    %0 = vector.load %arg1[%c0, %c0_0] : memref<64x4xf32, #tpu.memory_space<vmem>>, vector<64x4xf32>
    %c0_1 = arith.constant 0 : index
    %c0_2 = arith.constant 0 : index
    %1 = vector.load %arg2[%c0_1, %c0_2] : memref<216x128xf32, #tpu.memory_space<vmem>>, vector<4x128xf32>
    %cst = arith.constant dense<0.000000e+00> : vector<64x128xf32>
    %2 = tpu.matmul %0, %1, %cst {dimension_numbers = #tpu.dot_dimension_numbers<[1], [0], [0], [1], [0, 0, 1, 1], [], []>} : vector<64x4xf32>, vector<4x128xf32>, vector<64x128xf32> -> vector<64x128xf32>
    %c168 = arith.constant 168 : index
    %c0_3 = arith.constant 0 : index
    %3 = vector.load %arg2[%c168, %c0_3] : memref<216x128xf32, #tpu.memory_space<vmem>>, vector<1x128xf32>
    %4 = vector.broadcast %3 : vector<1x128xf32> to vector<64x128xf32>
    %5 = arith.addf %2, %4 : vector<64x128xf32>
    %c169 = arith.constant 169 : index
    %c0_4 = arith.constant 0 : index
    %6 = vector.load %arg2[%c169, %c0_4] : memref<216x128xf32, #tpu.memory_space<vmem>>, vector<1x128xf32>
    %7 = vector.shape_cast %6 : vector<1x128xf32> to vector<1x128xf32>
    %8 = vector.broadcast %7 : vector<1x128xf32> to vector<8x128xf32>
    %c170 = arith.constant 170 : index
    %c0_5 = arith.constant 0 : index
    %9 = vector.load %arg2[%c170, %c0_5] : memref<216x128xf32, #tpu.memory_space<vmem>>, vector<1x128xf32>
    %10 = vector.shape_cast %9 : vector<1x128xf32> to vector<1x128xf32>
    %11 = vector.broadcast %10 : vector<1x128xf32> to vector<8x128xf32>
    %12 = vector.extract_strided_slice %5 {offsets = [0, 0], sizes = [8, 128], strides = [1, 1]} : vector<64x128xf32> to vector<8x128xf32>
    %13 = arith.negf %12 : vector<8x128xf32>
    %14 = math.exp %13 : vector<8x128xf32>
    %cst_6 = arith.constant 1.000000e+00 : f32
    %15 = vector.broadcast %cst_6 : f32 to vector<8x128xf32>
    %16 = arith.addf %15, %14 : vector<8x128xf32>
    %17 = arith.divf %15, %16 : vector<8x128xf32>
    %18 = vector.extract_strided_slice %17 {offsets = [0, 0], sizes = [8, 32], strides = [1, 1]} : vector<8x128xf32> to vector<8x32xf32>
    %19 = vector.extract_strided_slice %17 {offsets = [0, 64], sizes = [8, 32], strides = [1, 1]} : vector<8x128xf32> to vector<8x32xf32>
    %cst_7 = arith.constant 2.000000e+00 : f32
    %20 = vector.broadcast %cst_7 : f32 to vector<8x32xf32>
    %21 = arith.mulf %20, %19 : vector<8x32xf32>
    %cst_8 = arith.constant 1.000000e+00 : f32
    %22 = vector.broadcast %cst_8 : f32 to vector<8x32xf32>
    %23 = arith.subf %21, %22 : vector<8x32xf32>
    %24 = vector.extract_strided_slice %17 {offsets = [0, 96], sizes = [8, 32], strides = [1, 1]} : vector<8x128xf32> to vector<8x32xf32>
    %25 = arith.mulf %18, %23 : vector<8x32xf32>
    %26 = math.tanh %25 : vector<8x32xf32>
    %27 = arith.mulf %24, %26 : vector<8x32xf32>
    %c104 = arith.constant 104 : index
    %c0_9 = arith.constant 0 : index
    %28 = vector.load %arg2[%c104, %c0_9] : memref<216x128xf32, #tpu.memory_space<vmem>>, vector<32x128xf32>
    %cst_10 = arith.constant dense<0.000000e+00> : vector<8x128xf32>
    %29 = tpu.matmul %27, %28, %cst_10 {dimension_numbers = #tpu.dot_dimension_numbers<[1], [0], [0], [1], [0, 0, 1, 1], [], []>} : vector<8x32xf32>, vector<32x128xf32>, vector<8x128xf32> -> vector<8x128xf32>
    %30 = arith.addf %29, %8 : vector<8x128xf32>
    %31 = arith.negf %30 : vector<8x128xf32>
    %32 = math.exp %31 : vector<8x128xf32>
    %cst_11 = arith.constant 1.000000e+00 : f32
    %33 = vector.broadcast %cst_11 : f32 to vector<8x128xf32>
    %34 = arith.addf %33, %32 : vector<8x128xf32>
    %35 = arith.divf %33, %34 : vector<8x128xf32>
    %36 = vector.extract_strided_slice %35 {offsets = [0, 0], sizes = [8, 32], strides = [1, 1]} : vector<8x128xf32> to vector<8x32xf32>
    %37 = vector.extract_strided_slice %35 {offsets = [0, 64], sizes = [8, 32], strides = [1, 1]} : vector<8x128xf32> to vector<8x32xf32>
    %cst_12 = arith.constant 2.000000e+00 : f32
    %38 = vector.broadcast %cst_12 : f32 to vector<8x32xf32>
    %39 = arith.mulf %38, %37 : vector<8x32xf32>
    %cst_13 = arith.constant 1.000000e+00 : f32
    %40 = vector.broadcast %cst_13 : f32 to vector<8x32xf32>
    %41 = arith.subf %39, %40 : vector<8x32xf32>
    %42 = vector.extract_strided_slice %35 {offsets = [0, 96], sizes = [8, 32], strides = [1, 1]} : vector<8x128xf32> to vector<8x32xf32>
    %43 = arith.mulf %36, %41 : vector<8x32xf32>
    %44 = math.tanh %43 : vector<8x32xf32>
    %45 = arith.mulf %42, %44 : vector<8x32xf32>
    %c136 = arith.constant 136 : index
    %c0_14 = arith.constant 0 : index
    %46 = vector.load %arg2[%c136, %c0_14] : memref<216x128xf32, #tpu.memory_space<vmem>>, vector<32x128xf32>
    %cst_15 = arith.constant dense<0.000000e+00> : vector<8x128xf32>
    %47 = tpu.matmul %45, %46, %cst_15 {dimension_numbers = #tpu.dot_dimension_numbers<[1], [0], [0], [1], [0, 0, 1, 1], [], []>} : vector<8x32xf32>, vector<32x128xf32>, vector<8x128xf32> -> vector<8x128xf32>
    %48 = arith.addf %47, %11 : vector<8x128xf32>
    %49 = arith.negf %48 : vector<8x128xf32>
    %50 = math.exp %49 : vector<8x128xf32>
    %cst_16 = arith.constant 1.000000e+00 : f32
    %51 = vector.broadcast %cst_16 : f32 to vector<8x128xf32>
    %52 = arith.addf %51, %50 : vector<8x128xf32>
    %53 = arith.divf %51, %52 : vector<8x128xf32>
    %54 = vector.extract_strided_slice %53 {offsets = [0, 0], sizes = [8, 32], strides = [1, 1]} : vector<8x128xf32> to vector<8x32xf32>
    %55 = vector.extract_strided_slice %53 {offsets = [0, 64], sizes = [8, 32], strides = [1, 1]} : vector<8x128xf32> to vector<8x32xf32>
    %cst_17 = arith.constant 2.000000e+00 : f32
    %56 = vector.broadcast %cst_17 : f32 to vector<8x32xf32>
    %57 = arith.mulf %56, %55 : vector<8x32xf32>
    %cst_18 = arith.constant 1.000000e+00 : f32
    %58 = vector.broadcast %cst_18 : f32 to vector<8x32xf32>
    %59 = arith.subf %57, %58 : vector<8x32xf32>
    %60 = vector.extract_strided_slice %53 {offsets = [0, 96], sizes = [8, 32], strides = [1, 1]} : vector<8x128xf32> to vector<8x32xf32>
    %61 = arith.mulf %54, %59 : vector<8x32xf32>
    %62 = math.tanh %61 : vector<8x32xf32>
    %63 = arith.mulf %60, %62 : vector<8x32xf32>
    %64 = vector.extract_strided_slice %5 {offsets = [8, 0], sizes = [8, 128], strides = [1, 1]} : vector<64x128xf32> to vector<8x128xf32>
    %c8 = arith.constant 8 : index
    %c0_19 = arith.constant 0 : index
    %65 = vector.load %arg2[%c8, %c0_19] : memref<216x128xf32, #tpu.memory_space<vmem>>, vector<32x128xf32>
    %cst_20 = arith.constant dense<0.000000e+00> : vector<8x128xf32>
    %66 = tpu.matmul %27, %65, %cst_20 {dimension_numbers = #tpu.dot_dimension_numbers<[1], [0], [0], [1], [0, 0, 1, 1], [], []>} : vector<8x32xf32>, vector<32x128xf32>, vector<8x128xf32> -> vector<8x128xf32>
    %67 = arith.addf %64, %66 : vector<8x128xf32>
    %68 = arith.negf %67 : vector<8x128xf32>
    %69 = math.exp %68 : vector<8x128xf32>
    %cst_21 = arith.constant 1.000000e+00 : f32
    %70 = vector.broadcast %cst_21 : f32 to vector<8x128xf32>
    %71 = arith.addf %70, %69 : vector<8x128xf32>
    %72 = arith.divf %70, %71 : vector<8x128xf32>
    %73 = vector.extract_strided_slice %72 {offsets = [0, 0], sizes = [8, 32], strides = [1, 1]} : vector<8x128xf32> to vector<8x32xf32>
    %74 = vector.extract_strided_slice %72 {offsets = [0, 32], sizes = [8, 32], strides = [1, 1]} : vector<8x128xf32> to vector<8x32xf32>
    %75 = vector.extract_strided_slice %72 {offsets = [0, 64], sizes = [8, 32], strides = [1, 1]} : vector<8x128xf32> to vector<8x32xf32>
    %cst_22 = arith.constant 2.000000e+00 : f32
    %76 = vector.broadcast %cst_22 : f32 to vector<8x32xf32>
    %77 = arith.mulf %76, %75 : vector<8x32xf32>
    %cst_23 = arith.constant 1.000000e+00 : f32
    %78 = vector.broadcast %cst_23 : f32 to vector<8x32xf32>
    %79 = arith.subf %77, %78 : vector<8x32xf32>
    %80 = vector.extract_strided_slice %72 {offsets = [0, 96], sizes = [8, 32], strides = [1, 1]} : vector<8x128xf32> to vector<8x32xf32>
    %81 = arith.mulf %74, %25 : vector<8x32xf32>
    %82 = arith.mulf %73, %79 : vector<8x32xf32>
    %83 = arith.addf %81, %82 : vector<8x32xf32>
    %84 = math.tanh %83 : vector<8x32xf32>
    %85 = arith.mulf %80, %84 : vector<8x32xf32>
    %c104_24 = arith.constant 104 : index
    %c0_25 = arith.constant 0 : index
    %86 = vector.load %arg2[%c104_24, %c0_25] : memref<216x128xf32, #tpu.memory_space<vmem>>, vector<32x128xf32>
    %cst_26 = arith.constant dense<0.000000e+00> : vector<8x128xf32>
    %87 = tpu.matmul %85, %86, %cst_26 {dimension_numbers = #tpu.dot_dimension_numbers<[1], [0], [0], [1], [0, 0, 1, 1], [], []>} : vector<8x32xf32>, vector<32x128xf32>, vector<8x128xf32> -> vector<8x128xf32>
    %88 = arith.addf %87, %8 : vector<8x128xf32>
    %c40 = arith.constant 40 : index
    %c0_27 = arith.constant 0 : index
    %89 = vector.load %arg2[%c40, %c0_27] : memref<216x128xf32, #tpu.memory_space<vmem>>, vector<32x128xf32>
    %cst_28 = arith.constant dense<0.000000e+00> : vector<8x128xf32>
    %90 = tpu.matmul %45, %89, %cst_28 {dimension_numbers = #tpu.dot_dimension_numbers<[1], [0], [0], [1], [0, 0, 1, 1], [], []>} : vector<8x32xf32>, vector<32x128xf32>, vector<8x128xf32> -> vector<8x128xf32>
    %91 = arith.addf %88, %90 : vector<8x128xf32>
    %92 = arith.negf %91 : vector<8x128xf32>
    %93 = math.exp %92 : vector<8x128xf32>
    %cst_29 = arith.constant 1.000000e+00 : f32
    %94 = vector.broadcast %cst_29 : f32 to vector<8x128xf32>
    %95 = arith.addf %94, %93 : vector<8x128xf32>
    %96 = arith.divf %94, %95 : vector<8x128xf32>
    %97 = vector.extract_strided_slice %96 {offsets = [0, 0], sizes = [8, 32], strides = [1, 1]} : vector<8x128xf32> to vector<8x32xf32>
    %98 = vector.extract_strided_slice %96 {offsets = [0, 32], sizes = [8, 32], strides = [1, 1]} : vector<8x128xf32> to vector<8x32xf32>
    %99 = vector.extract_strided_slice %96 {offsets = [0, 64], sizes = [8, 32], strides = [1, 1]} : vector<8x128xf32> to vector<8x32xf32>
    %cst_30 = arith.constant 2.000000e+00 : f32
    %100 = vector.broadcast %cst_30 : f32 to vector<8x32xf32>
    %101 = arith.mulf %100, %99 : vector<8x32xf32>
    %cst_31 = arith.constant 1.000000e+00 : f32
    %102 = vector.broadcast %cst_31 : f32 to vector<8x32xf32>
    %103 = arith.subf %101, %102 : vector<8x32xf32>
    %104 = vector.extract_strided_slice %96 {offsets = [0, 96], sizes = [8, 32], strides = [1, 1]} : vector<8x128xf32> to vector<8x32xf32>
    %105 = arith.mulf %98, %43 : vector<8x32xf32>
    %106 = arith.mulf %97, %103 : vector<8x32xf32>
    %107 = arith.addf %105, %106 : vector<8x32xf32>
    %108 = math.tanh %107 : vector<8x32xf32>
    %109 = arith.mulf %104, %108 : vector<8x32xf32>
    %c136_32 = arith.constant 136 : index
    %c0_33 = arith.constant 0 : index
    %110 = vector.load %arg2[%c136_32, %c0_33] : memref<216x128xf32, #tpu.memory_space<vmem>>, vector<32x128xf32>
    %cst_34 = arith.constant dense<0.000000e+00> : vector<8x128xf32>
    %111 = tpu.matmul %109, %110, %cst_34 {dimension_numbers = #tpu.dot_dimension_numbers<[1], [0], [0], [1], [0, 0, 1, 1], [], []>} : vector<8x32xf32>, vector<32x128xf32>, vector<8x128xf32> -> vector<8x128xf32>
    %112 = arith.addf %111, %11 : vector<8x128xf32>
    %c72 = arith.constant 72 : index
    %c0_35 = arith.constant 0 : index
    %113 = vector.load %arg2[%c72, %c0_35] : memref<216x128xf32, #tpu.memory_space<vmem>>, vector<32x128xf32>
    %cst_36 = arith.constant dense<0.000000e+00> : vector<8x128xf32>
    %114 = tpu.matmul %63, %113, %cst_36 {dimension_numbers = #tpu.dot_dimension_numbers<[1], [0], [0], [1], [0, 0, 1, 1], [], []>} : vector<8x32xf32>, vector<32x128xf32>, vector<8x128xf32> -> vector<8x128xf32>
    %115 = arith.addf %112, %114 : vector<8x128xf32>
    %116 = arith.negf %115 : vector<8x128xf32>
    %117 = math.exp %116 : vector<8x128xf32>
    %cst_37 = arith.constant 1.000000e+00 : f32
    %118 = vector.broadcast %cst_37 : f32 to vector<8x128xf32>
    %119 = arith.addf %118, %117 : vector<8x128xf32>
    %120 = arith.divf %118, %119 : vector<8x128xf32>
    %121 = vector.extract_strided_slice %120 {offsets = [0, 0], sizes = [8, 32], strides = [1, 1]} : vector<8x128xf32> to vector<8x32xf32>
    %122 = vector.extract_strided_slice %120 {offsets = [0, 32], sizes = [8, 32], strides = [1, 1]} : vector<8x128xf32> to vector<8x32xf32>
    %123 = vector.extract_strided_slice %120 {offsets = [0, 64], sizes = [8, 32], strides = [1, 1]} : vector<8x128xf32> to vector<8x32xf32>
    %cst_38 = arith.constant 2.000000e+00 : f32
    %124 = vector.broadcast %cst_38 : f32 to vector<8x32xf32>
    %125 = arith.mulf %124, %123 : vector<8x32xf32>
    %cst_39 = arith.constant 1.000000e+00 : f32
    %126 = vector.broadcast %cst_39 : f32 to vector<8x32xf32>
    %127 = arith.subf %125, %126 : vector<8x32xf32>
    %128 = vector.extract_strided_slice %120 {offsets = [0, 96], sizes = [8, 32], strides = [1, 1]} : vector<8x128xf32> to vector<8x32xf32>
    %129 = arith.mulf %122, %61 : vector<8x32xf32>
    %130 = arith.mulf %121, %127 : vector<8x32xf32>
    %131 = arith.addf %129, %130 : vector<8x32xf32>
    %132 = math.tanh %131 : vector<8x32xf32>
    %133 = arith.mulf %128, %132 : vector<8x32xf32>
    %134 = vector.extract_strided_slice %5 {offsets = [16, 0], sizes = [8, 128], strides = [1, 1]} : vector<64x128xf32> to vector<8x128xf32>
    %c8_40 = arith.constant 8 : index
    %c0_41 = arith.constant 0 : index
    %135 = vector.load %arg2[%c8_40, %c0_41] : memref<216x128xf32, #tpu.memory_space<vmem>>, vector<32x128xf32>
    %cst_42 = arith.constant dense<0.000000e+00> : vector<8x128xf32>
    %136 = tpu.matmul %85, %135, %cst_42 {dimension_numbers = #tpu.dot_dimension_numbers<[1], [0], [0], [1], [0, 0, 1, 1], [], []>} : vector<8x32xf32>, vector<32x128xf32>, vector<8x128xf32> -> vector<8x128xf32>
    %137 = arith.addf %134, %136 : vector<8x128xf32>
    %138 = arith.negf %137 : vector<8x128xf32>
    %139 = math.exp %138 : vector<8x128xf32>
    %cst_43 = arith.constant 1.000000e+00 : f32
    %140 = vector.broadcast %cst_43 : f32 to vector<8x128xf32>
    %141 = arith.addf %140, %139 : vector<8x128xf32>
    %142 = arith.divf %140, %141 : vector<8x128xf32>
    %143 = vector.extract_strided_slice %142 {offsets = [0, 0], sizes = [8, 32], strides = [1, 1]} : vector<8x128xf32> to vector<8x32xf32>
    %144 = vector.extract_strided_slice %142 {offsets = [0, 32], sizes = [8, 32], strides = [1, 1]} : vector<8x128xf32> to vector<8x32xf32>
    %145 = vector.extract_strided_slice %142 {offsets = [0, 64], sizes = [8, 32], strides = [1, 1]} : vector<8x128xf32> to vector<8x32xf32>
    %cst_44 = arith.constant 2.000000e+00 : f32
    %146 = vector.broadcast %cst_44 : f32 to vector<8x32xf32>
    %147 = arith.mulf %146, %145 : vector<8x32xf32>
    %cst_45 = arith.constant 1.000000e+00 : f32
    %148 = vector.broadcast %cst_45 : f32 to vector<8x32xf32>
    %149 = arith.subf %147, %148 : vector<8x32xf32>
    %150 = vector.extract_strided_slice %142 {offsets = [0, 96], sizes = [8, 32], strides = [1, 1]} : vector<8x128xf32> to vector<8x32xf32>
    %151 = arith.mulf %144, %83 : vector<8x32xf32>
    %152 = arith.mulf %143, %149 : vector<8x32xf32>
    %153 = arith.addf %151, %152 : vector<8x32xf32>
    %154 = math.tanh %153 : vector<8x32xf32>
    %155 = arith.mulf %150, %154 : vector<8x32xf32>
    %c104_46 = arith.constant 104 : index
    %c0_47 = arith.constant 0 : index
    %156 = vector.load %arg2[%c104_46, %c0_47] : memref<216x128xf32, #tpu.memory_space<vmem>>, vector<32x128xf32>
    %cst_48 = arith.constant dense<0.000000e+00> : vector<8x128xf32>
    %157 = tpu.matmul %155, %156, %cst_48 {dimension_numbers = #tpu.dot_dimension_numbers<[1], [0], [0], [1], [0, 0, 1, 1], [], []>} : vector<8x32xf32>, vector<32x128xf32>, vector<8x128xf32> -> vector<8x128xf32>
    %158 = arith.addf %157, %8 : vector<8x128xf32>
    %c40_49 = arith.constant 40 : index
    %c0_50 = arith.constant 0 : index
    %159 = vector.load %arg2[%c40_49, %c0_50] : memref<216x128xf32, #tpu.memory_space<vmem>>, vector<32x128xf32>
    %cst_51 = arith.constant dense<0.000000e+00> : vector<8x128xf32>
    %160 = tpu.matmul %109, %159, %cst_51 {dimension_numbers = #tpu.dot_dimension_numbers<[1], [0], [0], [1], [0, 0, 1, 1], [], []>} : vector<8x32xf32>, vector<32x128xf32>, vector<8x128xf32> -> vector<8x128xf32>
    %161 = arith.addf %158, %160 : vector<8x128xf32>
    %162 = arith.negf %161 : vector<8x128xf32>
    %163 = math.exp %162 : vector<8x128xf32>
    %cst_52 = arith.constant 1.000000e+00 : f32
    %164 = vector.broadcast %cst_52 : f32 to vector<8x128xf32>
    %165 = arith.addf %164, %163 : vector<8x128xf32>
    %166 = arith.divf %164, %165 : vector<8x128xf32>
    %167 = vector.extract_strided_slice %166 {offsets = [0, 0], sizes = [8, 32], strides = [1, 1]} : vector<8x128xf32> to vector<8x32xf32>
    %168 = vector.extract_strided_slice %166 {offsets = [0, 32], sizes = [8, 32], strides = [1, 1]} : vector<8x128xf32> to vector<8x32xf32>
    %169 = vector.extract_strided_slice %166 {offsets = [0, 64], sizes = [8, 32], strides = [1, 1]} : vector<8x128xf32> to vector<8x32xf32>
    %cst_53 = arith.constant 2.000000e+00 : f32
    %170 = vector.broadcast %cst_53 : f32 to vector<8x32xf32>
    %171 = arith.mulf %170, %169 : vector<8x32xf32>
    %cst_54 = arith.constant 1.000000e+00 : f32
    %172 = vector.broadcast %cst_54 : f32 to vector<8x32xf32>
    %173 = arith.subf %171, %172 : vector<8x32xf32>
    %174 = vector.extract_strided_slice %166 {offsets = [0, 96], sizes = [8, 32], strides = [1, 1]} : vector<8x128xf32> to vector<8x32xf32>
    %175 = arith.mulf %168, %107 : vector<8x32xf32>
    %176 = arith.mulf %167, %173 : vector<8x32xf32>
    %177 = arith.addf %175, %176 : vector<8x32xf32>
    %178 = math.tanh %177 : vector<8x32xf32>
    %179 = arith.mulf %174, %178 : vector<8x32xf32>
    %c136_55 = arith.constant 136 : index
    %c0_56 = arith.constant 0 : index
    %180 = vector.load %arg2[%c136_55, %c0_56] : memref<216x128xf32, #tpu.memory_space<vmem>>, vector<32x128xf32>
    %cst_57 = arith.constant dense<0.000000e+00> : vector<8x128xf32>
    %181 = tpu.matmul %179, %180, %cst_57 {dimension_numbers = #tpu.dot_dimension_numbers<[1], [0], [0], [1], [0, 0, 1, 1], [], []>} : vector<8x32xf32>, vector<32x128xf32>, vector<8x128xf32> -> vector<8x128xf32>
    %182 = arith.addf %181, %11 : vector<8x128xf32>
    %c72_58 = arith.constant 72 : index
    %c0_59 = arith.constant 0 : index
    %183 = vector.load %arg2[%c72_58, %c0_59] : memref<216x128xf32, #tpu.memory_space<vmem>>, vector<32x128xf32>
    %cst_60 = arith.constant dense<0.000000e+00> : vector<8x128xf32>
    %184 = tpu.matmul %133, %183, %cst_60 {dimension_numbers = #tpu.dot_dimension_numbers<[1], [0], [0], [1], [0, 0, 1, 1], [], []>} : vector<8x32xf32>, vector<32x128xf32>, vector<8x128xf32> -> vector<8x128xf32>
    %185 = arith.addf %182, %184 : vector<8x128xf32>
    %186 = arith.negf %185 : vector<8x128xf32>
    %187 = math.exp %186 : vector<8x128xf32>
    %cst_61 = arith.constant 1.000000e+00 : f32
    %188 = vector.broadcast %cst_61 : f32 to vector<8x128xf32>
    %189 = arith.addf %188, %187 : vector<8x128xf32>
    %190 = arith.divf %188, %189 : vector<8x128xf32>
    %191 = vector.extract_strided_slice %190 {offsets = [0, 0], sizes = [8, 32], strides = [1, 1]} : vector<8x128xf32> to vector<8x32xf32>
    %192 = vector.extract_strided_slice %190 {offsets = [0, 32], sizes = [8, 32], strides = [1, 1]} : vector<8x128xf32> to vector<8x32xf32>
    %193 = vector.extract_strided_slice %190 {offsets = [0, 64], sizes = [8, 32], strides = [1, 1]} : vector<8x128xf32> to vector<8x32xf32>
    %cst_62 = arith.constant 2.000000e+00 : f32
    %194 = vector.broadcast %cst_62 : f32 to vector<8x32xf32>
    %195 = arith.mulf %194, %193 : vector<8x32xf32>
    %cst_63 = arith.constant 1.000000e+00 : f32
    %196 = vector.broadcast %cst_63 : f32 to vector<8x32xf32>
    %197 = arith.subf %195, %196 : vector<8x32xf32>
    %198 = vector.extract_strided_slice %190 {offsets = [0, 96], sizes = [8, 32], strides = [1, 1]} : vector<8x128xf32> to vector<8x32xf32>
    %199 = arith.mulf %192, %131 : vector<8x32xf32>
    %200 = arith.mulf %191, %197 : vector<8x32xf32>
    %201 = arith.addf %199, %200 : vector<8x32xf32>
    %202 = math.tanh %201 : vector<8x32xf32>
    %203 = arith.mulf %198, %202 : vector<8x32xf32>
    %204 = vector.extract_strided_slice %5 {offsets = [24, 0], sizes = [8, 128], strides = [1, 1]} : vector<64x128xf32> to vector<8x128xf32>
    %c8_64 = arith.constant 8 : index
    %c0_65 = arith.constant 0 : index
    %205 = vector.load %arg2[%c8_64, %c0_65] : memref<216x128xf32, #tpu.memory_space<vmem>>, vector<32x128xf32>
    %cst_66 = arith.constant dense<0.000000e+00> : vector<8x128xf32>
    %206 = tpu.matmul %155, %205, %cst_66 {dimension_numbers = #tpu.dot_dimension_numbers<[1], [0], [0], [1], [0, 0, 1, 1], [], []>} : vector<8x32xf32>, vector<32x128xf32>, vector<8x128xf32> -> vector<8x128xf32>
    %207 = arith.addf %204, %206 : vector<8x128xf32>
    %208 = arith.negf %207 : vector<8x128xf32>
    %209 = math.exp %208 : vector<8x128xf32>
    %cst_67 = arith.constant 1.000000e+00 : f32
    %210 = vector.broadcast %cst_67 : f32 to vector<8x128xf32>
    %211 = arith.addf %210, %209 : vector<8x128xf32>
    %212 = arith.divf %210, %211 : vector<8x128xf32>
    %213 = vector.extract_strided_slice %212 {offsets = [0, 0], sizes = [8, 32], strides = [1, 1]} : vector<8x128xf32> to vector<8x32xf32>
    %214 = vector.extract_strided_slice %212 {offsets = [0, 32], sizes = [8, 32], strides = [1, 1]} : vector<8x128xf32> to vector<8x32xf32>
    %215 = vector.extract_strided_slice %212 {offsets = [0, 64], sizes = [8, 32], strides = [1, 1]} : vector<8x128xf32> to vector<8x32xf32>
    %cst_68 = arith.constant 2.000000e+00 : f32
    %216 = vector.broadcast %cst_68 : f32 to vector<8x32xf32>
    %217 = arith.mulf %216, %215 : vector<8x32xf32>
    %cst_69 = arith.constant 1.000000e+00 : f32
    %218 = vector.broadcast %cst_69 : f32 to vector<8x32xf32>
    %219 = arith.subf %217, %218 : vector<8x32xf32>
    %220 = vector.extract_strided_slice %212 {offsets = [0, 96], sizes = [8, 32], strides = [1, 1]} : vector<8x128xf32> to vector<8x32xf32>
    %221 = arith.mulf %214, %153 : vector<8x32xf32>
    %222 = arith.mulf %213, %219 : vector<8x32xf32>
    %223 = arith.addf %221, %222 : vector<8x32xf32>
    %224 = math.tanh %223 : vector<8x32xf32>
    %225 = arith.mulf %220, %224 : vector<8x32xf32>
    %c104_70 = arith.constant 104 : index
    %c0_71 = arith.constant 0 : index
    %226 = vector.load %arg2[%c104_70, %c0_71] : memref<216x128xf32, #tpu.memory_space<vmem>>, vector<32x128xf32>
    %cst_72 = arith.constant dense<0.000000e+00> : vector<8x128xf32>
    %227 = tpu.matmul %225, %226, %cst_72 {dimension_numbers = #tpu.dot_dimension_numbers<[1], [0], [0], [1], [0, 0, 1, 1], [], []>} : vector<8x32xf32>, vector<32x128xf32>, vector<8x128xf32> -> vector<8x128xf32>
    %228 = arith.addf %227, %8 : vector<8x128xf32>
    %c40_73 = arith.constant 40 : index
    %c0_74 = arith.constant 0 : index
    %229 = vector.load %arg2[%c40_73, %c0_74] : memref<216x128xf32, #tpu.memory_space<vmem>>, vector<32x128xf32>
    %cst_75 = arith.constant dense<0.000000e+00> : vector<8x128xf32>
    %230 = tpu.matmul %179, %229, %cst_75 {dimension_numbers = #tpu.dot_dimension_numbers<[1], [0], [0], [1], [0, 0, 1, 1], [], []>} : vector<8x32xf32>, vector<32x128xf32>, vector<8x128xf32> -> vector<8x128xf32>
    %231 = arith.addf %228, %230 : vector<8x128xf32>
    %232 = arith.negf %231 : vector<8x128xf32>
    %233 = math.exp %232 : vector<8x128xf32>
    %cst_76 = arith.constant 1.000000e+00 : f32
    %234 = vector.broadcast %cst_76 : f32 to vector<8x128xf32>
    %235 = arith.addf %234, %233 : vector<8x128xf32>
    %236 = arith.divf %234, %235 : vector<8x128xf32>
    %237 = vector.extract_strided_slice %236 {offsets = [0, 0], sizes = [8, 32], strides = [1, 1]} : vector<8x128xf32> to vector<8x32xf32>
    %238 = vector.extract_strided_slice %236 {offsets = [0, 32], sizes = [8, 32], strides = [1, 1]} : vector<8x128xf32> to vector<8x32xf32>
    %239 = vector.extract_strided_slice %236 {offsets = [0, 64], sizes = [8, 32], strides = [1, 1]} : vector<8x128xf32> to vector<8x32xf32>
    %cst_77 = arith.constant 2.000000e+00 : f32
    %240 = vector.broadcast %cst_77 : f32 to vector<8x32xf32>
    %241 = arith.mulf %240, %239 : vector<8x32xf32>
    %cst_78 = arith.constant 1.000000e+00 : f32
    %242 = vector.broadcast %cst_78 : f32 to vector<8x32xf32>
    %243 = arith.subf %241, %242 : vector<8x32xf32>
    %244 = vector.extract_strided_slice %236 {offsets = [0, 96], sizes = [8, 32], strides = [1, 1]} : vector<8x128xf32> to vector<8x32xf32>
    %245 = arith.mulf %238, %177 : vector<8x32xf32>
    %246 = arith.mulf %237, %243 : vector<8x32xf32>
    %247 = arith.addf %245, %246 : vector<8x32xf32>
    %248 = math.tanh %247 : vector<8x32xf32>
    %249 = arith.mulf %244, %248 : vector<8x32xf32>
    %c136_79 = arith.constant 136 : index
    %c0_80 = arith.constant 0 : index
    %250 = vector.load %arg2[%c136_79, %c0_80] : memref<216x128xf32, #tpu.memory_space<vmem>>, vector<32x128xf32>
    %cst_81 = arith.constant dense<0.000000e+00> : vector<8x128xf32>
    %251 = tpu.matmul %249, %250, %cst_81 {dimension_numbers = #tpu.dot_dimension_numbers<[1], [0], [0], [1], [0, 0, 1, 1], [], []>} : vector<8x32xf32>, vector<32x128xf32>, vector<8x128xf32> -> vector<8x128xf32>
    %252 = arith.addf %251, %11 : vector<8x128xf32>
    %c72_82 = arith.constant 72 : index
    %c0_83 = arith.constant 0 : index
    %253 = vector.load %arg2[%c72_82, %c0_83] : memref<216x128xf32, #tpu.memory_space<vmem>>, vector<32x128xf32>
    %cst_84 = arith.constant dense<0.000000e+00> : vector<8x128xf32>
    %254 = tpu.matmul %203, %253, %cst_84 {dimension_numbers = #tpu.dot_dimension_numbers<[1], [0], [0], [1], [0, 0, 1, 1], [], []>} : vector<8x32xf32>, vector<32x128xf32>, vector<8x128xf32> -> vector<8x128xf32>
    %255 = arith.addf %252, %254 : vector<8x128xf32>
    %256 = arith.negf %255 : vector<8x128xf32>
    %257 = math.exp %256 : vector<8x128xf32>
    %cst_85 = arith.constant 1.000000e+00 : f32
    %258 = vector.broadcast %cst_85 : f32 to vector<8x128xf32>
    %259 = arith.addf %258, %257 : vector<8x128xf32>
    %260 = arith.divf %258, %259 : vector<8x128xf32>
    %261 = vector.extract_strided_slice %260 {offsets = [0, 0], sizes = [8, 32], strides = [1, 1]} : vector<8x128xf32> to vector<8x32xf32>
    %262 = vector.extract_strided_slice %260 {offsets = [0, 32], sizes = [8, 32], strides = [1, 1]} : vector<8x128xf32> to vector<8x32xf32>
    %263 = vector.extract_strided_slice %260 {offsets = [0, 64], sizes = [8, 32], strides = [1, 1]} : vector<8x128xf32> to vector<8x32xf32>
    %cst_86 = arith.constant 2.000000e+00 : f32
    %264 = vector.broadcast %cst_86 : f32 to vector<8x32xf32>
    %265 = arith.mulf %264, %263 : vector<8x32xf32>
    %cst_87 = arith.constant 1.000000e+00 : f32
    %266 = vector.broadcast %cst_87 : f32 to vector<8x32xf32>
    %267 = arith.subf %265, %266 : vector<8x32xf32>
    %268 = vector.extract_strided_slice %260 {offsets = [0, 96], sizes = [8, 32], strides = [1, 1]} : vector<8x128xf32> to vector<8x32xf32>
    %269 = arith.mulf %262, %201 : vector<8x32xf32>
    %270 = arith.mulf %261, %267 : vector<8x32xf32>
    %271 = arith.addf %269, %270 : vector<8x32xf32>
    %272 = math.tanh %271 : vector<8x32xf32>
    %273 = arith.mulf %268, %272 : vector<8x32xf32>
    %274 = vector.extract_strided_slice %5 {offsets = [32, 0], sizes = [8, 128], strides = [1, 1]} : vector<64x128xf32> to vector<8x128xf32>
    %c8_88 = arith.constant 8 : index
    %c0_89 = arith.constant 0 : index
    %275 = vector.load %arg2[%c8_88, %c0_89] : memref<216x128xf32, #tpu.memory_space<vmem>>, vector<32x128xf32>
    %cst_90 = arith.constant dense<0.000000e+00> : vector<8x128xf32>
    %276 = tpu.matmul %225, %275, %cst_90 {dimension_numbers = #tpu.dot_dimension_numbers<[1], [0], [0], [1], [0, 0, 1, 1], [], []>} : vector<8x32xf32>, vector<32x128xf32>, vector<8x128xf32> -> vector<8x128xf32>
    %277 = arith.addf %274, %276 : vector<8x128xf32>
    %278 = arith.negf %277 : vector<8x128xf32>
    %279 = math.exp %278 : vector<8x128xf32>
    %cst_91 = arith.constant 1.000000e+00 : f32
    %280 = vector.broadcast %cst_91 : f32 to vector<8x128xf32>
    %281 = arith.addf %280, %279 : vector<8x128xf32>
    %282 = arith.divf %280, %281 : vector<8x128xf32>
    %283 = vector.extract_strided_slice %282 {offsets = [0, 0], sizes = [8, 32], strides = [1, 1]} : vector<8x128xf32> to vector<8x32xf32>
    %284 = vector.extract_strided_slice %282 {offsets = [0, 32], sizes = [8, 32], strides = [1, 1]} : vector<8x128xf32> to vector<8x32xf32>
    %285 = vector.extract_strided_slice %282 {offsets = [0, 64], sizes = [8, 32], strides = [1, 1]} : vector<8x128xf32> to vector<8x32xf32>
    %cst_92 = arith.constant 2.000000e+00 : f32
    %286 = vector.broadcast %cst_92 : f32 to vector<8x32xf32>
    %287 = arith.mulf %286, %285 : vector<8x32xf32>
    %cst_93 = arith.constant 1.000000e+00 : f32
    %288 = vector.broadcast %cst_93 : f32 to vector<8x32xf32>
    %289 = arith.subf %287, %288 : vector<8x32xf32>
    %290 = vector.extract_strided_slice %282 {offsets = [0, 96], sizes = [8, 32], strides = [1, 1]} : vector<8x128xf32> to vector<8x32xf32>
    %291 = arith.mulf %284, %223 : vector<8x32xf32>
    %292 = arith.mulf %283, %289 : vector<8x32xf32>
    %293 = arith.addf %291, %292 : vector<8x32xf32>
    %294 = math.tanh %293 : vector<8x32xf32>
    %295 = arith.mulf %290, %294 : vector<8x32xf32>
    %c104_94 = arith.constant 104 : index
    %c0_95 = arith.constant 0 : index
    %296 = vector.load %arg2[%c104_94, %c0_95] : memref<216x128xf32, #tpu.memory_space<vmem>>, vector<32x128xf32>
    %cst_96 = arith.constant dense<0.000000e+00> : vector<8x128xf32>
    %297 = tpu.matmul %295, %296, %cst_96 {dimension_numbers = #tpu.dot_dimension_numbers<[1], [0], [0], [1], [0, 0, 1, 1], [], []>} : vector<8x32xf32>, vector<32x128xf32>, vector<8x128xf32> -> vector<8x128xf32>
    %298 = arith.addf %297, %8 : vector<8x128xf32>
    %c40_97 = arith.constant 40 : index
    %c0_98 = arith.constant 0 : index
    %299 = vector.load %arg2[%c40_97, %c0_98] : memref<216x128xf32, #tpu.memory_space<vmem>>, vector<32x128xf32>
    %cst_99 = arith.constant dense<0.000000e+00> : vector<8x128xf32>
    %300 = tpu.matmul %249, %299, %cst_99 {dimension_numbers = #tpu.dot_dimension_numbers<[1], [0], [0], [1], [0, 0, 1, 1], [], []>} : vector<8x32xf32>, vector<32x128xf32>, vector<8x128xf32> -> vector<8x128xf32>
    %301 = arith.addf %298, %300 : vector<8x128xf32>
    %302 = arith.negf %301 : vector<8x128xf32>
    %303 = math.exp %302 : vector<8x128xf32>
    %cst_100 = arith.constant 1.000000e+00 : f32
    %304 = vector.broadcast %cst_100 : f32 to vector<8x128xf32>
    %305 = arith.addf %304, %303 : vector<8x128xf32>
    %306 = arith.divf %304, %305 : vector<8x128xf32>
    %307 = vector.extract_strided_slice %306 {offsets = [0, 0], sizes = [8, 32], strides = [1, 1]} : vector<8x128xf32> to vector<8x32xf32>
    %308 = vector.extract_strided_slice %306 {offsets = [0, 32], sizes = [8, 32], strides = [1, 1]} : vector<8x128xf32> to vector<8x32xf32>
    %309 = vector.extract_strided_slice %306 {offsets = [0, 64], sizes = [8, 32], strides = [1, 1]} : vector<8x128xf32> to vector<8x32xf32>
    %cst_101 = arith.constant 2.000000e+00 : f32
    %310 = vector.broadcast %cst_101 : f32 to vector<8x32xf32>
    %311 = arith.mulf %310, %309 : vector<8x32xf32>
    %cst_102 = arith.constant 1.000000e+00 : f32
    %312 = vector.broadcast %cst_102 : f32 to vector<8x32xf32>
    %313 = arith.subf %311, %312 : vector<8x32xf32>
    %314 = vector.extract_strided_slice %306 {offsets = [0, 96], sizes = [8, 32], strides = [1, 1]} : vector<8x128xf32> to vector<8x32xf32>
    %315 = arith.mulf %308, %247 : vector<8x32xf32>
    %316 = arith.mulf %307, %313 : vector<8x32xf32>
    %317 = arith.addf %315, %316 : vector<8x32xf32>
    %318 = math.tanh %317 : vector<8x32xf32>
    %319 = arith.mulf %314, %318 : vector<8x32xf32>
    %c136_103 = arith.constant 136 : index
    %c0_104 = arith.constant 0 : index
    %320 = vector.load %arg2[%c136_103, %c0_104] : memref<216x128xf32, #tpu.memory_space<vmem>>, vector<32x128xf32>
    %cst_105 = arith.constant dense<0.000000e+00> : vector<8x128xf32>
    %321 = tpu.matmul %319, %320, %cst_105 {dimension_numbers = #tpu.dot_dimension_numbers<[1], [0], [0], [1], [0, 0, 1, 1], [], []>} : vector<8x32xf32>, vector<32x128xf32>, vector<8x128xf32> -> vector<8x128xf32>
    %322 = arith.addf %321, %11 : vector<8x128xf32>
    %c72_106 = arith.constant 72 : index
    %c0_107 = arith.constant 0 : index
    %323 = vector.load %arg2[%c72_106, %c0_107] : memref<216x128xf32, #tpu.memory_space<vmem>>, vector<32x128xf32>
    %cst_108 = arith.constant dense<0.000000e+00> : vector<8x128xf32>
    %324 = tpu.matmul %273, %323, %cst_108 {dimension_numbers = #tpu.dot_dimension_numbers<[1], [0], [0], [1], [0, 0, 1, 1], [], []>} : vector<8x32xf32>, vector<32x128xf32>, vector<8x128xf32> -> vector<8x128xf32>
    %325 = arith.addf %322, %324 : vector<8x128xf32>
    %326 = arith.negf %325 : vector<8x128xf32>
    %327 = math.exp %326 : vector<8x128xf32>
    %cst_109 = arith.constant 1.000000e+00 : f32
    %328 = vector.broadcast %cst_109 : f32 to vector<8x128xf32>
    %329 = arith.addf %328, %327 : vector<8x128xf32>
    %330 = arith.divf %328, %329 : vector<8x128xf32>
    %331 = vector.extract_strided_slice %330 {offsets = [0, 0], sizes = [8, 32], strides = [1, 1]} : vector<8x128xf32> to vector<8x32xf32>
    %332 = vector.extract_strided_slice %330 {offsets = [0, 32], sizes = [8, 32], strides = [1, 1]} : vector<8x128xf32> to vector<8x32xf32>
    %333 = vector.extract_strided_slice %330 {offsets = [0, 64], sizes = [8, 32], strides = [1, 1]} : vector<8x128xf32> to vector<8x32xf32>
    %cst_110 = arith.constant 2.000000e+00 : f32
    %334 = vector.broadcast %cst_110 : f32 to vector<8x32xf32>
    %335 = arith.mulf %334, %333 : vector<8x32xf32>
    %cst_111 = arith.constant 1.000000e+00 : f32
    %336 = vector.broadcast %cst_111 : f32 to vector<8x32xf32>
    %337 = arith.subf %335, %336 : vector<8x32xf32>
    %338 = vector.extract_strided_slice %330 {offsets = [0, 96], sizes = [8, 32], strides = [1, 1]} : vector<8x128xf32> to vector<8x32xf32>
    %339 = arith.mulf %332, %271 : vector<8x32xf32>
    %340 = arith.mulf %331, %337 : vector<8x32xf32>
    %341 = arith.addf %339, %340 : vector<8x32xf32>
    %342 = math.tanh %341 : vector<8x32xf32>
    %343 = arith.mulf %338, %342 : vector<8x32xf32>
    %344 = vector.extract_strided_slice %5 {offsets = [40, 0], sizes = [8, 128], strides = [1, 1]} : vector<64x128xf32> to vector<8x128xf32>
    %c8_112 = arith.constant 8 : index
    %c0_113 = arith.constant 0 : index
    %345 = vector.load %arg2[%c8_112, %c0_113] : memref<216x128xf32, #tpu.memory_space<vmem>>, vector<32x128xf32>
    %cst_114 = arith.constant dense<0.000000e+00> : vector<8x128xf32>
    %346 = tpu.matmul %295, %345, %cst_114 {dimension_numbers = #tpu.dot_dimension_numbers<[1], [0], [0], [1], [0, 0, 1, 1], [], []>} : vector<8x32xf32>, vector<32x128xf32>, vector<8x128xf32> -> vector<8x128xf32>
    %347 = arith.addf %344, %346 : vector<8x128xf32>
    %348 = arith.negf %347 : vector<8x128xf32>
    %349 = math.exp %348 : vector<8x128xf32>
    %cst_115 = arith.constant 1.000000e+00 : f32
    %350 = vector.broadcast %cst_115 : f32 to vector<8x128xf32>
    %351 = arith.addf %350, %349 : vector<8x128xf32>
    %352 = arith.divf %350, %351 : vector<8x128xf32>
    %353 = vector.extract_strided_slice %352 {offsets = [0, 0], sizes = [8, 32], strides = [1, 1]} : vector<8x128xf32> to vector<8x32xf32>
    %354 = vector.extract_strided_slice %352 {offsets = [0, 32], sizes = [8, 32], strides = [1, 1]} : vector<8x128xf32> to vector<8x32xf32>
    %355 = vector.extract_strided_slice %352 {offsets = [0, 64], sizes = [8, 32], strides = [1, 1]} : vector<8x128xf32> to vector<8x32xf32>
    %cst_116 = arith.constant 2.000000e+00 : f32
    %356 = vector.broadcast %cst_116 : f32 to vector<8x32xf32>
    %357 = arith.mulf %356, %355 : vector<8x32xf32>
    %cst_117 = arith.constant 1.000000e+00 : f32
    %358 = vector.broadcast %cst_117 : f32 to vector<8x32xf32>
    %359 = arith.subf %357, %358 : vector<8x32xf32>
    %360 = vector.extract_strided_slice %352 {offsets = [0, 96], sizes = [8, 32], strides = [1, 1]} : vector<8x128xf32> to vector<8x32xf32>
    %361 = arith.mulf %354, %293 : vector<8x32xf32>
    %362 = arith.mulf %353, %359 : vector<8x32xf32>
    %363 = arith.addf %361, %362 : vector<8x32xf32>
    %364 = math.tanh %363 : vector<8x32xf32>
    %365 = arith.mulf %360, %364 : vector<8x32xf32>
    %c104_118 = arith.constant 104 : index
    %c0_119 = arith.constant 0 : index
    %366 = vector.load %arg2[%c104_118, %c0_119] : memref<216x128xf32, #tpu.memory_space<vmem>>, vector<32x128xf32>
    %cst_120 = arith.constant dense<0.000000e+00> : vector<8x128xf32>
    %367 = tpu.matmul %365, %366, %cst_120 {dimension_numbers = #tpu.dot_dimension_numbers<[1], [0], [0], [1], [0, 0, 1, 1], [], []>} : vector<8x32xf32>, vector<32x128xf32>, vector<8x128xf32> -> vector<8x128xf32>
    %368 = arith.addf %367, %8 : vector<8x128xf32>
    %c40_121 = arith.constant 40 : index
    %c0_122 = arith.constant 0 : index
    %369 = vector.load %arg2[%c40_121, %c0_122] : memref<216x128xf32, #tpu.memory_space<vmem>>, vector<32x128xf32>
    %cst_123 = arith.constant dense<0.000000e+00> : vector<8x128xf32>
    %370 = tpu.matmul %319, %369, %cst_123 {dimension_numbers = #tpu.dot_dimension_numbers<[1], [0], [0], [1], [0, 0, 1, 1], [], []>} : vector<8x32xf32>, vector<32x128xf32>, vector<8x128xf32> -> vector<8x128xf32>
    %371 = arith.addf %368, %370 : vector<8x128xf32>
    %372 = arith.negf %371 : vector<8x128xf32>
    %373 = math.exp %372 : vector<8x128xf32>
    %cst_124 = arith.constant 1.000000e+00 : f32
    %374 = vector.broadcast %cst_124 : f32 to vector<8x128xf32>
    %375 = arith.addf %374, %373 : vector<8x128xf32>
    %376 = arith.divf %374, %375 : vector<8x128xf32>
    %377 = vector.extract_strided_slice %376 {offsets = [0, 0], sizes = [8, 32], strides = [1, 1]} : vector<8x128xf32> to vector<8x32xf32>
    %378 = vector.extract_strided_slice %376 {offsets = [0, 32], sizes = [8, 32], strides = [1, 1]} : vector<8x128xf32> to vector<8x32xf32>
    %379 = vector.extract_strided_slice %376 {offsets = [0, 64], sizes = [8, 32], strides = [1, 1]} : vector<8x128xf32> to vector<8x32xf32>
    %cst_125 = arith.constant 2.000000e+00 : f32
    %380 = vector.broadcast %cst_125 : f32 to vector<8x32xf32>
    %381 = arith.mulf %380, %379 : vector<8x32xf32>
    %cst_126 = arith.constant 1.000000e+00 : f32
    %382 = vector.broadcast %cst_126 : f32 to vector<8x32xf32>
    %383 = arith.subf %381, %382 : vector<8x32xf32>
    %384 = vector.extract_strided_slice %376 {offsets = [0, 96], sizes = [8, 32], strides = [1, 1]} : vector<8x128xf32> to vector<8x32xf32>
    %385 = arith.mulf %378, %317 : vector<8x32xf32>
    %386 = arith.mulf %377, %383 : vector<8x32xf32>
    %387 = arith.addf %385, %386 : vector<8x32xf32>
    %388 = math.tanh %387 : vector<8x32xf32>
    %389 = arith.mulf %384, %388 : vector<8x32xf32>
    %c136_127 = arith.constant 136 : index
    %c0_128 = arith.constant 0 : index
    %390 = vector.load %arg2[%c136_127, %c0_128] : memref<216x128xf32, #tpu.memory_space<vmem>>, vector<32x128xf32>
    %cst_129 = arith.constant dense<0.000000e+00> : vector<8x128xf32>
    %391 = tpu.matmul %389, %390, %cst_129 {dimension_numbers = #tpu.dot_dimension_numbers<[1], [0], [0], [1], [0, 0, 1, 1], [], []>} : vector<8x32xf32>, vector<32x128xf32>, vector<8x128xf32> -> vector<8x128xf32>
    %392 = arith.addf %391, %11 : vector<8x128xf32>
    %c72_130 = arith.constant 72 : index
    %c0_131 = arith.constant 0 : index
    %393 = vector.load %arg2[%c72_130, %c0_131] : memref<216x128xf32, #tpu.memory_space<vmem>>, vector<32x128xf32>
    %cst_132 = arith.constant dense<0.000000e+00> : vector<8x128xf32>
    %394 = tpu.matmul %343, %393, %cst_132 {dimension_numbers = #tpu.dot_dimension_numbers<[1], [0], [0], [1], [0, 0, 1, 1], [], []>} : vector<8x32xf32>, vector<32x128xf32>, vector<8x128xf32> -> vector<8x128xf32>
    %395 = arith.addf %392, %394 : vector<8x128xf32>
    %396 = arith.negf %395 : vector<8x128xf32>
    %397 = math.exp %396 : vector<8x128xf32>
    %cst_133 = arith.constant 1.000000e+00 : f32
    %398 = vector.broadcast %cst_133 : f32 to vector<8x128xf32>
    %399 = arith.addf %398, %397 : vector<8x128xf32>
    %400 = arith.divf %398, %399 : vector<8x128xf32>
    %401 = vector.extract_strided_slice %400 {offsets = [0, 0], sizes = [8, 32], strides = [1, 1]} : vector<8x128xf32> to vector<8x32xf32>
    %402 = vector.extract_strided_slice %400 {offsets = [0, 32], sizes = [8, 32], strides = [1, 1]} : vector<8x128xf32> to vector<8x32xf32>
    %403 = vector.extract_strided_slice %400 {offsets = [0, 64], sizes = [8, 32], strides = [1, 1]} : vector<8x128xf32> to vector<8x32xf32>
    %cst_134 = arith.constant 2.000000e+00 : f32
    %404 = vector.broadcast %cst_134 : f32 to vector<8x32xf32>
    %405 = arith.mulf %404, %403 : vector<8x32xf32>
    %cst_135 = arith.constant 1.000000e+00 : f32
    %406 = vector.broadcast %cst_135 : f32 to vector<8x32xf32>
    %407 = arith.subf %405, %406 : vector<8x32xf32>
    %408 = vector.extract_strided_slice %400 {offsets = [0, 96], sizes = [8, 32], strides = [1, 1]} : vector<8x128xf32> to vector<8x32xf32>
    %409 = arith.mulf %402, %341 : vector<8x32xf32>
    %410 = arith.mulf %401, %407 : vector<8x32xf32>
    %411 = arith.addf %409, %410 : vector<8x32xf32>
    %412 = math.tanh %411 : vector<8x32xf32>
    %413 = arith.mulf %408, %412 : vector<8x32xf32>
    %414 = vector.extract_strided_slice %5 {offsets = [48, 0], sizes = [8, 128], strides = [1, 1]} : vector<64x128xf32> to vector<8x128xf32>
    %c8_136 = arith.constant 8 : index
    %c0_137 = arith.constant 0 : index
    %415 = vector.load %arg2[%c8_136, %c0_137] : memref<216x128xf32, #tpu.memory_space<vmem>>, vector<32x128xf32>
    %cst_138 = arith.constant dense<0.000000e+00> : vector<8x128xf32>
    %416 = tpu.matmul %365, %415, %cst_138 {dimension_numbers = #tpu.dot_dimension_numbers<[1], [0], [0], [1], [0, 0, 1, 1], [], []>} : vector<8x32xf32>, vector<32x128xf32>, vector<8x128xf32> -> vector<8x128xf32>
    %417 = arith.addf %414, %416 : vector<8x128xf32>
    %418 = arith.negf %417 : vector<8x128xf32>
    %419 = math.exp %418 : vector<8x128xf32>
    %cst_139 = arith.constant 1.000000e+00 : f32
    %420 = vector.broadcast %cst_139 : f32 to vector<8x128xf32>
    %421 = arith.addf %420, %419 : vector<8x128xf32>
    %422 = arith.divf %420, %421 : vector<8x128xf32>
    %423 = vector.extract_strided_slice %422 {offsets = [0, 0], sizes = [8, 32], strides = [1, 1]} : vector<8x128xf32> to vector<8x32xf32>
    %424 = vector.extract_strided_slice %422 {offsets = [0, 32], sizes = [8, 32], strides = [1, 1]} : vector<8x128xf32> to vector<8x32xf32>
    %425 = vector.extract_strided_slice %422 {offsets = [0, 64], sizes = [8, 32], strides = [1, 1]} : vector<8x128xf32> to vector<8x32xf32>
    %cst_140 = arith.constant 2.000000e+00 : f32
    %426 = vector.broadcast %cst_140 : f32 to vector<8x32xf32>
    %427 = arith.mulf %426, %425 : vector<8x32xf32>
    %cst_141 = arith.constant 1.000000e+00 : f32
    %428 = vector.broadcast %cst_141 : f32 to vector<8x32xf32>
    %429 = arith.subf %427, %428 : vector<8x32xf32>
    %430 = vector.extract_strided_slice %422 {offsets = [0, 96], sizes = [8, 32], strides = [1, 1]} : vector<8x128xf32> to vector<8x32xf32>
    %431 = arith.mulf %424, %363 : vector<8x32xf32>
    %432 = arith.mulf %423, %429 : vector<8x32xf32>
    %433 = arith.addf %431, %432 : vector<8x32xf32>
    %434 = math.tanh %433 : vector<8x32xf32>
    %435 = arith.mulf %430, %434 : vector<8x32xf32>
    %c104_142 = arith.constant 104 : index
    %c0_143 = arith.constant 0 : index
    %436 = vector.load %arg2[%c104_142, %c0_143] : memref<216x128xf32, #tpu.memory_space<vmem>>, vector<32x128xf32>
    %cst_144 = arith.constant dense<0.000000e+00> : vector<8x128xf32>
    %437 = tpu.matmul %435, %436, %cst_144 {dimension_numbers = #tpu.dot_dimension_numbers<[1], [0], [0], [1], [0, 0, 1, 1], [], []>} : vector<8x32xf32>, vector<32x128xf32>, vector<8x128xf32> -> vector<8x128xf32>
    %438 = arith.addf %437, %8 : vector<8x128xf32>
    %c40_145 = arith.constant 40 : index
    %c0_146 = arith.constant 0 : index
    %439 = vector.load %arg2[%c40_145, %c0_146] : memref<216x128xf32, #tpu.memory_space<vmem>>, vector<32x128xf32>
    %cst_147 = arith.constant dense<0.000000e+00> : vector<8x128xf32>
    %440 = tpu.matmul %389, %439, %cst_147 {dimension_numbers = #tpu.dot_dimension_numbers<[1], [0], [0], [1], [0, 0, 1, 1], [], []>} : vector<8x32xf32>, vector<32x128xf32>, vector<8x128xf32> -> vector<8x128xf32>
    %441 = arith.addf %438, %440 : vector<8x128xf32>
    %442 = arith.negf %441 : vector<8x128xf32>
    %443 = math.exp %442 : vector<8x128xf32>
    %cst_148 = arith.constant 1.000000e+00 : f32
    %444 = vector.broadcast %cst_148 : f32 to vector<8x128xf32>
    %445 = arith.addf %444, %443 : vector<8x128xf32>
    %446 = arith.divf %444, %445 : vector<8x128xf32>
    %447 = vector.extract_strided_slice %446 {offsets = [0, 0], sizes = [8, 32], strides = [1, 1]} : vector<8x128xf32> to vector<8x32xf32>
    %448 = vector.extract_strided_slice %446 {offsets = [0, 32], sizes = [8, 32], strides = [1, 1]} : vector<8x128xf32> to vector<8x32xf32>
    %449 = vector.extract_strided_slice %446 {offsets = [0, 64], sizes = [8, 32], strides = [1, 1]} : vector<8x128xf32> to vector<8x32xf32>
    %cst_149 = arith.constant 2.000000e+00 : f32
    %450 = vector.broadcast %cst_149 : f32 to vector<8x32xf32>
    %451 = arith.mulf %450, %449 : vector<8x32xf32>
    %cst_150 = arith.constant 1.000000e+00 : f32
    %452 = vector.broadcast %cst_150 : f32 to vector<8x32xf32>
    %453 = arith.subf %451, %452 : vector<8x32xf32>
    %454 = vector.extract_strided_slice %446 {offsets = [0, 96], sizes = [8, 32], strides = [1, 1]} : vector<8x128xf32> to vector<8x32xf32>
    %455 = arith.mulf %448, %387 : vector<8x32xf32>
    %456 = arith.mulf %447, %453 : vector<8x32xf32>
    %457 = arith.addf %455, %456 : vector<8x32xf32>
    %458 = math.tanh %457 : vector<8x32xf32>
    %459 = arith.mulf %454, %458 : vector<8x32xf32>
    %c136_151 = arith.constant 136 : index
    %c0_152 = arith.constant 0 : index
    %460 = vector.load %arg2[%c136_151, %c0_152] : memref<216x128xf32, #tpu.memory_space<vmem>>, vector<32x128xf32>
    %cst_153 = arith.constant dense<0.000000e+00> : vector<8x128xf32>
    %461 = tpu.matmul %459, %460, %cst_153 {dimension_numbers = #tpu.dot_dimension_numbers<[1], [0], [0], [1], [0, 0, 1, 1], [], []>} : vector<8x32xf32>, vector<32x128xf32>, vector<8x128xf32> -> vector<8x128xf32>
    %462 = arith.addf %461, %11 : vector<8x128xf32>
    %c72_154 = arith.constant 72 : index
    %c0_155 = arith.constant 0 : index
    %463 = vector.load %arg2[%c72_154, %c0_155] : memref<216x128xf32, #tpu.memory_space<vmem>>, vector<32x128xf32>
    %cst_156 = arith.constant dense<0.000000e+00> : vector<8x128xf32>
    %464 = tpu.matmul %413, %463, %cst_156 {dimension_numbers = #tpu.dot_dimension_numbers<[1], [0], [0], [1], [0, 0, 1, 1], [], []>} : vector<8x32xf32>, vector<32x128xf32>, vector<8x128xf32> -> vector<8x128xf32>
    %465 = arith.addf %462, %464 : vector<8x128xf32>
    %466 = arith.negf %465 : vector<8x128xf32>
    %467 = math.exp %466 : vector<8x128xf32>
    %cst_157 = arith.constant 1.000000e+00 : f32
    %468 = vector.broadcast %cst_157 : f32 to vector<8x128xf32>
    %469 = arith.addf %468, %467 : vector<8x128xf32>
    %470 = arith.divf %468, %469 : vector<8x128xf32>
    %471 = vector.extract_strided_slice %470 {offsets = [0, 0], sizes = [8, 32], strides = [1, 1]} : vector<8x128xf32> to vector<8x32xf32>
    %472 = vector.extract_strided_slice %470 {offsets = [0, 32], sizes = [8, 32], strides = [1, 1]} : vector<8x128xf32> to vector<8x32xf32>
    %473 = vector.extract_strided_slice %470 {offsets = [0, 64], sizes = [8, 32], strides = [1, 1]} : vector<8x128xf32> to vector<8x32xf32>
    %cst_158 = arith.constant 2.000000e+00 : f32
    %474 = vector.broadcast %cst_158 : f32 to vector<8x32xf32>
    %475 = arith.mulf %474, %473 : vector<8x32xf32>
    %cst_159 = arith.constant 1.000000e+00 : f32
    %476 = vector.broadcast %cst_159 : f32 to vector<8x32xf32>
    %477 = arith.subf %475, %476 : vector<8x32xf32>
    %478 = vector.extract_strided_slice %470 {offsets = [0, 96], sizes = [8, 32], strides = [1, 1]} : vector<8x128xf32> to vector<8x32xf32>
    %479 = arith.mulf %472, %411 : vector<8x32xf32>
    %480 = arith.mulf %471, %477 : vector<8x32xf32>
    %481 = arith.addf %479, %480 : vector<8x32xf32>
    %482 = math.tanh %481 : vector<8x32xf32>
    %483 = arith.mulf %478, %482 : vector<8x32xf32>
    %484 = vector.extract_strided_slice %5 {offsets = [56, 0], sizes = [8, 128], strides = [1, 1]} : vector<64x128xf32> to vector<8x128xf32>
    %c8_160 = arith.constant 8 : index
    %c0_161 = arith.constant 0 : index
    %485 = vector.load %arg2[%c8_160, %c0_161] : memref<216x128xf32, #tpu.memory_space<vmem>>, vector<32x128xf32>
    %cst_162 = arith.constant dense<0.000000e+00> : vector<8x128xf32>
    %486 = tpu.matmul %435, %485, %cst_162 {dimension_numbers = #tpu.dot_dimension_numbers<[1], [0], [0], [1], [0, 0, 1, 1], [], []>} : vector<8x32xf32>, vector<32x128xf32>, vector<8x128xf32> -> vector<8x128xf32>
    %487 = arith.addf %484, %486 : vector<8x128xf32>
    %488 = arith.negf %487 : vector<8x128xf32>
    %489 = math.exp %488 : vector<8x128xf32>
    %cst_163 = arith.constant 1.000000e+00 : f32
    %490 = vector.broadcast %cst_163 : f32 to vector<8x128xf32>
    %491 = arith.addf %490, %489 : vector<8x128xf32>
    %492 = arith.divf %490, %491 : vector<8x128xf32>
    %493 = vector.extract_strided_slice %492 {offsets = [0, 0], sizes = [8, 32], strides = [1, 1]} : vector<8x128xf32> to vector<8x32xf32>
    %494 = vector.extract_strided_slice %492 {offsets = [0, 32], sizes = [8, 32], strides = [1, 1]} : vector<8x128xf32> to vector<8x32xf32>
    %495 = vector.extract_strided_slice %492 {offsets = [0, 64], sizes = [8, 32], strides = [1, 1]} : vector<8x128xf32> to vector<8x32xf32>
    %cst_164 = arith.constant 2.000000e+00 : f32
    %496 = vector.broadcast %cst_164 : f32 to vector<8x32xf32>
    %497 = arith.mulf %496, %495 : vector<8x32xf32>
    %cst_165 = arith.constant 1.000000e+00 : f32
    %498 = vector.broadcast %cst_165 : f32 to vector<8x32xf32>
    %499 = arith.subf %497, %498 : vector<8x32xf32>
    %500 = vector.extract_strided_slice %492 {offsets = [0, 96], sizes = [8, 32], strides = [1, 1]} : vector<8x128xf32> to vector<8x32xf32>
    %501 = arith.mulf %494, %433 : vector<8x32xf32>
    %502 = arith.mulf %493, %499 : vector<8x32xf32>
    %503 = arith.addf %501, %502 : vector<8x32xf32>
    %504 = math.tanh %503 : vector<8x32xf32>
    %505 = arith.mulf %500, %504 : vector<8x32xf32>
    %c104_166 = arith.constant 104 : index
    %c0_167 = arith.constant 0 : index
    %506 = vector.load %arg2[%c104_166, %c0_167] : memref<216x128xf32, #tpu.memory_space<vmem>>, vector<32x128xf32>
    %cst_168 = arith.constant dense<0.000000e+00> : vector<8x128xf32>
    %507 = tpu.matmul %505, %506, %cst_168 {dimension_numbers = #tpu.dot_dimension_numbers<[1], [0], [0], [1], [0, 0, 1, 1], [], []>} : vector<8x32xf32>, vector<32x128xf32>, vector<8x128xf32> -> vector<8x128xf32>
    %508 = arith.addf %507, %8 : vector<8x128xf32>
    %c40_169 = arith.constant 40 : index
    %c0_170 = arith.constant 0 : index
    %509 = vector.load %arg2[%c40_169, %c0_170] : memref<216x128xf32, #tpu.memory_space<vmem>>, vector<32x128xf32>
    %cst_171 = arith.constant dense<0.000000e+00> : vector<8x128xf32>
    %510 = tpu.matmul %459, %509, %cst_171 {dimension_numbers = #tpu.dot_dimension_numbers<[1], [0], [0], [1], [0, 0, 1, 1], [], []>} : vector<8x32xf32>, vector<32x128xf32>, vector<8x128xf32> -> vector<8x128xf32>
    %511 = arith.addf %508, %510 : vector<8x128xf32>
    %512 = arith.negf %511 : vector<8x128xf32>
    %513 = math.exp %512 : vector<8x128xf32>
    %cst_172 = arith.constant 1.000000e+00 : f32
    %514 = vector.broadcast %cst_172 : f32 to vector<8x128xf32>
    %515 = arith.addf %514, %513 : vector<8x128xf32>
    %516 = arith.divf %514, %515 : vector<8x128xf32>
    %517 = vector.extract_strided_slice %516 {offsets = [0, 0], sizes = [8, 32], strides = [1, 1]} : vector<8x128xf32> to vector<8x32xf32>
    %518 = vector.extract_strided_slice %516 {offsets = [0, 32], sizes = [8, 32], strides = [1, 1]} : vector<8x128xf32> to vector<8x32xf32>
    %519 = vector.extract_strided_slice %516 {offsets = [0, 64], sizes = [8, 32], strides = [1, 1]} : vector<8x128xf32> to vector<8x32xf32>
    %cst_173 = arith.constant 2.000000e+00 : f32
    %520 = vector.broadcast %cst_173 : f32 to vector<8x32xf32>
    %521 = arith.mulf %520, %519 : vector<8x32xf32>
    %cst_174 = arith.constant 1.000000e+00 : f32
    %522 = vector.broadcast %cst_174 : f32 to vector<8x32xf32>
    %523 = arith.subf %521, %522 : vector<8x32xf32>
    %524 = vector.extract_strided_slice %516 {offsets = [0, 96], sizes = [8, 32], strides = [1, 1]} : vector<8x128xf32> to vector<8x32xf32>
    %525 = arith.mulf %518, %457 : vector<8x32xf32>
    %526 = arith.mulf %517, %523 : vector<8x32xf32>
    %527 = arith.addf %525, %526 : vector<8x32xf32>
    %528 = math.tanh %527 : vector<8x32xf32>
    %529 = arith.mulf %524, %528 : vector<8x32xf32>
    %c136_175 = arith.constant 136 : index
    %c0_176 = arith.constant 0 : index
    %530 = vector.load %arg2[%c136_175, %c0_176] : memref<216x128xf32, #tpu.memory_space<vmem>>, vector<32x128xf32>
    %cst_177 = arith.constant dense<0.000000e+00> : vector<8x128xf32>
    %531 = tpu.matmul %529, %530, %cst_177 {dimension_numbers = #tpu.dot_dimension_numbers<[1], [0], [0], [1], [0, 0, 1, 1], [], []>} : vector<8x32xf32>, vector<32x128xf32>, vector<8x128xf32> -> vector<8x128xf32>
    %532 = arith.addf %531, %11 : vector<8x128xf32>
    %c72_178 = arith.constant 72 : index
    %c0_179 = arith.constant 0 : index
    %533 = vector.load %arg2[%c72_178, %c0_179] : memref<216x128xf32, #tpu.memory_space<vmem>>, vector<32x128xf32>
    %cst_180 = arith.constant dense<0.000000e+00> : vector<8x128xf32>
    %534 = tpu.matmul %483, %533, %cst_180 {dimension_numbers = #tpu.dot_dimension_numbers<[1], [0], [0], [1], [0, 0, 1, 1], [], []>} : vector<8x32xf32>, vector<32x128xf32>, vector<8x128xf32> -> vector<8x128xf32>
    %535 = arith.addf %532, %534 : vector<8x128xf32>
    %536 = arith.negf %535 : vector<8x128xf32>
    %537 = math.exp %536 : vector<8x128xf32>
    %cst_181 = arith.constant 1.000000e+00 : f32
    %538 = vector.broadcast %cst_181 : f32 to vector<8x128xf32>
    %539 = arith.addf %538, %537 : vector<8x128xf32>
    %540 = arith.divf %538, %539 : vector<8x128xf32>
    %541 = vector.extract_strided_slice %540 {offsets = [0, 0], sizes = [8, 32], strides = [1, 1]} : vector<8x128xf32> to vector<8x32xf32>
    %542 = vector.extract_strided_slice %540 {offsets = [0, 32], sizes = [8, 32], strides = [1, 1]} : vector<8x128xf32> to vector<8x32xf32>
    %543 = vector.extract_strided_slice %540 {offsets = [0, 64], sizes = [8, 32], strides = [1, 1]} : vector<8x128xf32> to vector<8x32xf32>
    %cst_182 = arith.constant 2.000000e+00 : f32
    %544 = vector.broadcast %cst_182 : f32 to vector<8x32xf32>
    %545 = arith.mulf %544, %543 : vector<8x32xf32>
    %cst_183 = arith.constant 1.000000e+00 : f32
    %546 = vector.broadcast %cst_183 : f32 to vector<8x32xf32>
    %547 = arith.subf %545, %546 : vector<8x32xf32>
    %548 = vector.extract_strided_slice %540 {offsets = [0, 96], sizes = [8, 32], strides = [1, 1]} : vector<8x128xf32> to vector<8x32xf32>
    %549 = arith.mulf %542, %481 : vector<8x32xf32>
    %550 = arith.mulf %541, %547 : vector<8x32xf32>
    %551 = arith.addf %549, %550 : vector<8x32xf32>
    %552 = math.tanh %551 : vector<8x32xf32>
    %553 = arith.mulf %548, %552 : vector<8x32xf32>
    %cst_184 = arith.constant dense<0.000000e+00> : vector<8xf32>
    %554 = vector.multi_reduction <add>, %553, %cst_184 [1] : vector<8x32xf32> to vector<8xf32>
    %555 = vector.shape_cast %554 : vector<8xf32> to vector<8x1xf32>
    %cst_185 = arith.constant 3.200000e+01 : f32
    %556 = vector.broadcast %cst_185 : f32 to vector<8x1xf32>
    %557 = arith.divf %555, %556 : vector<8x1xf32>
    %558 = vector.broadcast %557 : vector<8x1xf32> to vector<8x32xf32>
    %559 = arith.subf %553, %558 : vector<8x32xf32>
    %560 = arith.mulf %559, %559 : vector<8x32xf32>
    %cst_186 = arith.constant dense<0.000000e+00> : vector<8xf32>
    %561 = vector.multi_reduction <add>, %560, %cst_186 [1] : vector<8x32xf32> to vector<8xf32>
    %562 = vector.shape_cast %561 : vector<8xf32> to vector<8x1xf32>
    %cst_187 = arith.constant 3.200000e+01 : f32
    %563 = vector.broadcast %cst_187 : f32 to vector<8x1xf32>
    %564 = arith.divf %562, %563 : vector<8x1xf32>
    %c176 = arith.constant 176 : index
    %c0_188 = arith.constant 0 : index
    %565 = vector.load %arg2[%c176, %c0_188] : memref<216x128xf32, #tpu.memory_space<vmem>>, vector<1x32xf32>
    %c177 = arith.constant 177 : index
    %c0_189 = arith.constant 0 : index
    %566 = vector.load %arg2[%c177, %c0_189] : memref<216x128xf32, #tpu.memory_space<vmem>>, vector<1x32xf32>
    %567 = vector.broadcast %557 : vector<8x1xf32> to vector<8x32xf32>
    %568 = arith.subf %553, %567 : vector<8x32xf32>
    %cst_190 = arith.constant 9.99999974E-6 : f32
    %569 = vector.broadcast %cst_190 : f32 to vector<8x1xf32>
    %570 = arith.addf %564, %569 : vector<8x1xf32>
    %571 = math.rsqrt %570 : vector<8x1xf32>
    %572 = vector.broadcast %571 : vector<8x1xf32> to vector<8x32xf32>
    %573 = arith.mulf %568, %572 : vector<8x32xf32>
    %574 = vector.broadcast %565 : vector<1x32xf32> to vector<8x32xf32>
    %575 = arith.mulf %573, %574 : vector<8x32xf32>
    %576 = vector.broadcast %566 : vector<1x32xf32> to vector<8x32xf32>
    %577 = arith.addf %575, %576 : vector<8x32xf32>
    %c184 = arith.constant 184 : index
    %c0_191 = arith.constant 0 : index
    %578 = vector.load %arg2[%c184, %c0_191] : memref<216x128xf32, #tpu.memory_space<vmem>>, vector<32x128xf32>
    %c178 = arith.constant 178 : index
    %c0_192 = arith.constant 0 : index
    %579 = vector.load %arg2[%c178, %c0_192] : memref<216x128xf32, #tpu.memory_space<vmem>>, vector<1x128xf32>
    %cst_193 = arith.constant dense<0.000000e+00> : vector<8x128xf32>
    %580 = tpu.matmul %577, %578, %cst_193 {dimension_numbers = #tpu.dot_dimension_numbers<[1], [0], [0], [1], [0, 0, 1, 1], [], []>} : vector<8x32xf32>, vector<32x128xf32>, vector<8x128xf32> -> vector<8x128xf32>
    %581 = vector.broadcast %579 : vector<1x128xf32> to vector<8x128xf32>
    %582 = arith.addf %580, %581 : vector<8x128xf32>
    %583 = vector.extract_strided_slice %582 {offsets = [0, 0], sizes = [8, 1], strides = [1, 1]} : vector<8x128xf32> to vector<8x1xf32>
    %584 = vector.extract_strided_slice %582 {offsets = [0, 1], sizes = [8, 1], strides = [1, 1]} : vector<8x128xf32> to vector<8x1xf32>
    %585 = vector.extract_strided_slice %582 {offsets = [0, 2], sizes = [8, 1], strides = [1, 1]} : vector<8x128xf32> to vector<8x1xf32>
    %586 = arith.minimumf %584, %585 : vector<8x1xf32>
    %587 = vector.extract_strided_slice %582 {offsets = [0, 1], sizes = [8, 1], strides = [1, 1]} : vector<8x128xf32> to vector<8x1xf32>
    %588 = vector.extract_strided_slice %582 {offsets = [0, 2], sizes = [8, 1], strides = [1, 1]} : vector<8x128xf32> to vector<8x1xf32>
    %589 = arith.maximumf %587, %588 : vector<8x1xf32>
    %590 = tpu.concatenate %583, %586, %589 in 1 : vector<8x1xf32>, vector<8x1xf32>, vector<8x1xf32> -> vector<8x3xf32>
    %c0_194 = arith.constant 0 : index
    %c0_195 = arith.constant 0 : index
    %591 = vector.load %arg3[%c0_194, %c0_195] : memref<8x3xf32, #tpu.memory_space<vmem>>, vector<8x3xf32>
    tpu.vector_store %arg3[%c0_194, %c0_195], %590 {strides = array<i32>} : memref<8x3xf32, #tpu.memory_space<vmem>>, vector<8x3xf32>,
    return
  }
  func.func @transform_0(%arg0: i32) -> (i32, i32) {
    %c0_i32 = arith.constant 0 : i32
    %c0_i32_0 = arith.constant 0 : i32
    %c0_i32_1 = arith.constant 0 : i32
    return %c0_i32, %c0_i32_0 : i32, i32
  }
  func.func @transform_1(%arg0: i32) -> (i32, i32) {
    %c0_i32 = arith.constant 0 : i32
    %c0_i32_0 = arith.constant 0 : i32
    %c0_i32_1 = arith.constant 0 : i32
    return %c0_i32, %c0_i32_0 : i32, i32
  }
  func.func @transform_2(%arg0: i32) -> (i32, i32) {
    %c0_i32 = arith.constant 0 : i32
    %c0_i32_0 = arith.constant 0 : i32
    %c0_i32_1 = arith.constant 0 : i32
    return %c0_i32, %c0_i32_0 : i32, i32
  }
}

</mosaic_0001>

<llo_original>
// kernel: enhanced_bitcoin_predictor.1
$region0: #{enhanced_bitcoin_predictor.1}
  #allocation0 [shape = 'u32[]', space=smem, size = 0x4, offset = 0x4, fixed_abs, tag = 'smem constant byte address 0x4 - core index']
  #allocation1 [shape = 'u32[144,128]{1,0:T(1,128)}', space=vmem, size = 0x12000, scoped, tag = 'internal scratch']
  %s0 = inlined_call_operand.vmem [shape: f32[64,4], index: 0, kind: input, shape index: {}]
  %s1 = inlined_call_operand.vmem [shape: f32[216,128], index: 1, kind: input, shape index: {}]
  %s2 = inlined_call_operand.vmem [shape: f32[8,3], index: 2, kind: output, shape index: {}]
  %s3 = sld [smem:[#allocation0]]
  $region18: #{enhanced_bitcoin_predictor.1} parent=0
    _
  %s5 = ssub.s32 1, %s3
  %s6 = scalar_select 0, %s5, %s3
  // Predicated region
  $region2: #{enhanced_bitcoin_predictor.1} parent=0 // pred_check
    _
  $region3: #{enhanced_bitcoin_predictor.1} parent=0 // pred_check_branch
    %8 = sbr.rel (0) target = $region5
  $region4: #{enhanced_bitcoin_predictor.1} parent=0 // pred_region
    _
  $region5: #{enhanced_bitcoin_predictor.1} parent=0 // pred_fallthru
    _
  // Predicated region
  $region6: #{enhanced_bitcoin_predictor.1} parent=0 // pred_check
    _
  $region7: #{enhanced_bitcoin_predictor.1} parent=0 // pred_check_branch
    %10 = sbr.rel (0) target = $region9
  $region8: #{enhanced_bitcoin_predictor.1} parent=0 // pred_region
    _
  $region9: #{enhanced_bitcoin_predictor.1} parent=0 // pred_fallthru
    _
  %v11 = vld [vmem:[%s0] sm:$0xff]
  %v12 = vld [vmem:[%s0 + $0x8] sm:$0xff]
  %v13 = vld [vmem:[%s0 + $0x10] sm:$0xff]
  %v14 = vld [vmem:[%s0 + $0x18] sm:$0xff]
  %v15 = vld [vmem:[%s0 + $0x20] sm:$0xff]
  %v16 = vld [vmem:[%s0 + $0x28] sm:$0xff]
  %v17 = vld [vmem:[%s0 + $0x30] sm:$0xff]
  %v18 = vld [vmem:[%s0 + $0x38] sm:$0xff]
  %v19 = vld [vmem:[%s1] sm:$0xf]
  %v20 = vld [vmem:[%s1 + $0xa8] sm:$0x1]
  %v21 = vlaneseq
  %v22 = vshrl.u32 %v21, 7
  %v23 = vsub.s32 0, %v22
  %v24 = vrot.slane %v20, %v23
  %vm25 = vcmask 31744
  %v27 = vsel %vm25, %v11, 0
  %v30 = vsel %vm25, %v12, 0
  %v33 = vsel %vm25, %v13, 0
  %v36 = vsel %vm25, %v14, 0
  %v39 = vsel %vm25, %v15, 0
  %v42 = vsel %vm25, %v16, 0
  %v45 = vsel %vm25, %v17, 0
  %v48 = vsel %vm25, %v18, 0
  %vm50 = vcmask 1043456
  %v52 = vsel %vm50, %v19, 0
  %54 = vmatprep.subr.mxu0 0.0
  %55 = vmatpush1.msra.mxu0 0.0
  %56 = vmatprep.subr.mxu0 0.0
  %57 = vmatpush1.msra.mxu0 0.0
  %58 = vmatprep.subr.mxu0 0.0
  %59 = vmatpush1.msra.mxu0 0.0
  %60 = vmatprep.subr.mxu0 0.0
  %61 = vmatpush1.msra.mxu0 0.0
  %62 = vmatprep.subr.mxu0 0.0
  %63 = vmatpush1.msra.mxu0 0.0
  %64 = vmatprep.subr.mxu0 0.0
  %65 = vmatpush1.msra.mxu0 0.0
  %66 = vmatprep.subr.mxu0 0.0
  %67 = vmatpush1.msra.mxu0 0.0
  %68 = vmatprep.subr.mxu0 0.0
  %69 = vmatpush1.msra.mxu0 0.0
  %70 = vmatprep.subr.mxu0 0.0
  %71 = vmatpush1.msra.mxu0 0.0
  %72 = vmatprep.subr.mxu0 0.0
  %73 = vmatpush1.msra.mxu0 0.0
  %74 = vmatprep.subr.mxu0 0.0
  %75 = vmatpush1.msra.mxu0 0.0
  %76 = vmatprep.subr.mxu0 0.0
  %77 = vmatpush1.msra.mxu0 0.0
  %78 = vmatprep.subr.mxu0 0.0
  %79 = vmatpush1.msra.mxu0 0.0
  %80 = vmatprep.subr.mxu0 0.0
  %81 = vmatpush1.msra.mxu0 0.0
  %82 = vmatprep.subr.mxu0 0.0
  %83 = vmatpush1.msra.mxu0 0.0
  %84 = vmatprep.subr.mxu0 0.0
  %85 = vmatpush1.msra.mxu0 %v52
  %86 = vmatprep.subr.mxu0 0.0
  %87 = vmatpush2.msra.mxu0 0.0
  %88 = vmatprep.subr.mxu0 0.0
  %89 = vmatpush2.msra.mxu0 0.0
  %90 = vmatprep.subr.mxu0 0.0
  %91 = vmatpush2.msra.mxu0 0.0
  %92 = vmatprep.subr.mxu0 0.0
  %93 = vmatpush2.msra.mxu0 0.0
  %94 = vmatprep.subr.mxu0 0.0
  %95 = vmatpush2.msra.mxu0 0.0
  %96 = vmatprep.subr.mxu0 0.0
  %97 = vmatpush2.msra.mxu0 0.0
  %98 = vmatprep.subr.mxu0 0.0
  %99 = vmatpush2.msra.mxu0 0.0
  %100 = vmatprep.subr.mxu0 0.0
  %101 = vmatpush2.msra.mxu0 0.0
  %102 = vmatprep.subr.mxu0 0.0
  %103 = vmatpush2.msra.mxu0 0.0
  %104 = vmatprep.subr.mxu0 0.0
  %105 = vmatpush2.msra.mxu0 0.0
  %106 = vmatprep.subr.mxu0 0.0
  %107 = vmatpush2.msra.mxu0 0.0
  %108 = vmatprep.subr.mxu0 0.0
  %109 = vmatpush2.msra.mxu0 0.0
  %110 = vmatprep.subr.mxu0 0.0
  %111 = vmatpush2.msra.mxu0 0.0
  %112 = vmatprep.subr.mxu0 0.0
  %113 = vmatpush2.msra.mxu0 0.0
  %114 = vmatprep.subr.mxu0 0.0
  %115 = vmatpush2.msra.mxu0 0.0
  %116 = vmatprep.subr.mxu0 0.0
  %117 = vmatpush2.msra.mxu0 0.0
  %118 = vmatprep.mubr.f32.mxu0 0.0
  %119 = vmatmul.mubr.f32.gmra.mxu0 %v27
  %v120 = vpop.f32.mrf.mxu0
  %v121 = vadd.f32 %v24, %v120
  %v122 = vpop.f32.mrf.mxu0
  %123 = vmatprep.mubr.f32.mxu0 0.0
  %124 = vmatmul.mubr.f32.gmra.mxu0 %v30
  %v125 = vpop.f32.mrf.mxu0
  %v126 = vadd.f32 %v24, %v125
  %v127 = vpop.f32.mrf.mxu0
  %128 = vmatprep.mubr.f32.mxu0 0.0
  %129 = vmatmul.mubr.f32.gmra.mxu0 %v33
  %v130 = vpop.f32.mrf.mxu0
  %v131 = vadd.f32 %v24, %v130
  %v132 = vpop.f32.mrf.mxu0
  %133 = vmatprep.mubr.f32.mxu0 0.0
  %134 = vmatmul.mubr.f32.gmra.mxu0 %v36
  %v135 = vpop.f32.mrf.mxu0
  %v136 = vadd.f32 %v24, %v135
  %v137 = vpop.f32.mrf.mxu0
  %138 = vmatprep.mubr.f32.mxu0 0.0
  %139 = vmatmul.mubr.f32.gmra.mxu0 %v39
  %v140 = vpop.f32.mrf.mxu0
  %v141 = vadd.f32 %v24, %v140
  %v142 = vpop.f32.mrf.mxu0
  %143 = vmatprep.mubr.f32.mxu0 0.0
  %144 = vmatmul.mubr.f32.gmra.mxu0 %v42
  %v145 = vpop.f32.mrf.mxu0
  %v146 = vadd.f32 %v24, %v145
  %v147 = vpop.f32.mrf.mxu0
  %148 = vmatprep.mubr.f32.mxu0 0.0
  %149 = vmatmul.mubr.f32.gmra.mxu0 %v45
  %v150 = vpop.f32.mrf.mxu0
  %v151 = vadd.f32 %v24, %v150
  %v152 = vpop.f32.mrf.mxu0
  %153 = vmatprep.mubr.f32.mxu0 0.0
  %154 = vmatmul.mubr.f32.gmra.mxu0 %v48
  %v155 = vpop.f32.mrf.mxu0
  %v156 = vadd.f32 %v24, %v155
  %v157 = vpop.f32.mrf.mxu0
  %158 = vdwg.mxu0
  %v159 = vld [vmem:[%s1 + $0xa9] sm:$0x1]
  %v160 = vlaneseq
  %v161 = vshrl.u32 %v160, 7
  %v162 = vsub.s32 0, %v161
  %v163 = vrot.slane %v159, %v162
  %v164 = vld [vmem:[%s1 + $0xaa] sm:$0x1]
  %v165 = vlaneseq
  %v166 = vshrl.u32 %v165, 7
  %v167 = vsub.s32 0, %v166
  %v168 = vrot.slane %v164, %v167
  %v169 = vxor.u32 %v121, 2147483648
  %v170 = vmul.f32 %v169, 1.442695
  %v171 = vpow.pop %v170
  %v172 = vadd.f32 %v171, 1.0
  %v173 = vrcp.pop %v172
  %v174 = vmul.f32 1.0, %v173
  %v175 = vmul.f32 %v174, 2.0
  %v176 = vsub.f32 %v175, 1.0
  %178 = vrot.lane.b32.xlu0 %v176, 64
  %v179 = vpop.permute.xlu0 %178
  %v181 = vmul.f32 %v174, %v179
  %v182 = vtanh.pop %v181
  %184 = vrot.lane.b32.xlu0 %v182, 96
  %v185 = vpop.permute.xlu0 %184
  %v187 = vmul.f32 %v174, %v185
  %v188 = vld [vmem:[%s1 + $0x68] sm:$0xff]
  %v189 = vld [vmem:[%s1 + $0x70] sm:$0xff]
  %v190 = vld [vmem:[%s1 + $0x78] sm:$0xff]
  %v191 = vld [vmem:[%s1 + $0x80] sm:$0xff]
  %193 = vrot.lane.b32.xlu0 %v187, 32
  %v194 = vpop.permute.xlu0 %193
  %vm195 = vcmask 261120
  %v196 = vsel %vm195, %v194, 0
  %198 = vmatprep.subr.mxu0 0.0
  %199 = vmatpush1.msra.mxu0 0.0
  %200 = vmatprep.subr.mxu0 0.0
  %201 = vmatpush1.msra.mxu0 0.0
  %202 = vmatprep.subr.mxu0 0.0
  %203 = vmatpush1.msra.mxu0 0.0
  %204 = vmatprep.subr.mxu0 0.0
  %205 = vmatpush1.msra.mxu0 0.0
  %206 = vmatprep.subr.mxu0 0.0
  %207 = vmatpush1.msra.mxu0 0.0
  %208 = vmatprep.subr.mxu0 0.0
  %209 = vmatpush1.msra.mxu0 0.0
  %210 = vmatprep.subr.mxu0 0.0
  %211 = vmatpush1.msra.mxu0 0.0
  %212 = vmatprep.subr.mxu0 0.0
  %213 = vmatpush1.msra.mxu0 0.0
  %214 = vmatprep.subr.mxu0 0.0
  %215 = vmatpush1.msra.mxu0 0.0
  %216 = vmatprep.subr.mxu0 0.0
  %217 = vmatpush1.msra.mxu0 0.0
  %218 = vmatprep.subr.mxu0 0.0
  %219 = vmatpush1.msra.mxu0 0.0
  %220 = vmatprep.subr.mxu0 0.0
  %221 = vmatpush1.msra.mxu0 0.0
  %222 = vmatprep.subr.mxu0 0.0
  %223 = vmatpush1.msra.mxu0 %v191
  %224 = vmatprep.subr.mxu0 0.0
  %225 = vmatpush1.msra.mxu0 %v190
  %226 = vmatprep.subr.mxu0 0.0
  %227 = vmatpush1.msra.mxu0 %v189
  %228 = vmatprep.subr.mxu0 0.0
  %229 = vmatpush1.msra.mxu0 %v188
  %230 = vmatprep.subr.mxu0 0.0
  %231 = vmatpush2.msra.mxu0 0.0
  %232 = vmatprep.subr.mxu0 0.0
  %233 = vmatpush2.msra.mxu0 0.0
  %234 = vmatprep.subr.mxu0 0.0
  %235 = vmatpush2.msra.mxu0 0.0
  %236 = vmatprep.subr.mxu0 0.0
  %237 = vmatpush2.msra.mxu0 0.0
  %238 = vmatprep.subr.mxu0 0.0
  %239 = vmatpush2.msra.mxu0 0.0
  %240 = vmatprep.subr.mxu0 0.0
  %241 = vmatpush2.msra.mxu0 0.0
  %242 = vmatprep.subr.mxu0 0.0
  %243 = vmatpush2.msra.mxu0 0.0
  %244 = vmatprep.subr.mxu0 0.0
  %245 = vmatpush2.msra.mxu0 0.0
  %246 = vmatprep.subr.mxu0 0.0
  %247 = vmatpush2.msra.mxu0 0.0
  %248 = vmatprep.subr.mxu0 0.0
  %249 = vmatpush2.msra.mxu0 0.0
  %250 = vmatprep.subr.mxu0 0.0
  %251 = vmatpush2.msra.mxu0 0.0
  %252 = vmatprep.subr.mxu0 0.0
  %253 = vmatpush2.msra.mxu0 0.0
  %254 = vmatprep.subr.mxu0 0.0
  %255 = vmatpush2.msra.mxu0 0.0
  %256 = vmatprep.subr.mxu0 0.0
  %257 = vmatpush2.msra.mxu0 0.0
  %258 = vmatprep.subr.mxu0 0.0
  %259 = vmatpush2.msra.mxu0 0.0
  %260 = vmatprep.subr.mxu0 0.0
  %261 = vmatpush2.msra.mxu0 0.0
  %262 = vmatprep.mubr.f32.mxu0 0.0
  %263 = vmatmul.mubr.f32.gmra.mxu0 %v196
  %v264 = vpop.f32.mrf.mxu0
  %v265 = vadd.f32 %v163, %v264
  %v266 = vpop.f32.mrf.mxu0
  %267 = vdwg.mxu0
  %v268 = vxor.u32 %v265, 2147483648
  %v269 = vmul.f32 %v268, 1.442695
  %v270 = vpow.pop %v269
  %v271 = vadd.f32 %v270, 1.0
  %v272 = vrcp.pop %v271
  %v273 = vmul.f32 1.0, %v272
  %v274 = vmul.f32 %v273, 2.0
  %v275 = vsub.f32 %v274, 1.0
  %277 = vrot.lane.b32.xlu0 %v275, 64
  %v278 = vpop.permute.xlu0 %277
  %v280 = vmul.f32 %v273, %v278
  %v281 = vtanh.pop %v280
  %283 = vrot.lane.b32.xlu0 %v281, 96
  %v284 = vpop.permute.xlu0 %283
  %v286 = vmul.f32 %v273, %v284
  %v287 = vld [vmem:[%s1 + $0x88] sm:$0xff]
  %v288 = vld [vmem:[%s1 + $0x90] sm:$0xff]
  %v289 = vld [vmem:[%s1 + $0x98] sm:$0xff]
  %v290 = vld [vmem:[%s1 + $0xa0] sm:$0xff]
  %292 = vrot.lane.b32.xlu0 %v286, 32
  %v293 = vpop.permute.xlu0 %292
  %v294 = vsel %vm195, %v293, 0
  %296 = vmatprep.subr.mxu0 0.0
  %297 = vmatpush1.msra.mxu0 0.0
  %298 = vmatprep.subr.mxu0 0.0
  %299 = vmatpush1.msra.mxu0 0.0
  %300 = vmatprep.subr.mxu0 0.0
  %301 = vmatpush1.msra.mxu0 0.0
  %302 = vmatprep.subr.mxu0 0.0
  %303 = vmatpush1.msra.mxu0 0.0
  %304 = vmatprep.subr.mxu0 0.0
  %305 = vmatpush1.msra.mxu0 0.0
  %306 = vmatprep.subr.mxu0 0.0
  %307 = vmatpush1.msra.mxu0 0.0
  %308 = vmatprep.subr.mxu0 0.0
  %309 = vmatpush1.msra.mxu0 0.0
  %310 = vmatprep.subr.mxu0 0.0
  %311 = vmatpush1.msra.mxu0 0.0
  %312 = vmatprep.subr.mxu0 0.0
  %313 = vmatpush1.msra.mxu0 0.0
  %314 = vmatprep.subr.mxu0 0.0
  %315 = vmatpush1.msra.mxu0 0.0
  %316 = vmatprep.subr.mxu0 0.0
  %317 = vmatpush1.msra.mxu0 0.0
  %318 = vmatprep.subr.mxu0 0.0
  %319 = vmatpush1.msra.mxu0 0.0
  %320 = vmatprep.subr.mxu0 0.0
  %321 = vmatpush1.msra.mxu0 %v290
  %322 = vmatprep.subr.mxu0 0.0
  %323 = vmatpush1.msra.mxu0 %v289
  %324 = vmatprep.subr.mxu0 0.0
  %325 = vmatpush1.msra.mxu0 %v288
  %326 = vmatprep.subr.mxu0 0.0
  %327 = vmatpush1.msra.mxu0 %v287
  %328 = vmatprep.subr.mxu0 0.0
  %329 = vmatpush2.msra.mxu0 0.0
  %330 = vmatprep.subr.mxu0 0.0
  %331 = vmatpush2.msra.mxu0 0.0
  %332 = vmatprep.subr.mxu0 0.0
  %333 = vmatpush2.msra.mxu0 0.0
  %334 = vmatprep.subr.mxu0 0.0
  %335 = vmatpush2.msra.mxu0 0.0
  %336 = vmatprep.subr.mxu0 0.0
  %337 = vmatpush2.msra.mxu0 0.0
  %338 = vmatprep.subr.mxu0 0.0
  %339 = vmatpush2.msra.mxu0 0.0
  %340 = vmatprep.subr.mxu0 0.0
  %341 = vmatpush2.msra.mxu0 0.0
  %342 = vmatprep.subr.mxu0 0.0
  %343 = vmatpush2.msra.mxu0 0.0
  %344 = vmatprep.subr.mxu0 0.0
  %345 = vmatpush2.msra.mxu0 0.0
  %346 = vmatprep.subr.mxu0 0.0
  %347 = vmatpush2.msra.mxu0 0.0
  %348 = vmatprep.subr.mxu0 0.0
  %349 = vmatpush2.msra.mxu0 0.0
  %350 = vmatprep.subr.mxu0 0.0
  %351 = vmatpush2.msra.mxu0 0.0
  %352 = vmatprep.subr.mxu0 0.0
  %353 = vmatpush2.msra.mxu0 0.0
  %354 = vmatprep.subr.mxu0 0.0
  %355 = vmatpush2.msra.mxu0 0.0
  %356 = vmatprep.subr.mxu0 0.0
  %357 = vmatpush2.msra.mxu0 0.0
  %358 = vmatprep.subr.mxu0 0.0
  %359 = vmatpush2.msra.mxu0 0.0
  %360 = vmatprep.mubr.f32.mxu0 0.0
  %361 = vmatmul.mubr.f32.gmra.mxu0 %v294
  %v362 = vpop.f32.mrf.mxu0
  %v363 = vadd.f32 %v168, %v362
  %v364 = vpop.f32.mrf.mxu0
  %365 = vdwg.mxu0
  %v366 = vxor.u32 %v363, 2147483648
  %v367 = vmul.f32 %v366, 1.442695
  %v368 = vpow.pop %v367
  %v369 = vadd.f32 %v368, 1.0
  %v370 = vrcp.pop %v369
  %v371 = vmul.f32 1.0, %v370
  %v372 = vmul.f32 %v371, 2.0
  %v373 = vsub.f32 %v372, 1.0
  %375 = vrot.lane.b32.xlu0 %v373, 64
  %v376 = vpop.permute.xlu0 %375
  %v378 = vmul.f32 %v371, %v376
  %v379 = vtanh.pop %v378
  %381 = vrot.lane.b32.xlu0 %v379, 96
  %v382 = vpop.permute.xlu0 %381
  %v384 = vmul.f32 %v371, %v382
  %v385 = vld [vmem:[%s1 + $0x8] sm:$0xff]
  %v386 = vld [vmem:[%s1 + $0x10] sm:$0xff]
  %v387 = vld [vmem:[%s1 + $0x18] sm:$0xff]
  %v388 = vld [vmem:[%s1 + $0x20] sm:$0xff]
  %389 = vmatprep.subr.mxu0 0.0
  %390 = vmatpush1.msra.mxu0 0.0
  %391 = vmatprep.subr.mxu0 0.0
  %392 = vmatpush1.msra.mxu0 0.0
  %393 = vmatprep.subr.mxu0 0.0
  %394 = vmatpush1.msra.mxu0 0.0
  %395 = vmatprep.subr.mxu0 0.0
  %396 = vmatpush1.msra.mxu0 0.0
  %397 = vmatprep.subr.mxu0 0.0
  %398 = vmatpush1.msra.mxu0 0.0
  %399 = vmatprep.subr.mxu0 0.0
  %400 = vmatpush1.msra.mxu0 0.0
  %401 = vmatprep.subr.mxu0 0.0
  %402 = vmatpush1.msra.mxu0 0.0
  %403 = vmatprep.subr.mxu0 0.0
  %404 = vmatpush1.msra.mxu0 0.0
  %405 = vmatprep.subr.mxu0 0.0
  %406 = vmatpush1.msra.mxu0 0.0
  %407 = vmatprep.subr.mxu0 0.0
  %408 = vmatpush1.msra.mxu0 0.0
  %409 = vmatprep.subr.mxu0 0.0
  %410 = vmatpush1.msra.mxu0 0.0
  %411 = vmatprep.subr.mxu0 0.0
  %412 = vmatpush1.msra.mxu0 0.0
  %413 = vmatprep.subr.mxu0 0.0
  %414 = vmatpush1.msra.mxu0 %v388
  %415 = vmatprep.subr.mxu0 0.0
  %416 = vmatpush1.msra.mxu0 %v387
  %417 = vmatprep.subr.mxu0 0.0
  %418 = vmatpush1.msra.mxu0 %v386
  %419 = vmatprep.subr.mxu0 0.0
  %420 = vmatpush1.msra.mxu0 %v385
  %421 = vmatprep.subr.mxu0 0.0
  %422 = vmatpush2.msra.mxu0 0.0
  %423 = vmatprep.subr.mxu0 0.0
  %424 = vmatpush2.msra.mxu0 0.0
  %425 = vmatprep.subr.mxu0 0.0
  %426 = vmatpush2.msra.mxu0 0.0
  %427 = vmatprep.subr.mxu0 0.0
  %428 = vmatpush2.msra.mxu0 0.0
  %429 = vmatprep.subr.mxu0 0.0
  %430 = vmatpush2.msra.mxu0 0.0
  %431 = vmatprep.subr.mxu0 0.0
  %432 = vmatpush2.msra.mxu0 0.0
  %433 = vmatprep.subr.mxu0 0.0
  %434 = vmatpush2.msra.mxu0 0.0
  %435 = vmatprep.subr.mxu0 0.0
  %436 = vmatpush2.msra.mxu0 0.0
  %437 = vmatprep.subr.mxu0 0.0
  %438 = vmatpush2.msra.mxu0 0.0
  %439 = vmatprep.subr.mxu0 0.0
  %440 = vmatpush2.msra.mxu0 0.0
  %441 = vmatprep.subr.mxu0 0.0
  %442 = vmatpush2.msra.mxu0 0.0
  %443 = vmatprep.subr.mxu0 0.0
  %444 = vmatpush2.msra.mxu0 0.0
  %445 = vmatprep.subr.mxu0 0.0
  %446 = vmatpush2.msra.mxu0 0.0
  %447 = vmatprep.subr.mxu0 0.0
  %448 = vmatpush2.msra.mxu0 0.0
  %449 = vmatprep.subr.mxu0 0.0
  %450 = vmatpush2.msra.mxu0 0.0
  %451 = vmatprep.subr.mxu0 0.0
  %452 = vmatpush2.msra.mxu0 0.0
  %453 = vmatprep.mubr.f32.mxu0 0.0
  %454 = vmatmul.mubr.f32.gmra.mxu0 %v196
  %v455 = vpop.f32.mrf.mxu0
  %v456 = vadd.f32 0.0, %v455
  %v457 = vpop.f32.mrf.mxu0
  %458 = vdwg.mxu0
  %v459 = vadd.f32 %v126, %v456
  %v460 = vxor.u32 %v459, 2147483648
  %v461 = vmul.f32 %v460, 1.442695
  %v462 = vpow.pop %v461
  %v463 = vadd.f32 %v462, 1.0
  %v464 = vrcp.pop %v463
  %v465 = vmul.f32 1.0, %v464
  %v466 = vmul.f32 %v465, 2.0
  %v467 = vsub.f32 %v466, 1.0
  %469 = vrot.lane.b32.xlu0 %v181, 32
  %v470 = vpop.permute.xlu0 %469
  %v472 = vmul.f32 %v465, %v470
  %474 = vrot.lane.b32.xlu0 %v467, 64
  %v475 = vpop.permute.xlu0 %474
  %v477 = vmul.f32 %v465, %v475
  %479 = vrot.lane.b32.xlu0 %v477, 32
  %v480 = vpop.permute.xlu0 %479
  %v482 = vadd.f32 %v472, %v480
  %v483 = vtanh.pop %v482
  %485 = vrot.lane.b32.xlu0 %v483, 64
  %v486 = vpop.permute.xlu0 %485
  %v488 = vmul.f32 %v465, %v486
  %490 = vrot.lane.b32.xlu0 %v488, 32
  %v491 = vpop.permute.xlu0 %490
  %v492 = vsel %vm195, %v491, 0
  %494 = vmatprep.subr.mxu0 0.0
  %495 = vmatpush1.msra.mxu0 0.0
  %496 = vmatprep.subr.mxu0 0.0
  %497 = vmatpush1.msra.mxu0 0.0
  %498 = vmatprep.subr.mxu0 0.0
  %499 = vmatpush1.msra.mxu0 0.0
  %500 = vmatprep.subr.mxu0 0.0
  %501 = vmatpush1.msra.mxu0 0.0
  %502 = vmatprep.subr.mxu0 0.0
  %503 = vmatpush1.msra.mxu0 0.0
  %504 = vmatprep.subr.mxu0 0.0
  %505 = vmatpush1.msra.mxu0 0.0
  %506 = vmatprep.subr.mxu0 0.0
  %507 = vmatpush1.msra.mxu0 0.0
  %508 = vmatprep.subr.mxu0 0.0
  %509 = vmatpush1.msra.mxu0 0.0
  %510 = vmatprep.subr.mxu0 0.0
  %511 = vmatpush1.msra.mxu0 0.0
  %512 = vmatprep.subr.mxu0 0.0
  %513 = vmatpush1.msra.mxu0 0.0
  %514 = vmatprep.subr.mxu0 0.0
  %515 = vmatpush1.msra.mxu0 0.0
  %516 = vmatprep.subr.mxu0 0.0
  %517 = vmatpush1.msra.mxu0 0.0
  %518 = vmatprep.subr.mxu0 0.0
  %519 = vmatpush1.msra.mxu0 %v191
  %520 = vmatprep.subr.mxu0 0.0
  %521 = vmatpush1.msra.mxu0 %v190
  %522 = vmatprep.subr.mxu0 0.0
  %523 = vmatpush1.msra.mxu0 %v189
  %524 = vmatprep.subr.mxu0 0.0
  %525 = vmatpush1.msra.mxu0 %v188
  %526 = vmatprep.subr.mxu0 0.0
  %527 = vmatpush2.msra.mxu0 0.0
  %528 = vmatprep.subr.mxu0 0.0
  %529 = vmatpush2.msra.mxu0 0.0
  %530 = vmatprep.subr.mxu0 0.0
  %531 = vmatpush2.msra.mxu0 0.0
  %532 = vmatprep.subr.mxu0 0.0
  %533 = vmatpush2.msra.mxu0 0.0
  %534 = vmatprep.subr.mxu0 0.0
  %535 = vmatpush2.msra.mxu0 0.0
  %536 = vmatprep.subr.mxu0 0.0
  %537 = vmatpush2.msra.mxu0 0.0
  %538 = vmatprep.subr.mxu0 0.0
  %539 = vmatpush2.msra.mxu0 0.0
  %540 = vmatprep.subr.mxu0 0.0
  %541 = vmatpush2.msra.mxu0 0.0
  %542 = vmatprep.subr.mxu0 0.0
  %543 = vmatpush2.msra.mxu0 0.0
  %544 = vmatprep.subr.mxu0 0.0
  %545 = vmatpush2.msra.mxu0 0.0
  %546 = vmatprep.subr.mxu0 0.0
  %547 = vmatpush2.msra.mxu0 0.0
  %548 = vmatprep.subr.mxu0 0.0
  %549 = vmatpush2.msra.mxu0 0.0
  %550 = vmatprep.subr.mxu0 0.0
  %551 = vmatpush2.msra.mxu0 0.0
  %552 = vmatprep.subr.mxu0 0.0
  %553 = vmatpush2.msra.mxu0 0.0
  %554 = vmatprep.subr.mxu0 0.0
  %555 = vmatpush2.msra.mxu0 0.0
  %556 = vmatprep.subr.mxu0 0.0
  %557 = vmatpush2.msra.mxu0 0.0
  %558 = vmatprep.mubr.f32.mxu0 0.0
  %559 = vmatmul.mubr.f32.gmra.mxu0 %v492
  %v560 = vpop.f32.mrf.mxu0
  %v561 = vadd.f32 %v163, %v560
  %v562 = vpop.f32.mrf.mxu0
  %563 = vdwg.mxu0
  %v564 = vld [vmem:[%s1 + $0x28] sm:$0xff]
  %v565 = vld [vmem:[%s1 + $0x30] sm:$0xff]
  %v566 = vld [vmem:[%s1 + $0x38] sm:$0xff]
  %v567 = vld [vmem:[%s1 + $0x40] sm:$0xff]
  %568 = vmatprep.subr.mxu0 0.0
  %569 = vmatpush1.msra.mxu0 0.0
  %570 = vmatprep.subr.mxu0 0.0
  %571 = vmatpush1.msra.mxu0 0.0
  %572 = vmatprep.subr.mxu0 0.0
  %573 = vmatpush1.msra.mxu0 0.0
  %574 = vmatprep.subr.mxu0 0.0
  %575 = vmatpush1.msra.mxu0 0.0
  %576 = vmatprep.subr.mxu0 0.0
  %577 = vmatpush1.msra.mxu0 0.0
  %578 = vmatprep.subr.mxu0 0.0
  %579 = vmatpush1.msra.mxu0 0.0
  %580 = vmatprep.subr.mxu0 0.0
  %581 = vmatpush1.msra.mxu0 0.0
  %582 = vmatprep.subr.mxu0 0.0
  %583 = vmatpush1.msra.mxu0 0.0
  %584 = vmatprep.subr.mxu0 0.0
  %585 = vmatpush1.msra.mxu0 0.0
  %586 = vmatprep.subr.mxu0 0.0
  %587 = vmatpush1.msra.mxu0 0.0
  %588 = vmatprep.subr.mxu0 0.0
  %589 = vmatpush1.msra.mxu0 0.0
  %590 = vmatprep.subr.mxu0 0.0
  %591 = vmatpush1.msra.mxu0 0.0
  %592 = vmatprep.subr.mxu0 0.0
  %593 = vmatpush1.msra.mxu0 %v567
  %594 = vmatprep.subr.mxu0 0.0
  %595 = vmatpush1.msra.mxu0 %v566
  %596 = vmatprep.subr.mxu0 0.0
  %597 = vmatpush1.msra.mxu0 %v565
  %598 = vmatprep.subr.mxu0 0.0
  %599 = vmatpush1.msra.mxu0 %v564
  %600 = vmatprep.subr.mxu0 0.0
  %601 = vmatpush2.msra.mxu0 0.0
  %602 = vmatprep.subr.mxu0 0.0
  %603 = vmatpush2.msra.mxu0 0.0
  %604 = vmatprep.subr.mxu0 0.0
  %605 = vmatpush2.msra.mxu0 0.0
  %606 = vmatprep.subr.mxu0 0.0
  %607 = vmatpush2.msra.mxu0 0.0
  %608 = vmatprep.subr.mxu0 0.0
  %609 = vmatpush2.msra.mxu0 0.0
  %610 = vmatprep.subr.mxu0 0.0
  %611 = vmatpush2.msra.mxu0 0.0
  %612 = vmatprep.subr.mxu0 0.0
  %613 = vmatpush2.msra.mxu0 0.0
  %614 = vmatprep.subr.mxu0 0.0
  %615 = vmatpush2.msra.mxu0 0.0
  %616 = vmatprep.subr.mxu0 0.0
  %617 = vmatpush2.msra.mxu0 0.0
  %618 = vmatprep.subr.mxu0 0.0
  %619 = vmatpush2.msra.mxu0 0.0
  %620 = vmatprep.subr.mxu0 0.0
  %621 = vmatpush2.msra.mxu0 0.0
  %622 = vmatprep.subr.mxu0 0.0
  %623 = vmatpush2.msra.mxu0 0.0
  %624 = vmatprep.subr.mxu0 0.0
  %625 = vmatpush2.msra.mxu0 0.0
  %626 = vmatprep.subr.mxu0 0.0
  %627 = vmatpush2.msra.mxu0 0.0
  %628 = vmatprep.subr.mxu0 0.0
  %629 = vmatpush2.msra.mxu0 0.0
  %630 = vmatprep.subr.mxu0 0.0
  %631 = vmatpush2.msra.mxu0 0.0
  %632 = vmatprep.mubr.f32.mxu0 0.0
  %633 = vmatmul.mubr.f32.gmra.mxu0 %v294
  %v634 = vpop.f32.mrf.mxu0
  %v635 = vadd.f32 0.0, %v634
  %v636 = vpop.f32.mrf.mxu0
  %637 = vdwg.mxu0
  %v638 = vadd.f32 %v561, %v635
  %v639 = vxor.u32 %v638, 2147483648
  %v640 = vmul.f32 %v639, 1.442695
  %v641 = vpow.pop %v640
  %v642 = vadd.f32 %v641, 1.0
  %v643 = vrcp.pop %v642
  %v644 = vmul.f32 1.0, %v643
  %v645 = vmul.f32 %v644, 2.0
  %v646 = vsub.f32 %v645, 1.0
  %648 = vrot.lane.b32.xlu0 %v280, 32
  %v649 = vpop.permute.xlu0 %648
  %v651 = vmul.f32 %v644, %v649
  %653 = vrot.lane.b32.xlu0 %v646, 64
  %v654 = vpop.permute.xlu0 %653
  %v656 = vmul.f32 %v644, %v654
  %658 = vrot.lane.b32.xlu0 %v656, 32
  %v659 = vpop.permute.xlu0 %658
  %v661 = vadd.f32 %v651, %v659
  %v662 = vtanh.pop %v661
  %664 = vrot.lane.b32.xlu0 %v662, 64
  %v665 = vpop.permute.xlu0 %664
  %v667 = vmul.f32 %v644, %v665
  %669 = vrot.lane.b32.xlu0 %v667, 32
  %v670 = vpop.permute.xlu0 %669
  %v671 = vsel %vm195, %v670, 0
  %673 = vmatprep.subr.mxu0 0.0
  %674 = vmatpush1.msra.mxu0 0.0
  %675 = vmatprep.subr.mxu0 0.0
  %676 = vmatpush1.msra.mxu0 0.0
  %677 = vmatprep.subr.mxu0 0.0
  %678 = vmatpush1.msra.mxu0 0.0
  %679 = vmatprep.subr.mxu0 0.0
  %680 = vmatpush1.msra.mxu0 0.0
  %681 = vmatprep.subr.mxu0 0.0
  %682 = vmatpush1.msra.mxu0 0.0
  %683 = vmatprep.subr.mxu0 0.0
  %684 = vmatpush1.msra.mxu0 0.0
  %685 = vmatprep.subr.mxu0 0.0
  %686 = vmatpush1.msra.mxu0 0.0
  %687 = vmatprep.subr.mxu0 0.0
  %688 = vmatpush1.msra.mxu0 0.0
  %689 = vmatprep.subr.mxu0 0.0
  %690 = vmatpush1.msra.mxu0 0.0
  %691 = vmatprep.subr.mxu0 0.0
  %692 = vmatpush1.msra.mxu0 0.0
  %693 = vmatprep.subr.mxu0 0.0
  %694 = vmatpush1.msra.mxu0 0.0
  %695 = vmatprep.subr.mxu0 0.0
  %696 = vmatpush1.msra.mxu0 0.0
  %697 = vmatprep.subr.mxu0 0.0
  %698 = vmatpush1.msra.mxu0 %v290
  %699 = vmatprep.subr.mxu0 0.0
  %700 = vmatpush1.msra.mxu0 %v289
  %701 = vmatprep.subr.mxu0 0.0
  %702 = vmatpush1.msra.mxu0 %v288
  %703 = vmatprep.subr.mxu0 0.0
  %704 = vmatpush1.msra.mxu0 %v287
  %705 = vmatprep.subr.mxu0 0.0
  %706 = vmatpush2.msra.mxu0 0.0
  %707 = vmatprep.subr.mxu0 0.0
  %708 = vmatpush2.msra.mxu0 0.0
  %709 = vmatprep.subr.mxu0 0.0
  %710 = vmatpush2.msra.mxu0 0.0
  %711 = vmatprep.subr.mxu0 0.0
  %712 = vmatpush2.msra.mxu0 0.0
  %713 = vmatprep.subr.mxu0 0.0
  %714 = vmatpush2.msra.mxu0 0.0
  %715 = vmatprep.subr.mxu0 0.0
  %716 = vmatpush2.msra.mxu0 0.0
  %717 = vmatprep.subr.mxu0 0.0
  %718 = vmatpush2.msra.mxu0 0.0
  %719 = vmatprep.subr.mxu0 0.0
  %720 = vmatpush2.msra.mxu0 0.0
  %721 = vmatprep.subr.mxu0 0.0
  %722 = vmatpush2.msra.mxu0 0.0
  %723 = vmatprep.subr.mxu0 0.0
  %724 = vmatpush2.msra.mxu0 0.0
  %725 = vmatprep.subr.mxu0 0.0
  %726 = vmatpush2.msra.mxu0 0.0
  %727 = vmatprep.subr.mxu0 0.0
  %728 = vmatpush2.msra.mxu0 0.0
  %729 = vmatprep.subr.mxu0 0.0
  %730 = vmatpush2.msra.mxu0 0.0
  %731 = vmatprep.subr.mxu0 0.0
  %732 = vmatpush2.msra.mxu0 0.0
  %733 = vmatprep.subr.mxu0 0.0
  %734 = vmatpush2.msra.mxu0 0.0
  %735 = vmatprep.subr.mxu0 0.0
  %736 = vmatpush2.msra.mxu0 0.0
  %737 = vmatprep.mubr.f32.mxu0 0.0
  %738 = vmatmul.mubr.f32.gmra.mxu0 %v671
  %v739 = vpop.f32.mrf.mxu0
  %v740 = vadd.f32 %v168, %v739
  %v741 = vpop.f32.mrf.mxu0
  %742 = vdwg.mxu0
  %v743 = vld [vmem:[%s1 + $0x48] sm:$0xff]
  %v744 = vld [vmem:[%s1 + $0x50] sm:$0xff]
  %v745 = vld [vmem:[%s1 + $0x58] sm:$0xff]
  %v746 = vld [vmem:[%s1 + $0x60] sm:$0xff]
  %748 = vrot.lane.b32.xlu0 %v384, 32
  %v749 = vpop.permute.xlu0 %748
  %v750 = vsel %vm195, %v749, 0
  %752 = vmatprep.subr.mxu0 0.0
  %753 = vmatpush1.msra.mxu0 0.0
  %754 = vmatprep.subr.mxu0 0.0
  %755 = vmatpush1.msra.mxu0 0.0
  %756 = vmatprep.subr.mxu0 0.0
  %757 = vmatpush1.msra.mxu0 0.0
  %758 = vmatprep.subr.mxu0 0.0
  %759 = vmatpush1.msra.mxu0 0.0
  %760 = vmatprep.subr.mxu0 0.0
  %761 = vmatpush1.msra.mxu0 0.0
  %762 = vmatprep.subr.mxu0 0.0
  %763 = vmatpush1.msra.mxu0 0.0
  %764 = vmatprep.subr.mxu0 0.0
  %765 = vmatpush1.msra.mxu0 0.0
  %766 = vmatprep.subr.mxu0 0.0
  %767 = vmatpush1.msra.mxu0 0.0
  %768 = vmatprep.subr.mxu0 0.0
  %769 = vmatpush1.msra.mxu0 0.0
  %770 = vmatprep.subr.mxu0 0.0
  %771 = vmatpush1.msra.mxu0 0.0
  %772 = vmatprep.subr.mxu0 0.0
  %773 = vmatpush1.msra.mxu0 0.0
  %774 = vmatprep.subr.mxu0 0.0
  %775 = vmatpush1.msra.mxu0 0.0
  %776 = vmatprep.subr.mxu0 0.0
  %777 = vmatpush1.msra.mxu0 %v746
  %778 = vmatprep.subr.mxu0 0.0
  %779 = vmatpush1.msra.mxu0 %v745
  %780 = vmatprep.subr.mxu0 0.0
  %781 = vmatpush1.msra.mxu0 %v744
  %782 = vmatprep.subr.mxu0 0.0
  %783 = vmatpush1.msra.mxu0 %v743
  %784 = vmatprep.subr.mxu0 0.0
  %785 = vmatpush2.msra.mxu0 0.0
  %786 = vmatprep.subr.mxu0 0.0
  %787 = vmatpush2.msra.mxu0 0.0
  %788 = vmatprep.subr.mxu0 0.0
  %789 = vmatpush2.msra.mxu0 0.0
  %790 = vmatprep.subr.mxu0 0.0
  %791 = vmatpush2.msra.mxu0 0.0
  %792 = vmatprep.subr.mxu0 0.0
  %793 = vmatpush2.msra.mxu0 0.0
  %794 = vmatprep.subr.mxu0 0.0
  %795 = vmatpush2.msra.mxu0 0.0
  %796 = vmatprep.subr.mxu0 0.0
  %797 = vmatpush2.msra.mxu0 0.0
  %798 = vmatprep.subr.mxu0 0.0
  %799 = vmatpush2.msra.mxu0 0.0
  %800 = vmatprep.subr.mxu0 0.0
  %801 = vmatpush2.msra.mxu0 0.0
  %802 = vmatprep.subr.mxu0 0.0
  %803 = vmatpush2.msra.mxu0 0.0
  %804 = vmatprep.subr.mxu0 0.0
  %805 = vmatpush2.msra.mxu0 0.0
  %806 = vmatprep.subr.mxu0 0.0
  %807 = vmatpush2.msra.mxu0 0.0
  %808 = vmatprep.subr.mxu0 0.0
  %809 = vmatpush2.msra.mxu0 0.0
  %810 = vmatprep.subr.mxu0 0.0
  %811 = vmatpush2.msra.mxu0 0.0
  %812 = vmatprep.subr.mxu0 0.0
  %813 = vmatpush2.msra.mxu0 0.0
  %814 = vmatprep.subr.mxu0 0.0
  %815 = vmatpush2.msra.mxu0 0.0
  %816 = vmatprep.mubr.f32.mxu0 0.0
  %817 = vmatmul.mubr.f32.gmra.mxu0 %v750
  %v818 = vpop.f32.mrf.mxu0
  %v819 = vadd.f32 0.0, %v818
  %v820 = vpop.f32.mrf.mxu0
  %821 = vdwg.mxu0
  %v822 = vadd.f32 %v740, %v819
  %v823 = vxor.u32 %v822, 2147483648
  %v824 = vmul.f32 %v823, 1.442695
  %v825 = vpow.pop %v824
  %v826 = vadd.f32 %v825, 1.0
  %v827 = vrcp.pop %v826
  %v828 = vmul.f32 1.0, %v827
  %v829 = vmul.f32 %v828, 2.0
  %v830 = vsub.f32 %v829, 1.0
  %832 = vrot.lane.b32.xlu0 %v378, 32
  %v833 = vpop.permute.xlu0 %832
  %v835 = vmul.f32 %v828, %v833
  %837 = vrot.lane.b32.xlu0 %v830, 64
  %v838 = vpop.permute.xlu0 %837
  %v840 = vmul.f32 %v828, %v838
  %842 = vrot.lane.b32.xlu0 %v840, 32
  %v843 = vpop.permute.xlu0 %842
  %v845 = vadd.f32 %v835, %v843
  %v846 = vtanh.pop %v845
  %848 = vrot.lane.b32.xlu0 %v846, 64
  %v849 = vpop.permute.xlu0 %848
  %v851 = vmul.f32 %v828, %v849
  %852 = vmatprep.subr.mxu0 0.0
  %853 = vmatpush1.msra.mxu0 0.0
  %854 = vmatprep.subr.mxu0 0.0
  %855 = vmatpush1.msra.mxu0 0.0
  %856 = vmatprep.subr.mxu0 0.0
  %857 = vmatpush1.msra.mxu0 0.0
  %858 = vmatprep.subr.mxu0 0.0
  %859 = vmatpush1.msra.mxu0 0.0
  %860 = vmatprep.subr.mxu0 0.0
  %861 = vmatpush1.msra.mxu0 0.0
  %862 = vmatprep.subr.mxu0 0.0
  %863 = vmatpush1.msra.mxu0 0.0
  %864 = vmatprep.subr.mxu0 0.0
  %865 = vmatpush1.msra.mxu0 0.0
  %866 = vmatprep.subr.mxu0 0.0
  %867 = vmatpush1.msra.mxu0 0.0
  %868 = vmatprep.subr.mxu0 0.0
  %869 = vmatpush1.msra.mxu0 0.0
  %870 = vmatprep.subr.mxu0 0.0
  %871 = vmatpush1.msra.mxu0 0.0
  %872 = vmatprep.subr.mxu0 0.0
  %873 = vmatpush1.msra.mxu0 0.0
  %874 = vmatprep.subr.mxu0 0.0
  %875 = vmatpush1.msra.mxu0 0.0
  %876 = vmatprep.subr.mxu0 0.0
  %877 = vmatpush1.msra.mxu0 %v388
  %878 = vmatprep.subr.mxu0 0.0
  %879 = vmatpush1.msra.mxu0 %v387
  %880 = vmatprep.subr.mxu0 0.0
  %881 = vmatpush1.msra.mxu0 %v386
  %882 = vmatprep.subr.mxu0 0.0
  %883 = vmatpush1.msra.mxu0 %v385
  %884 = vmatprep.subr.mxu0 0.0
  %885 = vmatpush2.msra.mxu0 0.0
  %886 = vmatprep.subr.mxu0 0.0
  %887 = vmatpush2.msra.mxu0 0.0
  %888 = vmatprep.subr.mxu0 0.0
  %889 = vmatpush2.msra.mxu0 0.0
  %890 = vmatprep.subr.mxu0 0.0
  %891 = vmatpush2.msra.mxu0 0.0
  %892 = vmatprep.subr.mxu0 0.0
  %893 = vmatpush2.msra.mxu0 0.0
  %894 = vmatprep.subr.mxu0 0.0
  %895 = vmatpush2.msra.mxu0 0.0
  %896 = vmatprep.subr.mxu0 0.0
  %897 = vmatpush2.msra.mxu0 0.0
  %898 = vmatprep.subr.mxu0 0.0
  %899 = vmatpush2.msra.mxu0 0.0
  %900 = vmatprep.subr.mxu0 0.0
  %901 = vmatpush2.msra.mxu0 0.0
  %902 = vmatprep.subr.mxu0 0.0
  %903 = vmatpush2.msra.mxu0 0.0
  %904 = vmatprep.subr.mxu0 0.0
  %905 = vmatpush2.msra.mxu0 0.0
  %906 = vmatprep.subr.mxu0 0.0
  %907 = vmatpush2.msra.mxu0 0.0
  %908 = vmatprep.subr.mxu0 0.0
  %909 = vmatpush2.msra.mxu0 0.0
  %910 = vmatprep.subr.mxu0 0.0
  %911 = vmatpush2.msra.mxu0 0.0
  %912 = vmatprep.subr.mxu0 0.0
  %913 = vmatpush2.msra.mxu0 0.0
  %914 = vmatprep.subr.mxu0 0.0
  %915 = vmatpush2.msra.mxu0 0.0
  %916 = vmatprep.mubr.f32.mxu0 0.0
  %917 = vmatmul.mubr.f32.gmra.mxu0 %v492
  %v918 = vpop.f32.mrf.mxu0
  %v919 = vadd.f32 0.0, %v918
  %v920 = vpop.f32.mrf.mxu0
  %921 = vdwg.mxu0
  %v922 = vadd.f32 %v131, %v919
  %v923 = vxor.u32 %v922, 2147483648
  %v924 = vmul.f32 %v923, 1.442695
  %v925 = vpow.pop %v924
  %v926 = vadd.f32 %v925, 1.0
  %v927 = vrcp.pop %v926
  %v928 = vmul.f32 1.0, %v927
  %v929 = vmul.f32 %v928, 2.0
  %v930 = vsub.f32 %v929, 1.0
  %v931 = vmul.f32 %v928, %v482
  %933 = vrot.lane.b32.xlu0 %v930, 64
  %v934 = vpop.permute.xlu0 %933
  %v936 = vmul.f32 %v928, %v934
  %938 = vrot.lane.b32.xlu0 %v936, 32
  %v939 = vpop.permute.xlu0 %938
  %v941 = vadd.f32 %v931, %v939
  %v942 = vtanh.pop %v941
  %944 = vrot.lane.b32.xlu0 %v942, 64
  %v945 = vpop.permute.xlu0 %944
  %v947 = vmul.f32 %v928, %v945
  %949 = vrot.lane.b32.xlu0 %v947, 32
  %v950 = vpop.permute.xlu0 %949
  %v951 = vsel %vm195, %v950, 0
  %953 = vmatprep.subr.mxu0 0.0
  %954 = vmatpush1.msra.mxu0 0.0
  %955 = vmatprep.subr.mxu0 0.0
  %956 = vmatpush1.msra.mxu0 0.0
  %957 = vmatprep.subr.mxu0 0.0
  %958 = vmatpush1.msra.mxu0 0.0
  %959 = vmatprep.subr.mxu0 0.0
  %960 = vmatpush1.msra.mxu0 0.0
  %961 = vmatprep.subr.mxu0 0.0
  %962 = vmatpush1.msra.mxu0 0.0
  %963 = vmatprep.subr.mxu0 0.0
  %964 = vmatpush1.msra.mxu0 0.0
  %965 = vmatprep.subr.mxu0 0.0
  %966 = vmatpush1.msra.mxu0 0.0
  %967 = vmatprep.subr.mxu0 0.0
  %968 = vmatpush1.msra.mxu0 0.0
  %969 = vmatprep.subr.mxu0 0.0
  %970 = vmatpush1.msra.mxu0 0.0
  %971 = vmatprep.subr.mxu0 0.0
  %972 = vmatpush1.msra.mxu0 0.0
  %973 = vmatprep.subr.mxu0 0.0
  %974 = vmatpush1.msra.mxu0 0.0
  %975 = vmatprep.subr.mxu0 0.0
  %976 = vmatpush1.msra.mxu0 0.0
  %977 = vmatprep.subr.mxu0 0.0
  %978 = vmatpush1.msra.mxu0 %v191
  %979 = vmatprep.subr.mxu0 0.0
  %980 = vmatpush1.msra.mxu0 %v190
  %981 = vmatprep.subr.mxu0 0.0
  %982 = vmatpush1.msra.mxu0 %v189
  %983 = vmatprep.subr.mxu0 0.0
  %984 = vmatpush1.msra.mxu0 %v188
  %985 = vmatprep.subr.mxu0 0.0
  %986 = vmatpush2.msra.mxu0 0.0
  %987 = vmatprep.subr.mxu0 0.0
  %988 = vmatpush2.msra.mxu0 0.0
  %989 = vmatprep.subr.mxu0 0.0
  %990 = vmatpush2.msra.mxu0 0.0
  %991 = vmatprep.subr.mxu0 0.0
  %992 = vmatpush2.msra.mxu0 0.0
  %993 = vmatprep.subr.mxu0 0.0
  %994 = vmatpush2.msra.mxu0 0.0
  %995 = vmatprep.subr.mxu0 0.0
  %996 = vmatpush2.msra.mxu0 0.0
  %997 = vmatprep.subr.mxu0 0.0
  %998 = vmatpush2.msra.mxu0 0.0
  %999 = vmatprep.subr.mxu0 0.0
  %1000 = vmatpush2.msra.mxu0 0.0
  %1001 = vmatprep.subr.mxu0 0.0
  %1002 = vmatpush2.msra.mxu0 0.0
  %1003 = vmatprep.subr.mxu0 0.0
  %1004 = vmatpush2.msra.mxu0 0.0
  %1005 = vmatprep.subr.mxu0 0.0
  %1006 = vmatpush2.msra.mxu0 0.0
  %1007 = vmatprep.subr.mxu0 0.0
  %1008 = vmatpush2.msra.mxu0 0.0
  %1009 = vmatprep.subr.mxu0 0.0
  %1010 = vmatpush2.msra.mxu0 0.0
  %1011 = vmatprep.subr.mxu0 0.0
  %1012 = vmatpush2.msra.mxu0 0.0
  %1013 = vmatprep.subr.mxu0 0.0
  %1014 = vmatpush2.msra.mxu0 0.0
  %1015 = vmatprep.subr.mxu0 0.0
  %1016 = vmatpush2.msra.mxu0 0.0
  %1017 = vmatprep.mubr.f32.mxu0 0.0
  %1018 = vmatmul.mubr.f32.gmra.mxu0 %v951
  %v1019 = vpop.f32.mrf.mxu0
  %v1020 = vadd.f32 %v163, %v1019
  %v1021 = vpop.f32.mrf.mxu0
  %1022 = vdwg.mxu0
  %1023 = vmatprep.subr.mxu0 0.0
  %1024 = vmatpush1.msra.mxu0 0.0
  %1025 = vmatprep.subr.mxu0 0.0
  %1026 = vmatpush1.msra.mxu0 0.0
  %1027 = vmatprep.subr.mxu0 0.0
  %1028 = vmatpush1.msra.mxu0 0.0
  %1029 = vmatprep.subr.mxu0 0.0
  %1030 = vmatpush1.msra.mxu0 0.0
  %1031 = vmatprep.subr.mxu0 0.0
  %1032 = vmatpush1.msra.mxu0 0.0
  %1033 = vmatprep.subr.mxu0 0.0
  %1034 = vmatpush1.msra.mxu0 0.0
  %1035 = vmatprep.subr.mxu0 0.0
  %1036 = vmatpush1.msra.mxu0 0.0
  %1037 = vmatprep.subr.mxu0 0.0
  %1038 = vmatpush1.msra.mxu0 0.0
  %1039 = vmatprep.subr.mxu0 0.0
  %1040 = vmatpush1.msra.mxu0 0.0
  %1041 = vmatprep.subr.mxu0 0.0
  %1042 = vmatpush1.msra.mxu0 0.0
  %1043 = vmatprep.subr.mxu0 0.0
  %1044 = vmatpush1.msra.mxu0 0.0
  %1045 = vmatprep.subr.mxu0 0.0
  %1046 = vmatpush1.msra.mxu0 0.0
  %1047 = vmatprep.subr.mxu0 0.0
  %1048 = vmatpush1.msra.mxu0 %v567
  %1049 = vmatprep.subr.mxu0 0.0
  %1050 = vmatpush1.msra.mxu0 %v566
  %1051 = vmatprep.subr.mxu0 0.0
  %1052 = vmatpush1.msra.mxu0 %v565
  %1053 = vmatprep.subr.mxu0 0.0
  %1054 = vmatpush1.msra.mxu0 %v564
  %1055 = vmatprep.subr.mxu0 0.0
  %1056 = vmatpush2.msra.mxu0 0.0
  %1057 = vmatprep.subr.mxu0 0.0
  %1058 = vmatpush2.msra.mxu0 0.0
  %1059 = vmatprep.subr.mxu0 0.0
  %1060 = vmatpush2.msra.mxu0 0.0
  %1061 = vmatprep.subr.mxu0 0.0
  %1062 = vmatpush2.msra.mxu0 0.0
  %1063 = vmatprep.subr.mxu0 0.0
  %1064 = vmatpush2.msra.mxu0 0.0
  %1065 = vmatprep.subr.mxu0 0.0
  %1066 = vmatpush2.msra.mxu0 0.0
  %1067 = vmatprep.subr.mxu0 0.0
  %1068 = vmatpush2.msra.mxu0 0.0
  %1069 = vmatprep.subr.mxu0 0.0
  %1070 = vmatpush2.msra.mxu0 0.0
  %1071 = vmatprep.subr.mxu0 0.0
  %1072 = vmatpush2.msra.mxu0 0.0
  %1073 = vmatprep.subr.mxu0 0.0
  %1074 = vmatpush2.msra.mxu0 0.0
  %1075 = vmatprep.subr.mxu0 0.0
  %1076 = vmatpush2.msra.mxu0 0.0
  %1077 = vmatprep.subr.mxu0 0.0
  %1078 = vmatpush2.msra.mxu0 0.0
  %1079 = vmatprep.subr.mxu0 0.0
  %1080 = vmatpush2.msra.mxu0 0.0
  %1081 = vmatprep.subr.mxu0 0.0
  %1082 = vmatpush2.msra.mxu0 0.0
  %1083 = vmatprep.subr.mxu0 0.0
  %1084 = vmatpush2.msra.mxu0 0.0
  %1085 = vmatprep.subr.mxu0 0.0
  %1086 = vmatpush2.msra.mxu0 0.0
  %1087 = vmatprep.mubr.f32.mxu0 0.0
  %1088 = vmatmul.mubr.f32.gmra.mxu0 %v671
  %v1089 = vpop.f32.mrf.mxu0
  %v1090 = vadd.f32 0.0, %v1089
  %v1091 = vpop.f32.mrf.mxu0
  %1092 = vdwg.mxu0
  %v1093 = vadd.f32 %v1020, %v1090
  %v1094 = vxor.u32 %v1093, 2147483648
  %v1095 = vmul.f32 %v1094, 1.442695
  %v1096 = vpow.pop %v1095
  %v1097 = vadd.f32 %v1096, 1.0
  %v1098 = vrcp.pop %v1097
  %v1099 = vmul.f32 1.0, %v1098
  %v1100 = vmul.f32 %v1099, 2.0
  %v1101 = vsub.f32 %v1100, 1.0
  %v1102 = vmul.f32 %v1099, %v661
  %1104 = vrot.lane.b32.xlu0 %v1101, 64
  %v1105 = vpop.permute.xlu0 %1104
  %v1107 = vmul.f32 %v1099, %v1105
  %1109 = vrot.lane.b32.xlu0 %v1107, 32
  %v1110 = vpop.permute.xlu0 %1109
  %v1112 = vadd.f32 %v1102, %v1110
  %v1113 = vtanh.pop %v1112
  %1115 = vrot.lane.b32.xlu0 %v1113, 64
  %v1116 = vpop.permute.xlu0 %1115
  %v1118 = vmul.f32 %v1099, %v1116
  %1120 = vrot.lane.b32.xlu0 %v1118, 32
  %v1121 = vpop.permute.xlu0 %1120
  %v1122 = vsel %vm195, %v1121, 0
  %1124 = vmatprep.subr.mxu0 0.0
  %1125 = vmatpush1.msra.mxu0 0.0
  %1126 = vmatprep.subr.mxu0 0.0
  %1127 = vmatpush1.msra.mxu0 0.0
  %1128 = vmatprep.subr.mxu0 0.0
  %1129 = vmatpush1.msra.mxu0 0.0
  %1130 = vmatprep.subr.mxu0 0.0
  %1131 = vmatpush1.msra.mxu0 0.0
  %1132 = vmatprep.subr.mxu0 0.0
  %1133 = vmatpush1.msra.mxu0 0.0
  %1134 = vmatprep.subr.mxu0 0.0
  %1135 = vmatpush1.msra.mxu0 0.0
  %1136 = vmatprep.subr.mxu0 0.0
  %1137 = vmatpush1.msra.mxu0 0.0
  %1138 = vmatprep.subr.mxu0 0.0
  %1139 = vmatpush1.msra.mxu0 0.0
  %1140 = vmatprep.subr.mxu0 0.0
  %1141 = vmatpush1.msra.mxu0 0.0
  %1142 = vmatprep.subr.mxu0 0.0
  %1143 = vmatpush1.msra.mxu0 0.0
  %1144 = vmatprep.subr.mxu0 0.0
  %1145 = vmatpush1.msra.mxu0 0.0
  %1146 = vmatprep.subr.mxu0 0.0
  %1147 = vmatpush1.msra.mxu0 0.0
  %1148 = vmatprep.subr.mxu0 0.0
  %1149 = vmatpush1.msra.mxu0 %v290
  %1150 = vmatprep.subr.mxu0 0.0
  %1151 = vmatpush1.msra.mxu0 %v289
  %1152 = vmatprep.subr.mxu0 0.0
  %1153 = vmatpush1.msra.mxu0 %v288
  %1154 = vmatprep.subr.mxu0 0.0
  %1155 = vmatpush1.msra.mxu0 %v287
  %1156 = vmatprep.subr.mxu0 0.0
  %1157 = vmatpush2.msra.mxu0 0.0
  %1158 = vmatprep.subr.mxu0 0.0
  %1159 = vmatpush2.msra.mxu0 0.0
  %1160 = vmatprep.subr.mxu0 0.0
  %1161 = vmatpush2.msra.mxu0 0.0
  %1162 = vmatprep.subr.mxu0 0.0
  %1163 = vmatpush2.msra.mxu0 0.0
  %1164 = vmatprep.subr.mxu0 0.0
  %1165 = vmatpush2.msra.mxu0 0.0
  %1166 = vmatprep.subr.mxu0 0.0
  %1167 = vmatpush2.msra.mxu0 0.0
  %1168 = vmatprep.subr.mxu0 0.0
  %1169 = vmatpush2.msra.mxu0 0.0
  %1170 = vmatprep.subr.mxu0 0.0
  %1171 = vmatpush2.msra.mxu0 0.0
  %1172 = vmatprep.subr.mxu0 0.0
  %1173 = vmatpush2.msra.mxu0 0.0
  %1174 = vmatprep.subr.mxu0 0.0
  %1175 = vmatpush2.msra.mxu0 0.0
  %1176 = vmatprep.subr.mxu0 0.0
  %1177 = vmatpush2.msra.mxu0 0.0
  %1178 = vmatprep.subr.mxu0 0.0
  %1179 = vmatpush2.msra.mxu0 0.0
  %1180 = vmatprep.subr.mxu0 0.0
  %1181 = vmatpush2.msra.mxu0 0.0
  %1182 = vmatprep.subr.mxu0 0.0
  %1183 = vmatpush2.msra.mxu0 0.0
  %1184 = vmatprep.subr.mxu0 0.0
  %1185 = vmatpush2.msra.mxu0 0.0
  %1186 = vmatprep.subr.mxu0 0.0
  %1187 = vmatpush2.msra.mxu0 0.0
  %1188 = vmatprep.mubr.f32.mxu0 0.0
  %1189 = vmatmul.mubr.f32.gmra.mxu0 %v1122
  %v1190 = vpop.f32.mrf.mxu0
  %v1191 = vadd.f32 %v168, %v1190
  %v1192 = vpop.f32.mrf.mxu0
  %1193 = vdwg.mxu0
  %1195 = vrot.lane.b32.xlu0 %v851, 32
  %v1196 = vpop.permute.xlu0 %1195
  %v1197 = vsel %vm195, %v1196, 0
  %1199 = vmatprep.subr.mxu0 0.0
  %1200 = vmatpush1.msra.mxu0 0.0
  %1201 = vmatprep.subr.mxu0 0.0
  %1202 = vmatpush1.msra.mxu0 0.0
  %1203 = vmatprep.subr.mxu0 0.0
  %1204 = vmatpush1.msra.mxu0 0.0
  %1205 = vmatprep.subr.mxu0 0.0
  %1206 = vmatpush1.msra.mxu0 0.0
  %1207 = vmatprep.subr.mxu0 0.0
  %1208 = vmatpush1.msra.mxu0 0.0
  %1209 = vmatprep.subr.mxu0 0.0
  %1210 = vmatpush1.msra.mxu0 0.0
  %1211 = vmatprep.subr.mxu0 0.0
  %1212 = vmatpush1.msra.mxu0 0.0
  %1213 = vmatprep.subr.mxu0 0.0
  %1214 = vmatpush1.msra.mxu0 0.0
  %1215 = vmatprep.subr.mxu0 0.0
  %1216 = vmatpush1.msra.mxu0 0.0
  %1217 = vmatprep.subr.mxu0 0.0
  %1218 = vmatpush1.msra.mxu0 0.0
  %1219 = vmatprep.subr.mxu0 0.0
  %1220 = vmatpush1.msra.mxu0 0.0
  %1221 = vmatprep.subr.mxu0 0.0
  %1222 = vmatpush1.msra.mxu0 0.0
  %1223 = vmatprep.subr.mxu0 0.0
  %1224 = vmatpush1.msra.mxu0 %v746
  %1225 = vmatprep.subr.mxu0 0.0
  %1226 = vmatpush1.msra.mxu0 %v745
  %1227 = vmatprep.subr.mxu0 0.0
  %1228 = vmatpush1.msra.mxu0 %v744
  %1229 = vmatprep.subr.mxu0 0.0
  %1230 = vmatpush1.msra.mxu0 %v743
  %1231 = vmatprep.subr.mxu0 0.0
  %1232 = vmatpush2.msra.mxu0 0.0
  %1233 = vmatprep.subr.mxu0 0.0
  %1234 = vmatpush2.msra.mxu0 0.0
  %1235 = vmatprep.subr.mxu0 0.0
  %1236 = vmatpush2.msra.mxu0 0.0
  %1237 = vmatprep.subr.mxu0 0.0
  %1238 = vmatpush2.msra.mxu0 0.0
  %1239 = vmatprep.subr.mxu0 0.0
  %1240 = vmatpush2.msra.mxu0 0.0
  %1241 = vmatprep.subr.mxu0 0.0
  %1242 = vmatpush2.msra.mxu0 0.0
  %1243 = vmatprep.subr.mxu0 0.0
  %1244 = vmatpush2.msra.mxu0 0.0
  %1245 = vmatprep.subr.mxu0 0.0
  %1246 = vmatpush2.msra.mxu0 0.0
  %1247 = vmatprep.subr.mxu0 0.0
  %1248 = vmatpush2.msra.mxu0 0.0
  %1249 = vmatprep.subr.mxu0 0.0
  %1250 = vmatpush2.msra.mxu0 0.0
  %1251 = vmatprep.subr.mxu0 0.0
  %1252 = vmatpush2.msra.mxu0 0.0
  %1253 = vmatprep.subr.mxu0 0.0
  %1254 = vmatpush2.msra.mxu0 0.0
  %1255 = vmatprep.subr.mxu0 0.0
  %1256 = vmatpush2.msra.mxu0 0.0
  %1257 = vmatprep.subr.mxu0 0.0
  %1258 = vmatpush2.msra.mxu0 0.0
  %1259 = vmatprep.subr.mxu0 0.0
  %1260 = vmatpush2.msra.mxu0 0.0
  %1261 = vmatprep.subr.mxu0 0.0
  %1262 = vmatpush2.msra.mxu0 0.0
  %1263 = vmatprep.mubr.f32.mxu0 0.0
  %1264 = vmatmul.mubr.f32.gmra.mxu0 %v1197
  %v1265 = vpop.f32.mrf.mxu0
  %v1266 = vadd.f32 0.0, %v1265
  %v1267 = vpop.f32.mrf.mxu0
  %1268 = vdwg.mxu0
  %v1269 = vadd.f32 %v1191, %v1266
  %v1270 = vxor.u32 %v1269, 2147483648
  %v1271 = vmul.f32 %v1270, 1.442695
  %v1272 = vpow.pop %v1271
  %v1273 = vadd.f32 %v1272, 1.0
  %v1274 = vrcp.pop %v1273
  %v1275 = vmul.f32 1.0, %v1274
  %v1276 = vmul.f32 %v1275, 2.0
  %v1277 = vsub.f32 %v1276, 1.0
  %v1278 = vmul.f32 %v1275, %v845
  %1280 = vrot.lane.b32.xlu0 %v1277, 64
  %v1281 = vpop.permute.xlu0 %1280
  %v1283 = vmul.f32 %v1275, %v1281
  %1285 = vrot.lane.b32.xlu0 %v1283, 32
  %v1286 = vpop.permute.xlu0 %1285
  %v1288 = vadd.f32 %v1278, %v1286
  %v1289 = vtanh.pop %v1288
  %1291 = vrot.lane.b32.xlu0 %v1289, 64
  %v1292 = vpop.permute.xlu0 %1291
  %v1294 = vmul.f32 %v1275, %v1292
  %1295 = vmatprep.subr.mxu0 0.0
  %1296 = vmatpush1.msra.mxu0 0.0
  %1297 = vmatprep.subr.mxu0 0.0
  %1298 = vmatpush1.msra.mxu0 0.0
  %1299 = vmatprep.subr.mxu0 0.0
  %1300 = vmatpush1.msra.mxu0 0.0
  %1301 = vmatprep.subr.mxu0 0.0
  %1302 = vmatpush1.msra.mxu0 0.0
  %1303 = vmatprep.subr.mxu0 0.0
  %1304 = vmatpush1.msra.mxu0 0.0
  %1305 = vmatprep.subr.mxu0 0.0
  %1306 = vmatpush1.msra.mxu0 0.0
  %1307 = vmatprep.subr.mxu0 0.0
  %1308 = vmatpush1.msra.mxu0 0.0
  %1309 = vmatprep.subr.mxu0 0.0
  %1310 = vmatpush1.msra.mxu0 0.0
  %1311 = vmatprep.subr.mxu0 0.0
  %1312 = vmatpush1.msra.mxu0 0.0
  %1313 = vmatprep.subr.mxu0 0.0
  %1314 = vmatpush1.msra.mxu0 0.0
  %1315 = vmatprep.subr.mxu0 0.0
  %1316 = vmatpush1.msra.mxu0 0.0
  %1317 = vmatprep.subr.mxu0 0.0
  %1318 = vmatpush1.msra.mxu0 0.0
  %1319 = vmatprep.subr.mxu0 0.0
  %1320 = vmatpush1.msra.mxu0 %v388
  %1321 = vmatprep.subr.mxu0 0.0
  %1322 = vmatpush1.msra.mxu0 %v387
  %1323 = vmatprep.subr.mxu0 0.0
  %1324 = vmatpush1.msra.mxu0 %v386
  %1325 = vmatprep.subr.mxu0 0.0
  %1326 = vmatpush1.msra.mxu0 %v385
  %1327 = vmatprep.subr.mxu0 0.0
  %1328 = vmatpush2.msra.mxu0 0.0
  %1329 = vmatprep.subr.mxu0 0.0
  %1330 = vmatpush2.msra.mxu0 0.0
  %1331 = vmatprep.subr.mxu0 0.0
  %1332 = vmatpush2.msra.mxu0 0.0
  %1333 = vmatprep.subr.mxu0 0.0
  %1334 = vmatpush2.msra.mxu0 0.0
  %1335 = vmatprep.subr.mxu0 0.0
  %1336 = vmatpush2.msra.mxu0 0.0
  %1337 = vmatprep.subr.mxu0 0.0
  %1338 = vmatpush2.msra.mxu0 0.0
  %1339 = vmatprep.subr.mxu0 0.0
  %1340 = vmatpush2.msra.mxu0 0.0
  %1341 = vmatprep.subr.mxu0 0.0
  %1342 = vmatpush2.msra.mxu0 0.0
  %1343 = vmatprep.subr.mxu0 0.0
  %1344 = vmatpush2.msra.mxu0 0.0
  %1345 = vmatprep.subr.mxu0 0.0
  %1346 = vmatpush2.msra.mxu0 0.0
  %1347 = vmatprep.subr.mxu0 0.0
  %1348 = vmatpush2.msra.mxu0 0.0
  %1349 = vmatprep.subr.mxu0 0.0
  %1350 = vmatpush2.msra.mxu0 0.0
  %1351 = vmatprep.subr.mxu0 0.0
  %1352 = vmatpush2.msra.mxu0 0.0
  %1353 = vmatprep.subr.mxu0 0.0
  %1354 = vmatpush2.msra.mxu0 0.0
  %1355 = vmatprep.subr.mxu0 0.0
  %1356 = vmatpush2.msra.mxu0 0.0
  %1357 = vmatprep.subr.mxu0 0.0
  %1358 = vmatpush2.msra.mxu0 0.0
  %1359 = vmatprep.mubr.f32.mxu0 0.0
  %1360 = vmatmul.mubr.f32.gmra.mxu0 %v951
  %v1361 = vpop.f32.mrf.mxu0
  %v1362 = vadd.f32 0.0, %v1361
  %v1363 = vpop.f32.mrf.mxu0
  %1364 = vdwg.mxu0
  %v1365 = vadd.f32 %v136, %v1362
  %v1366 = vxor.u32 %v1365, 2147483648
  %v1367 = vmul.f32 %v1366, 1.442695
  %v1368 = vpow.pop %v1367
  %v1369 = vadd.f32 %v1368, 1.0
  %v1370 = vrcp.pop %v1369
  %v1371 = vmul.f32 1.0, %v1370
  %v1372 = vmul.f32 %v1371, 2.0
  %v1373 = vsub.f32 %v1372, 1.0
  %v1374 = vmul.f32 %v1371, %v941
  %1376 = vrot.lane.b32.xlu0 %v1373, 64
  %v1377 = vpop.permute.xlu0 %1376
  %v1379 = vmul.f32 %v1371, %v1377
  %1381 = vrot.lane.b32.xlu0 %v1379, 32
  %v1382 = vpop.permute.xlu0 %1381
  %v1384 = vadd.f32 %v1374, %v1382
  %v1385 = vtanh.pop %v1384
  %1387 = vrot.lane.b32.xlu0 %v1385, 64
  %v1388 = vpop.permute.xlu0 %1387
  %v1390 = vmul.f32 %v1371, %v1388
  %1392 = vrot.lane.b32.xlu0 %v1390, 32
  %v1393 = vpop.permute.xlu0 %1392
  %v1394 = vsel %vm195, %v1393, 0
  %1396 = vmatprep.subr.mxu0 0.0
  %1397 = vmatpush1.msra.mxu0 0.0
  %1398 = vmatprep.subr.mxu0 0.0
  %1399 = vmatpush1.msra.mxu0 0.0
  %1400 = vmatprep.subr.mxu0 0.0
  %1401 = vmatpush1.msra.mxu0 0.0
  %1402 = vmatprep.subr.mxu0 0.0
  %1403 = vmatpush1.msra.mxu0 0.0
  %1404 = vmatprep.subr.mxu0 0.0
  %1405 = vmatpush1.msra.mxu0 0.0
  %1406 = vmatprep.subr.mxu0 0.0
  %1407 = vmatpush1.msra.mxu0 0.0
  %1408 = vmatprep.subr.mxu0 0.0
  %1409 = vmatpush1.msra.mxu0 0.0
  %1410 = vmatprep.subr.mxu0 0.0
  %1411 = vmatpush1.msra.mxu0 0.0
  %1412 = vmatprep.subr.mxu0 0.0
  %1413 = vmatpush1.msra.mxu0 0.0
  %1414 = vmatprep.subr.mxu0 0.0
  %1415 = vmatpush1.msra.mxu0 0.0
  %1416 = vmatprep.subr.mxu0 0.0
  %1417 = vmatpush1.msra.mxu0 0.0
  %1418 = vmatprep.subr.mxu0 0.0
  %1419 = vmatpush1.msra.mxu0 0.0
  %1420 = vmatprep.subr.mxu0 0.0
  %1421 = vmatpush1.msra.mxu0 %v191
  %1422 = vmatprep.subr.mxu0 0.0
  %1423 = vmatpush1.msra.mxu0 %v190
  %1424 = vmatprep.subr.mxu0 0.0
  %1425 = vmatpush1.msra.mxu0 %v189
  %1426 = vmatprep.subr.mxu0 0.0
  %1427 = vmatpush1.msra.mxu0 %v188
  %1428 = vmatprep.subr.mxu0 0.0
  %1429 = vmatpush2.msra.mxu0 0.0
  %1430 = vmatprep.subr.mxu0 0.0
  %1431 = vmatpush2.msra.mxu0 0.0
  %1432 = vmatprep.subr.mxu0 0.0
  %1433 = vmatpush2.msra.mxu0 0.0
  %1434 = vmatprep.subr.mxu0 0.0
  %1435 = vmatpush2.msra.mxu0 0.0
  %1436 = vmatprep.subr.mxu0 0.0
  %1437 = vmatpush2.msra.mxu0 0.0
  %1438 = vmatprep.subr.mxu0 0.0
  %1439 = vmatpush2.msra.mxu0 0.0
  %1440 = vmatprep.subr.mxu0 0.0
  %1441 = vmatpush2.msra.mxu0 0.0
  %1442 = vmatprep.subr.mxu0 0.0
  %1443 = vmatpush2.msra.mxu0 0.0
  %1444 = vmatprep.subr.mxu0 0.0
  %1445 = vmatpush2.msra.mxu0 0.0
  %1446 = vmatprep.subr.mxu0 0.0
  %1447 = vmatpush2.msra.mxu0 0.0
  %1448 = vmatprep.subr.mxu0 0.0
  %1449 = vmatpush2.msra.mxu0 0.0
  %1450 = vmatprep.subr.mxu0 0.0
  %1451 = vmatpush2.msra.mxu0 0.0
  %1452 = vmatprep.subr.mxu0 0.0
  %1453 = vmatpush2.msra.mxu0 0.0
  %1454 = vmatprep.subr.mxu0 0.0
  %1455 = vmatpush2.msra.mxu0 0.0
  %1456 = vmatprep.subr.mxu0 0.0
  %1457 = vmatpush2.msra.mxu0 0.0
  %1458 = vmatprep.subr.mxu0 0.0
  %1459 = vmatpush2.msra.mxu0 0.0
  %1460 = vmatprep.mubr.f32.mxu0 0.0
  %1461 = vmatmul.mubr.f32.gmra.mxu0 %v1394
  %v1462 = vpop.f32.mrf.mxu0
  %v1463 = vadd.f32 %v163, %v1462
  %v1464 = vpop.f32.mrf.mxu0
  %1465 = vdwg.mxu0
  %1466 = vmatprep.subr.mxu0 0.0
  %1467 = vmatpush1.msra.mxu0 0.0
  %1468 = vmatprep.subr.mxu0 0.0
  %1469 = vmatpush1.msra.mxu0 0.0
  %1470 = vmatprep.subr.mxu0 0.0
  %1471 = vmatpush1.msra.mxu0 0.0
  %1472 = vmatprep.subr.mxu0 0.0
  %1473 = vmatpush1.msra.mxu0 0.0
  %1474 = vmatprep.subr.mxu0 0.0
  %1475 = vmatpush1.msra.mxu0 0.0
  %1476 = vmatprep.subr.mxu0 0.0
  %1477 = vmatpush1.msra.mxu0 0.0
  %1478 = vmatprep.subr.mxu0 0.0
  %1479 = vmatpush1.msra.mxu0 0.0
  %1480 = vmatprep.subr.mxu0 0.0
  %1481 = vmatpush1.msra.mxu0 0.0
  %1482 = vmatprep.subr.mxu0 0.0
  %1483 = vmatpush1.msra.mxu0 0.0
  %1484 = vmatprep.subr.mxu0 0.0
  %1485 = vmatpush1.msra.mxu0 0.0
  %1486 = vmatprep.subr.mxu0 0.0
  %1487 = vmatpush1.msra.mxu0 0.0
  %1488 = vmatprep.subr.mxu0 0.0
  %1489 = vmatpush1.msra.mxu0 0.0
  %1490 = vmatprep.subr.mxu0 0.0
  %1491 = vmatpush1.msra.mxu0 %v567
  %1492 = vmatprep.subr.mxu0 0.0
  %1493 = vmatpush1.msra.mxu0 %v566
  %1494 = vmatprep.subr.mxu0 0.0
  %1495 = vmatpush1.msra.mxu0 %v565
  %1496 = vmatprep.subr.mxu0 0.0
  %1497 = vmatpush1.msra.mxu0 %v564
  %1498 = vmatprep.subr.mxu0 0.0
  %1499 = vmatpush2.msra.mxu0 0.0
  %1500 = vmatprep.subr.mxu0 0.0
  %1501 = vmatpush2.msra.mxu0 0.0
  %1502 = vmatprep.subr.mxu0 0.0
  %1503 = vmatpush2.msra.mxu0 0.0
  %1504 = vmatprep.subr.mxu0 0.0
  %1505 = vmatpush2.msra.mxu0 0.0
  %1506 = vmatprep.subr.mxu0 0.0
  %1507 = vmatpush2.msra.mxu0 0.0
  %1508 = vmatprep.subr.mxu0 0.0
  %1509 = vmatpush2.msra.mxu0 0.0
  %1510 = vmatprep.subr.mxu0 0.0
  %1511 = vmatpush2.msra.mxu0 0.0
  %1512 = vmatprep.subr.mxu0 0.0
  %1513 = vmatpush2.msra.mxu0 0.0
  %1514 = vmatprep.subr.mxu0 0.0
  %1515 = vmatpush2.msra.mxu0 0.0
  %1516 = vmatprep.subr.mxu0 0.0
  %1517 = vmatpush2.msra.mxu0 0.0
  %1518 = vmatprep.subr.mxu0 0.0
  %1519 = vmatpush2.msra.mxu0 0.0
  %1520 = vmatprep.subr.mxu0 0.0
  %1521 = vmatpush2.msra.mxu0 0.0
  %1522 = vmatprep.subr.mxu0 0.0
  %1523 = vmatpush2.msra.mxu0 0.0
  %1524 = vmatprep.subr.mxu0 0.0
  %1525 = vmatpush2.msra.mxu0 0.0
  %1526 = vmatprep.subr.mxu0 0.0
  %1527 = vmatpush2.msra.mxu0 0.0
  %1528 = vmatprep.subr.mxu0 0.0
  %1529 = vmatpush2.msra.mxu0 0.0
  %1530 = vmatprep.mubr.f32.mxu0 0.0
  %1531 = vmatmul.mubr.f32.gmra.mxu0 %v1122
  %v1532 = vpop.f32.mrf.mxu0
  %v1533 = vadd.f32 0.0, %v1532
  %v1534 = vpop.f32.mrf.mxu0
  %1535 = vdwg.mxu0
  %v1536 = vadd.f32 %v1463, %v1533
  %v1537 = vxor.u32 %v1536, 2147483648
  %v1538 = vmul.f32 %v1537, 1.442695
  %v1539 = vpow.pop %v1538
  %v1540 = vadd.f32 %v1539, 1.0
  %v1541 = vrcp.pop %v1540
  %v1542 = vmul.f32 1.0, %v1541
  %v1543 = vmul.f32 %v1542, 2.0
  %v1544 = vsub.f32 %v1543, 1.0
  %v1545 = vmul.f32 %v1542, %v1112
  %1547 = vrot.lane.b32.xlu0 %v1544, 64
  %v1548 = vpop.permute.xlu0 %1547
  %v1550 = vmul.f32 %v1542, %v1548
  %1552 = vrot.lane.b32.xlu0 %v1550, 32
  %v1553 = vpop.permute.xlu0 %1552
  %v1555 = vadd.f32 %v1545, %v1553
  %v1556 = vtanh.pop %v1555
  %1558 = vrot.lane.b32.xlu0 %v1556, 64
  %v1559 = vpop.permute.xlu0 %1558
  %v1561 = vmul.f32 %v1542, %v1559
  %1563 = vrot.lane.b32.xlu0 %v1561, 32
  %v1564 = vpop.permute.xlu0 %1563
  %v1565 = vsel %vm195, %v1564, 0
  %1567 = vmatprep.subr.mxu0 0.0
  %1568 = vmatpush1.msra.mxu0 0.0
  %1569 = vmatprep.subr.mxu0 0.0
  %1570 = vmatpush1.msra.mxu0 0.0
  %1571 = vmatprep.subr.mxu0 0.0
  %1572 = vmatpush1.msra.mxu0 0.0
  %1573 = vmatprep.subr.mxu0 0.0
  %1574 = vmatpush1.msra.mxu0 0.0
  %1575 = vmatprep.subr.mxu0 0.0
  %1576 = vmatpush1.msra.mxu0 0.0
  %1577 = vmatprep.subr.mxu0 0.0
  %1578 = vmatpush1.msra.mxu0 0.0
  %1579 = vmatprep.subr.mxu0 0.0
  %1580 = vmatpush1.msra.mxu0 0.0
  %1581 = vmatprep.subr.mxu0 0.0
  %1582 = vmatpush1.msra.mxu0 0.0
  %1583 = vmatprep.subr.mxu0 0.0
  %1584 = vmatpush1.msra.mxu0 0.0
  %1585 = vmatprep.subr.mxu0 0.0
  %1586 = vmatpush1.msra.mxu0 0.0
  %1587 = vmatprep.subr.mxu0 0.0
  %1588 = vmatpush1.msra.mxu0 0.0
  %1589 = vmatprep.subr.mxu0 0.0
  %1590 = vmatpush1.msra.mxu0 0.0
  %1591 = vmatprep.subr.mxu0 0.0
  %1592 = vmatpush1.msra.mxu0 %v290
  %1593 = vmatprep.subr.mxu0 0.0
  %1594 = vmatpush1.msra.mxu0 %v289
  %1595 = vmatprep.subr.mxu0 0.0
  %1596 = vmatpush1.msra.mxu0 %v288
  %1597 = vmatprep.subr.mxu0 0.0
  %1598 = vmatpush1.msra.mxu0 %v287
  %1599 = vmatprep.subr.mxu0 0.0
  %1600 = vmatpush2.msra.mxu0 0.0
  %1601 = vmatprep.subr.mxu0 0.0
  %1602 = vmatpush2.msra.mxu0 0.0
  %1603 = vmatprep.subr.mxu0 0.0
  %1604 = vmatpush2.msra.mxu0 0.0
  %1605 = vmatprep.subr.mxu0 0.0
  %1606 = vmatpush2.msra.mxu0 0.0
  %1607 = vmatprep.subr.mxu0 0.0
  %1608 = vmatpush2.msra.mxu0 0.0
  %1609 = vmatprep.subr.mxu0 0.0
  %1610 = vmatpush2.msra.mxu0 0.0
  %1611 = vmatprep.subr.mxu0 0.0
  %1612 = vmatpush2.msra.mxu0 0.0
  %1613 = vmatprep.subr.mxu0 0.0
  %1614 = vmatpush2.msra.mxu0 0.0
  %1615 = vmatprep.subr.mxu0 0.0
  %1616 = vmatpush2.msra.mxu0 0.0
  %1617 = vmatprep.subr.mxu0 0.0
  %1618 = vmatpush2.msra.mxu0 0.0
  %1619 = vmatprep.subr.mxu0 0.0
  %1620 = vmatpush2.msra.mxu0 0.0
  %1621 = vmatprep.subr.mxu0 0.0
  %1622 = vmatpush2.msra.mxu0 0.0
  %1623 = vmatprep.subr.mxu0 0.0
  %1624 = vmatpush2.msra.mxu0 0.0
  %1625 = vmatprep.subr.mxu0 0.0
  %1626 = vmatpush2.msra.mxu0 0.0
  %1627 = vmatprep.subr.mxu0 0.0
  %1628 = vmatpush2.msra.mxu0 0.0
  %1629 = vmatprep.subr.mxu0 0.0
  %1630 = vmatpush2.msra.mxu0 0.0
  %1631 = vmatprep.mubr.f32.mxu0 0.0
  %1632 = vmatmul.mubr.f32.gmra.mxu0 %v1565
  %v1633 = vpop.f32.mrf.mxu0
  %v1634 = vadd.f32 %v168, %v1633
  %v1635 = vpop.f32.mrf.mxu0
  %1636 = vdwg.mxu0
  %1638 = vrot.lane.b32.xlu0 %v1294, 32
  %v1639 = vpop.permute.xlu0 %1638
  %v1640 = vsel %vm195, %v1639, 0
  %1642 = vmatprep.subr.mxu0 0.0
  %1643 = vmatpush1.msra.mxu0 0.0
  %1644 = vmatprep.subr.mxu0 0.0
  %1645 = vmatpush1.msra.mxu0 0.0
  %1646 = vmatprep.subr.mxu0 0.0
  %1647 = vmatpush1.msra.mxu0 0.0
  %1648 = vmatprep.subr.mxu0 0.0
  %1649 = vmatpush1.msra.mxu0 0.0
  %1650 = vmatprep.subr.mxu0 0.0
  %1651 = vmatpush1.msra.mxu0 0.0
  %1652 = vmatprep.subr.mxu0 0.0
  %1653 = vmatpush1.msra.mxu0 0.0
  %1654 = vmatprep.subr.mxu0 0.0
  %1655 = vmatpush1.msra.mxu0 0.0
  %1656 = vmatprep.subr.mxu0 0.0
  %1657 = vmatpush1.msra.mxu0 0.0
  %1658 = vmatprep.subr.mxu0 0.0
  %1659 = vmatpush1.msra.mxu0 0.0
  %1660 = vmatprep.subr.mxu0 0.0
  %1661 = vmatpush1.msra.mxu0 0.0
  %1662 = vmatprep.subr.mxu0 0.0
  %1663 = vmatpush1.msra.mxu0 0.0
  %1664 = vmatprep.subr.mxu0 0.0
  %1665 = vmatpush1.msra.mxu0 0.0
  %1666 = vmatprep.subr.mxu0 0.0
  %1667 = vmatpush1.msra.mxu0 %v746
  %1668 = vmatprep.subr.mxu0 0.0
  %1669 = vmatpush1.msra.mxu0 %v745
  %1670 = vmatprep.subr.mxu0 0.0
  %1671 = vmatpush1.msra.mxu0 %v744
  %1672 = vmatprep.subr.mxu0 0.0
  %1673 = vmatpush1.msra.mxu0 %v743
  %1674 = vmatprep.subr.mxu0 0.0
  %1675 = vmatpush2.msra.mxu0 0.0
  %1676 = vmatprep.subr.mxu0 0.0
  %1677 = vmatpush2.msra.mxu0 0.0
  %1678 = vmatprep.subr.mxu0 0.0
  %1679 = vmatpush2.msra.mxu0 0.0
  %1680 = vmatprep.subr.mxu0 0.0
  %1681 = vmatpush2.msra.mxu0 0.0
  %1682 = vmatprep.subr.mxu0 0.0
  %1683 = vmatpush2.msra.mxu0 0.0
  %1684 = vmatprep.subr.mxu0 0.0
  %1685 = vmatpush2.msra.mxu0 0.0
  %1686 = vmatprep.subr.mxu0 0.0
  %1687 = vmatpush2.msra.mxu0 0.0
  %1688 = vmatprep.subr.mxu0 0.0
  %1689 = vmatpush2.msra.mxu0 0.0
  %1690 = vmatprep.subr.mxu0 0.0
  %1691 = vmatpush2.msra.mxu0 0.0
  %1692 = vmatprep.subr.mxu0 0.0
  %1693 = vmatpush2.msra.mxu0 0.0
  %1694 = vmatprep.subr.mxu0 0.0
  %1695 = vmatpush2.msra.mxu0 0.0
  %1696 = vmatprep.subr.mxu0 0.0
  %1697 = vmatpush2.msra.mxu0 0.0
  %1698 = vmatprep.subr.mxu0 0.0
  %1699 = vmatpush2.msra.mxu0 0.0
  %1700 = vmatprep.subr.mxu0 0.0
  %1701 = vmatpush2.msra.mxu0 0.0
  %1702 = vmatprep.subr.mxu0 0.0
  %1703 = vmatpush2.msra.mxu0 0.0
  %1704 = vmatprep.subr.mxu0 0.0
  %1705 = vmatpush2.msra.mxu0 0.0
  %1706 = vmatprep.mubr.f32.mxu0 0.0
  %1707 = vmatmul.mubr.f32.gmra.mxu0 %v1640
  %v1708 = vpop.f32.mrf.mxu0
  %v1709 = vadd.f32 0.0, %v1708
  %v1710 = vpop.f32.mrf.mxu0
  %1711 = vdwg.mxu0
  %v1712 = vadd.f32 %v1634, %v1709
  %v1713 = vxor.u32 %v1712, 2147483648
  %v1714 = vmul.f32 %v1713, 1.442695
  %v1715 = vpow.pop %v1714
  %v1716 = vadd.f32 %v1715, 1.0
  %v1717 = vrcp.pop %v1716
  %v1718 = vmul.f32 1.0, %v1717
  %v1719 = vmul.f32 %v1718, 2.0
  %v1720 = vsub.f32 %v1719, 1.0
  %v1721 = vmul.f32 %v1718, %v1288
  %1723 = vrot.lane.b32.xlu0 %v1720, 64
  %v1724 = vpop.permute.xlu0 %1723
  %v1726 = vmul.f32 %v1718, %v1724
  %1728 = vrot.lane.b32.xlu0 %v1726, 32
  %v1729 = vpop.permute.xlu0 %1728
  %v1731 = vadd.f32 %v1721, %v1729
  %v1732 = vtanh.pop %v1731
  %1734 = vrot.lane.b32.xlu0 %v1732, 64
  %v1735 = vpop.permute.xlu0 %1734
  %v1737 = vmul.f32 %v1718, %v1735
  %1738 = vmatprep.subr.mxu0 0.0
  %1739 = vmatpush1.msra.mxu0 0.0
  %1740 = vmatprep.subr.mxu0 0.0
  %1741 = vmatpush1.msra.mxu0 0.0
  %1742 = vmatprep.subr.mxu0 0.0
  %1743 = vmatpush1.msra.mxu0 0.0
  %1744 = vmatprep.subr.mxu0 0.0
  %1745 = vmatpush1.msra.mxu0 0.0
  %1746 = vmatprep.subr.mxu0 0.0
  %1747 = vmatpush1.msra.mxu0 0.0
  %1748 = vmatprep.subr.mxu0 0.0
  %1749 = vmatpush1.msra.mxu0 0.0
  %1750 = vmatprep.subr.mxu0 0.0
  %1751 = vmatpush1.msra.mxu0 0.0
  %1752 = vmatprep.subr.mxu0 0.0
  %1753 = vmatpush1.msra.mxu0 0.0
  %1754 = vmatprep.subr.mxu0 0.0
  %1755 = vmatpush1.msra.mxu0 0.0
  %1756 = vmatprep.subr.mxu0 0.0
  %1757 = vmatpush1.msra.mxu0 0.0
  %1758 = vmatprep.subr.mxu0 0.0
  %1759 = vmatpush1.msra.mxu0 0.0
  %1760 = vmatprep.subr.mxu0 0.0
  %1761 = vmatpush1.msra.mxu0 0.0
  %1762 = vmatprep.subr.mxu0 0.0
  %1763 = vmatpush1.msra.mxu0 %v388
  %1764 = vmatprep.subr.mxu0 0.0
  %1765 = vmatpush1.msra.mxu0 %v387
  %1766 = vmatprep.subr.mxu0 0.0
  %1767 = vmatpush1.msra.mxu0 %v386
  %1768 = vmatprep.subr.mxu0 0.0
  %1769 = vmatpush1.msra.mxu0 %v385
  %1770 = vmatprep.subr.mxu0 0.0
  %1771 = vmatpush2.msra.mxu0 0.0
  %1772 = vmatprep.subr.mxu0 0.0
  %1773 = vmatpush2.msra.mxu0 0.0
  %1774 = vmatprep.subr.mxu0 0.0
  %1775 = vmatpush2.msra.mxu0 0.0
  %1776 = vmatprep.subr.mxu0 0.0
  %1777 = vmatpush2.msra.mxu0 0.0
  %1778 = vmatprep.subr.mxu0 0.0
  %1779 = vmatpush2.msra.mxu0 0.0
  %1780 = vmatprep.subr.mxu0 0.0
  %1781 = vmatpush2.msra.mxu0 0.0
  %1782 = vmatprep.subr.mxu0 0.0
  %1783 = vmatpush2.msra.mxu0 0.0
  %1784 = vmatprep.subr.mxu0 0.0
  %1785 = vmatpush2.msra.mxu0 0.0
  %1786 = vmatprep.subr.mxu0 0.0
  %1787 = vmatpush2.msra.mxu0 0.0
  %1788 = vmatprep.subr.mxu0 0.0
  %1789 = vmatpush2.msra.mxu0 0.0
  %1790 = vmatprep.subr.mxu0 0.0
  %1791 = vmatpush2.msra.mxu0 0.0
  %1792 = vmatprep.subr.mxu0 0.0
  %1793 = vmatpush2.msra.mxu0 0.0
  %1794 = vmatprep.subr.mxu0 0.0
  %1795 = vmatpush2.msra.mxu0 0.0
  %1796 = vmatprep.subr.mxu0 0.0
  %1797 = vmatpush2.msra.mxu0 0.0
  %1798 = vmatprep.subr.mxu0 0.0
  %1799 = vmatpush2.msra.mxu0 0.0
  %1800 = vmatprep.subr.mxu0 0.0
  %1801 = vmatpush2.msra.mxu0 0.0
  %1802 = vmatprep.mubr.f32.mxu0 0.0
  %1803 = vmatmul.mubr.f32.gmra.mxu0 %v1394
  %v1804 = vpop.f32.mrf.mxu0
  %v1805 = vadd.f32 0.0, %v1804
  %v1806 = vpop.f32.mrf.mxu0
  %1807 = vdwg.mxu0
  %v1808 = vadd.f32 %v141, %v1805
  %v1809 = vxor.u32 %v1808, 2147483648
  %v1810 = vmul.f32 %v1809, 1.442695
  %v1811 = vpow.pop %v1810
  %v1812 = vadd.f32 %v1811, 1.0
  %v1813 = vrcp.pop %v1812
  %v1814 = vmul.f32 1.0, %v1813
  %v1815 = vmul.f32 %v1814, 2.0
  %v1816 = vsub.f32 %v1815, 1.0
  %v1817 = vmul.f32 %v1814, %v1384
  %1819 = vrot.lane.b32.xlu0 %v1816, 64
  %v1820 = vpop.permute.xlu0 %1819
  %v1822 = vmul.f32 %v1814, %v1820
  %1824 = vrot.lane.b32.xlu0 %v1822, 32
  %v1825 = vpop.permute.xlu0 %1824
  %v1827 = vadd.f32 %v1817, %v1825
  %v1828 = vtanh.pop %v1827
  %1830 = vrot.lane.b32.xlu0 %v1828, 64
  %v1831 = vpop.permute.xlu0 %1830
  %v1833 = vmul.f32 %v1814, %v1831
  %1835 = vrot.lane.b32.xlu0 %v1833, 32
  %v1836 = vpop.permute.xlu0 %1835
  %v1837 = vsel %vm195, %v1836, 0
  %1839 = vmatprep.subr.mxu0 0.0
  %1840 = vmatpush1.msra.mxu0 0.0
  %1841 = vmatprep.subr.mxu0 0.0
  %1842 = vmatpush1.msra.mxu0 0.0
  %1843 = vmatprep.subr.mxu0 0.0
  %1844 = vmatpush1.msra.mxu0 0.0
  %1845 = vmatprep.subr.mxu0 0.0
  %1846 = vmatpush1.msra.mxu0 0.0
  %1847 = vmatprep.subr.mxu0 0.0
  %1848 = vmatpush1.msra.mxu0 0.0
  %1849 = vmatprep.subr.mxu0 0.0
  %1850 = vmatpush1.msra.mxu0 0.0
  %1851 = vmatprep.subr.mxu0 0.0
  %1852 = vmatpush1.msra.mxu0 0.0
  %1853 = vmatprep.subr.mxu0 0.0
  %1854 = vmatpush1.msra.mxu0 0.0
  %1855 = vmatprep.subr.mxu0 0.0
  %1856 = vmatpush1.msra.mxu0 0.0
  %1857 = vmatprep.subr.mxu0 0.0
  %1858 = vmatpush1.msra.mxu0 0.0
  %1859 = vmatprep.subr.mxu0 0.0
  %1860 = vmatpush1.msra.mxu0 0.0
  %1861 = vmatprep.subr.mxu0 0.0
  %1862 = vmatpush1.msra.mxu0 0.0
  %1863 = vmatprep.subr.mxu0 0.0
  %1864 = vmatpush1.msra.mxu0 %v191
  %1865 = vmatprep.subr.mxu0 0.0
  %1866 = vmatpush1.msra.mxu0 %v190
  %1867 = vmatprep.subr.mxu0 0.0
  %1868 = vmatpush1.msra.mxu0 %v189
  %1869 = vmatprep.subr.mxu0 0.0
  %1870 = vmatpush1.msra.mxu0 %v188
  %1871 = vmatprep.subr.mxu0 0.0
  %1872 = vmatpush2.msra.mxu0 0.0
  %1873 = vmatprep.subr.mxu0 0.0
  %1874 = vmatpush2.msra.mxu0 0.0
  %1875 = vmatprep.subr.mxu0 0.0
  %1876 = vmatpush2.msra.mxu0 0.0
  %1877 = vmatprep.subr.mxu0 0.0
  %1878 = vmatpush2.msra.mxu0 0.0
  %1879 = vmatprep.subr.mxu0 0.0
  %1880 = vmatpush2.msra.mxu0 0.0
  %1881 = vmatprep.subr.mxu0 0.0
  %1882 = vmatpush2.msra.mxu0 0.0
  %1883 = vmatprep.subr.mxu0 0.0
  %1884 = vmatpush2.msra.mxu0 0.0
  %1885 = vmatprep.subr.mxu0 0.0
  %1886 = vmatpush2.msra.mxu0 0.0
  %1887 = vmatprep.subr.mxu0 0.0
  %1888 = vmatpush2.msra.mxu0 0.0
  %1889 = vmatprep.subr.mxu0 0.0
  %1890 = vmatpush2.msra.mxu0 0.0
  %1891 = vmatprep.subr.mxu0 0.0
  %1892 = vmatpush2.msra.mxu0 0.0
  %1893 = vmatprep.subr.mxu0 0.0
  %1894 = vmatpush2.msra.mxu0 0.0
  %1895 = vmatprep.subr.mxu0 0.0
  %1896 = vmatpush2.msra.mxu0 0.0
  %1897 = vmatprep.subr.mxu0 0.0
  %1898 = vmatpush2.msra.mxu0 0.0
  %1899 = vmatprep.subr.mxu0 0.0
  %1900 = vmatpush2.msra.mxu0 0.0
  %1901 = vmatprep.subr.mxu0 0.0
  %1902 = vmatpush2.msra.mxu0 0.0
  %1903 = vmatprep.mubr.f32.mxu0 0.0
  %1904 = vmatmul.mubr.f32.gmra.mxu0 %v1837
  %v1905 = vpop.f32.mrf.mxu0
  %v1906 = vadd.f32 %v163, %v1905
  %v1907 = vpop.f32.mrf.mxu0
  %1908 = vdwg.mxu0
  %1909 = vmatprep.subr.mxu0 0.0
  %1910 = vmatpush1.msra.mxu0 0.0
  %1911 = vmatprep.subr.mxu0 0.0
  %1912 = vmatpush1.msra.mxu0 0.0
  %1913 = vmatprep.subr.mxu0 0.0
  %1914 = vmatpush1.msra.mxu0 0.0
  %1915 = vmatprep.subr.mxu0 0.0
  %1916 = vmatpush1.msra.mxu0 0.0
  %1917 = vmatprep.subr.mxu0 0.0
  %1918 = vmatpush1.msra.mxu0 0.0
  %1919 = vmatprep.subr.mxu0 0.0
  %1920 = vmatpush1.msra.mxu0 0.0
  %1921 = vmatprep.subr.mxu0 0.0
  %1922 = vmatpush1.msra.mxu0 0.0
  %1923 = vmatprep.subr.mxu0 0.0
  %1924 = vmatpush1.msra.mxu0 0.0
  %1925 = vmatprep.subr.mxu0 0.0
  %1926 = vmatpush1.msra.mxu0 0.0
  %1927 = vmatprep.subr.mxu0 0.0
  %1928 = vmatpush1.msra.mxu0 0.0
  %1929 = vmatprep.subr.mxu0 0.0
  %1930 = vmatpush1.msra.mxu0 0.0
  %1931 = vmatprep.subr.mxu0 0.0
  %1932 = vmatpush1.msra.mxu0 0.0
  %1933 = vmatprep.subr.mxu0 0.0
  %1934 = vmatpush1.msra.mxu0 %v567
  %1935 = vmatprep.subr.mxu0 0.0
  %1936 = vmatpush1.msra.mxu0 %v566
  %1937 = vmatprep.subr.mxu0 0.0
  %1938 = vmatpush1.msra.mxu0 %v565
  %1939 = vmatprep.subr.mxu0 0.0
  %1940 = vmatpush1.msra.mxu0 %v564
  %1941 = vmatprep.subr.mxu0 0.0
  %1942 = vmatpush2.msra.mxu0 0.0
  %1943 = vmatprep.subr.mxu0 0.0
  %1944 = vmatpush2.msra.mxu0 0.0
  %1945 = vmatprep.subr.mxu0 0.0
  %1946 = vmatpush2.msra.mxu0 0.0
  %1947 = vmatprep.subr.mxu0 0.0
  %1948 = vmatpush2.msra.mxu0 0.0
  %1949 = vmatprep.subr.mxu0 0.0
  %1950 = vmatpush2.msra.mxu0 0.0
  %1951 = vmatprep.subr.mxu0 0.0
  %1952 = vmatpush2.msra.mxu0 0.0
  %1953 = vmatprep.subr.mxu0 0.0
  %1954 = vmatpush2.msra.mxu0 0.0
  %1955 = vmatprep.subr.mxu0 0.0
  %1956 = vmatpush2.msra.mxu0 0.0
  %1957 = vmatprep.subr.mxu0 0.0
  %1958 = vmatpush2.msra.mxu0 0.0
  %1959 = vmatprep.subr.mxu0 0.0
  %1960 = vmatpush2.msra.mxu0 0.0
  %1961 = vmatprep.subr.mxu0 0.0
  %1962 = vmatpush2.msra.mxu0 0.0
  %1963 = vmatprep.subr.mxu0 0.0
  %1964 = vmatpush2.msra.mxu0 0.0
  %1965 = vmatprep.subr.mxu0 0.0
  %1966 = vmatpush2.msra.mxu0 0.0
  %1967 = vmatprep.subr.mxu0 0.0
  %1968 = vmatpush2.msra.mxu0 0.0
  %1969 = vmatprep.subr.mxu0 0.0
  %1970 = vmatpush2.msra.mxu0 0.0
  %1971 = vmatprep.subr.mxu0 0.0
  %1972 = vmatpush2.msra.mxu0 0.0
  %1973 = vmatprep.mubr.f32.mxu0 0.0
  %1974 = vmatmul.mubr.f32.gmra.mxu0 %v1565
  %v1975 = vpop.f32.mrf.mxu0
  %v1976 = vadd.f32 0.0, %v1975
  %v1977 = vpop.f32.mrf.mxu0
  %1978 = vdwg.mxu0
  %v1979 = vadd.f32 %v1906, %v1976
  %v1980 = vxor.u32 %v1979, 2147483648
  %v1981 = vmul.f32 %v1980, 1.442695
  %v1982 = vpow.pop %v1981
  %v1983 = vadd.f32 %v1982, 1.0
  %v1984 = vrcp.pop %v1983
  %v1985 = vmul.f32 1.0, %v1984
  %v1986 = vmul.f32 %v1985, 2.0
  %v1987 = vsub.f32 %v1986, 1.0
  %v1988 = vmul.f32 %v1985, %v1555
  %1990 = vrot.lane.b32.xlu0 %v1987, 64
  %v1991 = vpop.permute.xlu0 %1990
  %v1993 = vmul.f32 %v1985, %v1991
  %1995 = vrot.lane.b32.xlu0 %v1993, 32
  %v1996 = vpop.permute.xlu0 %1995
  %v1998 = vadd.f32 %v1988, %v1996
  %v1999 = vtanh.pop %v1998
  %2001 = vrot.lane.b32.xlu0 %v1999, 64
  %v2002 = vpop.permute.xlu0 %2001
  %v2004 = vmul.f32 %v1985, %v2002
  %2006 = vrot.lane.b32.xlu0 %v2004, 32
  %v2007 = vpop.permute.xlu0 %2006
  %v2008 = vsel %vm195, %v2007, 0
  %2010 = vmatprep.subr.mxu0 0.0
  %2011 = vmatpush1.msra.mxu0 0.0
  %2012 = vmatprep.subr.mxu0 0.0
  %2013 = vmatpush1.msra.mxu0 0.0
  %2014 = vmatprep.subr.mxu0 0.0
  %2015 = vmatpush1.msra.mxu0 0.0
  %2016 = vmatprep.subr.mxu0 0.0
  %2017 = vmatpush1.msra.mxu0 0.0
  %2018 = vmatprep.subr.mxu0 0.0
  %2019 = vmatpush1.msra.mxu0 0.0
  %2020 = vmatprep.subr.mxu0 0.0
  %2021 = vmatpush1.msra.mxu0 0.0
  %2022 = vmatprep.subr.mxu0 0.0
  %2023 = vmatpush1.msra.mxu0 0.0
  %2024 = vmatprep.subr.mxu0 0.0
  %2025 = vmatpush1.msra.mxu0 0.0
  %2026 = vmatprep.subr.mxu0 0.0
  %2027 = vmatpush1.msra.mxu0 0.0
  %2028 = vmatprep.subr.mxu0 0.0
  %2029 = vmatpush1.msra.mxu0 0.0
  %2030 = vmatprep.subr.mxu0 0.0
  %2031 = vmatpush1.msra.mxu0 0.0
  %2032 = vmatprep.subr.mxu0 0.0
  %2033 = vmatpush1.msra.mxu0 0.0
  %2034 = vmatprep.subr.mxu0 0.0
  %2035 = vmatpush1.msra.mxu0 %v290
  %2036 = vmatprep.subr.mxu0 0.0
  %2037 = vmatpush1.msra.mxu0 %v289
  %2038 = vmatprep.subr.mxu0 0.0
  %2039 = vmatpush1.msra.mxu0 %v288
  %2040 = vmatprep.subr.mxu0 0.0
  %2041 = vmatpush1.msra.mxu0 %v287
  %2042 = vmatprep.subr.mxu0 0.0
  %2043 = vmatpush2.msra.mxu0 0.0
  %2044 = vmatprep.subr.mxu0 0.0
  %2045 = vmatpush2.msra.mxu0 0.0
  %2046 = vmatprep.subr.mxu0 0.0
  %2047 = vmatpush2.msra.mxu0 0.0
  %2048 = vmatprep.subr.mxu0 0.0
  %2049 = vmatpush2.msra.mxu0 0.0
  %2050 = vmatprep.subr.mxu0 0.0
  %2051 = vmatpush2.msra.mxu0 0.0
  %2052 = vmatprep.subr.mxu0 0.0
  %2053 = vmatpush2.msra.mxu0 0.0
  %2054 = vmatprep.subr.mxu0 0.0
  %2055 = vmatpush2.msra.mxu0 0.0
  %2056 = vmatprep.subr.mxu0 0.0
  %2057 = vmatpush2.msra.mxu0 0.0
  %2058 = vmatprep.subr.mxu0 0.0
  %2059 = vmatpush2.msra.mxu0 0.0
  %2060 = vmatprep.subr.mxu0 0.0
  %2061 = vmatpush2.msra.mxu0 0.0
  %2062 = vmatprep.subr.mxu0 0.0
  %2063 = vmatpush2.msra.mxu0 0.0
  %2064 = vmatprep.subr.mxu0 0.0
  %2065 = vmatpush2.msra.mxu0 0.0
  %2066 = vmatprep.subr.mxu0 0.0
  %2067 = vmatpush2.msra.mxu0 0.0
  %2068 = vmatprep.subr.mxu0 0.0
  %2069 = vmatpush2.msra.mxu0 0.0
  %2070 = vmatprep.subr.mxu0 0.0
  %2071 = vmatpush2.msra.mxu0 0.0
  %2072 = vmatprep.subr.mxu0 0.0
  %2073 = vmatpush2.msra.mxu0 0.0
  %2074 = vmatprep.mubr.f32.mxu0 0.0
  %2075 = vmatmul.mubr.f32.gmra.mxu0 %v2008
  %v2076 = vpop.f32.mrf.mxu0
  %v2077 = vadd.f32 %v168, %v2076
  %v2078 = vpop.f32.mrf.mxu0
  %2079 = vdwg.mxu0
  %2081 = vrot.lane.b32.xlu0 %v1737, 32
  %v2082 = vpop.permute.xlu0 %2081
  %v2083 = vsel %vm195, %v2082, 0
  %2085 = vmatprep.subr.mxu0 0.0
  %2086 = vmatpush1.msra.mxu0 0.0
  %2087 = vmatprep.subr.mxu0 0.0
  %2088 = vmatpush1.msra.mxu0 0.0
  %2089 = vmatprep.subr.mxu0 0.0
  %2090 = vmatpush1.msra.mxu0 0.0
  %2091 = vmatprep.subr.mxu0 0.0
  %2092 = vmatpush1.msra.mxu0 0.0
  %2093 = vmatprep.subr.mxu0 0.0
  %2094 = vmatpush1.msra.mxu0 0.0
  %2095 = vmatprep.subr.mxu0 0.0
  %2096 = vmatpush1.msra.mxu0 0.0
  %2097 = vmatprep.subr.mxu0 0.0
  %2098 = vmatpush1.msra.mxu0 0.0
  %2099 = vmatprep.subr.mxu0 0.0
  %2100 = vmatpush1.msra.mxu0 0.0
  %2101 = vmatprep.subr.mxu0 0.0
  %2102 = vmatpush1.msra.mxu0 0.0
  %2103 = vmatprep.subr.mxu0 0.0
  %2104 = vmatpush1.msra.mxu0 0.0
  %2105 = vmatprep.subr.mxu0 0.0
  %2106 = vmatpush1.msra.mxu0 0.0
  %2107 = vmatprep.subr.mxu0 0.0
  %2108 = vmatpush1.msra.mxu0 0.0
  %2109 = vmatprep.subr.mxu0 0.0
  %2110 = vmatpush1.msra.mxu0 %v746
  %2111 = vmatprep.subr.mxu0 0.0
  %2112 = vmatpush1.msra.mxu0 %v745
  %2113 = vmatprep.subr.mxu0 0.0
  %2114 = vmatpush1.msra.mxu0 %v744
  %2115 = vmatprep.subr.mxu0 0.0
  %2116 = vmatpush1.msra.mxu0 %v743
  %2117 = vmatprep.subr.mxu0 0.0
  %2118 = vmatpush2.msra.mxu0 0.0
  %2119 = vmatprep.subr.mxu0 0.0
  %2120 = vmatpush2.msra.mxu0 0.0
  %2121 = vmatprep.subr.mxu0 0.0
  %2122 = vmatpush2.msra.mxu0 0.0
  %2123 = vmatprep.subr.mxu0 0.0
  %2124 = vmatpush2.msra.mxu0 0.0
  %2125 = vmatprep.subr.mxu0 0.0
  %2126 = vmatpush2.msra.mxu0 0.0
  %2127 = vmatprep.subr.mxu0 0.0
  %2128 = vmatpush2.msra.mxu0 0.0
  %2129 = vmatprep.subr.mxu0 0.0
  %2130 = vmatpush2.msra.mxu0 0.0
  %2131 = vmatprep.subr.mxu0 0.0
  %2132 = vmatpush2.msra.mxu0 0.0
  %2133 = vmatprep.subr.mxu0 0.0
  %2134 = vmatpush2.msra.mxu0 0.0
  %2135 = vmatprep.subr.mxu0 0.0
  %2136 = vmatpush2.msra.mxu0 0.0
  %2137 = vmatprep.subr.mxu0 0.0
  %2138 = vmatpush2.msra.mxu0 0.0
  %2139 = vmatprep.subr.mxu0 0.0
  %2140 = vmatpush2.msra.mxu0 0.0
  %2141 = vmatprep.subr.mxu0 0.0
  %2142 = vmatpush2.msra.mxu0 0.0
  %2143 = vmatprep.subr.mxu0 0.0
  %2144 = vmatpush2.msra.mxu0 0.0
  %2145 = vmatprep.subr.mxu0 0.0
  %2146 = vmatpush2.msra.mxu0 0.0
  %2147 = vmatprep.subr.mxu0 0.0
  %2148 = vmatpush2.msra.mxu0 0.0
  %2149 = vmatprep.mubr.f32.mxu0 0.0
  %2150 = vmatmul.mubr.f32.gmra.mxu0 %v2083
  %v2151 = vpop.f32.mrf.mxu0
  %v2152 = vadd.f32 0.0, %v2151
  %v2153 = vpop.f32.mrf.mxu0
  %2154 = vdwg.mxu0
  %v2155 = vadd.f32 %v2077, %v2152
  %v2156 = vxor.u32 %v2155, 2147483648
  %v2157 = vmul.f32 %v2156, 1.442695
  %v2158 = vpow.pop %v2157
  %v2159 = vadd.f32 %v2158, 1.0
  %v2160 = vrcp.pop %v2159
  %v2161 = vmul.f32 1.0, %v2160
  %v2162 = vmul.f32 %v2161, 2.0
  %v2163 = vsub.f32 %v2162, 1.0
  %v2164 = vmul.f32 %v2161, %v1731
  %2166 = vrot.lane.b32.xlu0 %v2163, 64
  %v2167 = vpop.permute.xlu0 %2166
  %v2169 = vmul.f32 %v2161, %v2167
  %2171 = vrot.lane.b32.xlu0 %v2169, 32
  %v2172 = vpop.permute.xlu0 %2171
  %v2174 = vadd.f32 %v2164, %v2172
  %v2175 = vtanh.pop %v2174
  %2177 = vrot.lane.b32.xlu0 %v2175, 64
  %v2178 = vpop.permute.xlu0 %2177
  %v2180 = vmul.f32 %v2161, %v2178
  %2181 = vmatprep.subr.mxu0 0.0
  %2182 = vmatpush1.msra.mxu0 0.0
  %2183 = vmatprep.subr.mxu0 0.0
  %2184 = vmatpush1.msra.mxu0 0.0
  %2185 = vmatprep.subr.mxu0 0.0
  %2186 = vmatpush1.msra.mxu0 0.0
  %2187 = vmatprep.subr.mxu0 0.0
  %2188 = vmatpush1.msra.mxu0 0.0
  %2189 = vmatprep.subr.mxu0 0.0
  %2190 = vmatpush1.msra.mxu0 0.0
  %2191 = vmatprep.subr.mxu0 0.0
  %2192 = vmatpush1.msra.mxu0 0.0
  %2193 = vmatprep.subr.mxu0 0.0
  %2194 = vmatpush1.msra.mxu0 0.0
  %2195 = vmatprep.subr.mxu0 0.0
  %2196 = vmatpush1.msra.mxu0 0.0
  %2197 = vmatprep.subr.mxu0 0.0
  %2198 = vmatpush1.msra.mxu0 0.0
  %2199 = vmatprep.subr.mxu0 0.0
  %2200 = vmatpush1.msra.mxu0 0.0
  %2201 = vmatprep.subr.mxu0 0.0
  %2202 = vmatpush1.msra.mxu0 0.0
  %2203 = vmatprep.subr.mxu0 0.0
  %2204 = vmatpush1.msra.mxu0 0.0
  %2205 = vmatprep.subr.mxu0 0.0
  %2206 = vmatpush1.msra.mxu0 %v388
  %2207 = vmatprep.subr.mxu0 0.0
  %2208 = vmatpush1.msra.mxu0 %v387
  %2209 = vmatprep.subr.mxu0 0.0
  %2210 = vmatpush1.msra.mxu0 %v386
  %2211 = vmatprep.subr.mxu0 0.0
  %2212 = vmatpush1.msra.mxu0 %v385
  %2213 = vmatprep.subr.mxu0 0.0
  %2214 = vmatpush2.msra.mxu0 0.0
  %2215 = vmatprep.subr.mxu0 0.0
  %2216 = vmatpush2.msra.mxu0 0.0
  %2217 = vmatprep.subr.mxu0 0.0
  %2218 = vmatpush2.msra.mxu0 0.0
  %2219 = vmatprep.subr.mxu0 0.0
  %2220 = vmatpush2.msra.mxu0 0.0
  %2221 = vmatprep.subr.mxu0 0.0
  %2222 = vmatpush2.msra.mxu0 0.0
  %2223 = vmatprep.subr.mxu0 0.0
  %2224 = vmatpush2.msra.mxu0 0.0
  %2225 = vmatprep.subr.mxu0 0.0
  %2226 = vmatpush2.msra.mxu0 0.0
  %2227 = vmatprep.subr.mxu0 0.0
  %2228 = vmatpush2.msra.mxu0 0.0
  %2229 = vmatprep.subr.mxu0 0.0
  %2230 = vmatpush2.msra.mxu0 0.0
  %2231 = vmatprep.subr.mxu0 0.0
  %2232 = vmatpush2.msra.mxu0 0.0
  %2233 = vmatprep.subr.mxu0 0.0
  %2234 = vmatpush2.msra.mxu0 0.0
  %2235 = vmatprep.subr.mxu0 0.0
  %2236 = vmatpush2.msra.mxu0 0.0
  %2237 = vmatprep.subr.mxu0 0.0
  %2238 = vmatpush2.msra.mxu0 0.0
  %2239 = vmatprep.subr.mxu0 0.0
  %2240 = vmatpush2.msra.mxu0 0.0
  %2241 = vmatprep.subr.mxu0 0.0
  %2242 = vmatpush2.msra.mxu0 0.0
  %2243 = vmatprep.subr.mxu0 0.0
  %2244 = vmatpush2.msra.mxu0 0.0
  %2245 = vmatprep.mubr.f32.mxu0 0.0
  %2246 = vmatmul.mubr.f32.gmra.mxu0 %v1837
  %v2247 = vpop.f32.mrf.mxu0
  %v2248 = vadd.f32 0.0, %v2247
  %v2249 = vpop.f32.mrf.mxu0
  %2250 = vdwg.mxu0
  %v2251 = vadd.f32 %v146, %v2248
  %v2252 = vxor.u32 %v2251, 2147483648
  %v2253 = vmul.f32 %v2252, 1.442695
  %v2254 = vpow.pop %v2253
  %v2255 = vadd.f32 %v2254, 1.0
  %v2256 = vrcp.pop %v2255
  %v2257 = vmul.f32 1.0, %v2256
  %v2258 = vmul.f32 %v2257, 2.0
  %v2259 = vsub.f32 %v2258, 1.0
  %v2260 = vmul.f32 %v2257, %v1827
  %2262 = vrot.lane.b32.xlu0 %v2259, 64
  %v2263 = vpop.permute.xlu0 %2262
  %v2265 = vmul.f32 %v2257, %v2263
  %2267 = vrot.lane.b32.xlu0 %v2265, 32
  %v2268 = vpop.permute.xlu0 %2267
  %v2270 = vadd.f32 %v2260, %v2268
  %v2271 = vtanh.pop %v2270
  %2273 = vrot.lane.b32.xlu0 %v2271, 64
  %v2274 = vpop.permute.xlu0 %2273
  %v2276 = vmul.f32 %v2257, %v2274
  %2278 = vrot.lane.b32.xlu0 %v2276, 32
  %v2279 = vpop.permute.xlu0 %2278
  %v2280 = vsel %vm195, %v2279, 0
  %2282 = vmatprep.subr.mxu0 0.0
  %2283 = vmatpush1.msra.mxu0 0.0
  %2284 = vmatprep.subr.mxu0 0.0
  %2285 = vmatpush1.msra.mxu0 0.0
  %2286 = vmatprep.subr.mxu0 0.0
  %2287 = vmatpush1.msra.mxu0 0.0
  %2288 = vmatprep.subr.mxu0 0.0
  %2289 = vmatpush1.msra.mxu0 0.0
  %2290 = vmatprep.subr.mxu0 0.0
  %2291 = vmatpush1.msra.mxu0 0.0
  %2292 = vmatprep.subr.mxu0 0.0
  %2293 = vmatpush1.msra.mxu0 0.0
  %2294 = vmatprep.subr.mxu0 0.0
  %2295 = vmatpush1.msra.mxu0 0.0
  %2296 = vmatprep.subr.mxu0 0.0
  %2297 = vmatpush1.msra.mxu0 0.0
  %2298 = vmatprep.subr.mxu0 0.0
  %2299 = vmatpush1.msra.mxu0 0.0
  %2300 = vmatprep.subr.mxu0 0.0
  %2301 = vmatpush1.msra.mxu0 0.0
  %2302 = vmatprep.subr.mxu0 0.0
  %2303 = vmatpush1.msra.mxu0 0.0
  %2304 = vmatprep.subr.mxu0 0.0
  %2305 = vmatpush1.msra.mxu0 0.0
  %2306 = vmatprep.subr.mxu0 0.0
  %2307 = vmatpush1.msra.mxu0 %v191
  %2308 = vmatprep.subr.mxu0 0.0
  %2309 = vmatpush1.msra.mxu0 %v190
  %2310 = vmatprep.subr.mxu0 0.0
  %2311 = vmatpush1.msra.mxu0 %v189
  %2312 = vmatprep.subr.mxu0 0.0
  %2313 = vmatpush1.msra.mxu0 %v188
  %2314 = vmatprep.subr.mxu0 0.0
  %2315 = vmatpush2.msra.mxu0 0.0
  %2316 = vmatprep.subr.mxu0 0.0
  %2317 = vmatpush2.msra.mxu0 0.0
  %2318 = vmatprep.subr.mxu0 0.0
  %2319 = vmatpush2.msra.mxu0 0.0
  %2320 = vmatprep.subr.mxu0 0.0
  %2321 = vmatpush2.msra.mxu0 0.0
  %2322 = vmatprep.subr.mxu0 0.0
  %2323 = vmatpush2.msra.mxu0 0.0
  %2324 = vmatprep.subr.mxu0 0.0
  %2325 = vmatpush2.msra.mxu0 0.0
  %2326 = vmatprep.subr.mxu0 0.0
  %2327 = vmatpush2.msra.mxu0 0.0
  %2328 = vmatprep.subr.mxu0 0.0
  %2329 = vmatpush2.msra.mxu0 0.0
  %2330 = vmatprep.subr.mxu0 0.0
  %2331 = vmatpush2.msra.mxu0 0.0
  %2332 = vmatprep.subr.mxu0 0.0
  %2333 = vmatpush2.msra.mxu0 0.0
  %2334 = vmatprep.subr.mxu0 0.0
  %2335 = vmatpush2.msra.mxu0 0.0
  %2336 = vmatprep.subr.mxu0 0.0
  %2337 = vmatpush2.msra.mxu0 0.0
  %2338 = vmatprep.subr.mxu0 0.0
  %2339 = vmatpush2.msra.mxu0 0.0
  %2340 = vmatprep.subr.mxu0 0.0
  %2341 = vmatpush2.msra.mxu0 0.0
  %2342 = vmatprep.subr.mxu0 0.0
  %2343 = vmatpush2.msra.mxu0 0.0
  %2344 = vmatprep.subr.mxu0 0.0
  %2345 = vmatpush2.msra.mxu0 0.0
  %2346 = vmatprep.mubr.f32.mxu0 0.0
  %2347 = vmatmul.mubr.f32.gmra.mxu0 %v2280
  %v2348 = vpop.f32.mrf.mxu0
  %v2349 = vadd.f32 %v163, %v2348
  %v2350 = vpop.f32.mrf.mxu0
  %2351 = vdwg.mxu0
  %2352 = vmatprep.subr.mxu0 0.0
  %2353 = vmatpush1.msra.mxu0 0.0
  %2354 = vmatprep.subr.mxu0 0.0
  %2355 = vmatpush1.msra.mxu0 0.0
  %2356 = vmatprep.subr.mxu0 0.0
  %2357 = vmatpush1.msra.mxu0 0.0
  %2358 = vmatprep.subr.mxu0 0.0
  %2359 = vmatpush1.msra.mxu0 0.0
  %2360 = vmatprep.subr.mxu0 0.0
  %2361 = vmatpush1.msra.mxu0 0.0
  %2362 = vmatprep.subr.mxu0 0.0
  %2363 = vmatpush1.msra.mxu0 0.0
  %2364 = vmatprep.subr.mxu0 0.0
  %2365 = vmatpush1.msra.mxu0 0.0
  %2366 = vmatprep.subr.mxu0 0.0
  %2367 = vmatpush1.msra.mxu0 0.0
  %2368 = vmatprep.subr.mxu0 0.0
  %2369 = vmatpush1.msra.mxu0 0.0
  %2370 = vmatprep.subr.mxu0 0.0
  %2371 = vmatpush1.msra.mxu0 0.0
  %2372 = vmatprep.subr.mxu0 0.0
  %2373 = vmatpush1.msra.mxu0 0.0
  %2374 = vmatprep.subr.mxu0 0.0
  %2375 = vmatpush1.msra.mxu0 0.0
  %2376 = vmatprep.subr.mxu0 0.0
  %2377 = vmatpush1.msra.mxu0 %v567
  %2378 = vmatprep.subr.mxu0 0.0
  %2379 = vmatpush1.msra.mxu0 %v566
  %2380 = vmatprep.subr.mxu0 0.0
  %2381 = vmatpush1.msra.mxu0 %v565
  %2382 = vmatprep.subr.mxu0 0.0
  %2383 = vmatpush1.msra.mxu0 %v564
  %2384 = vmatprep.subr.mxu0 0.0
  %2385 = vmatpush2.msra.mxu0 0.0
  %2386 = vmatprep.subr.mxu0 0.0
  %2387 = vmatpush2.msra.mxu0 0.0
  %2388 = vmatprep.subr.mxu0 0.0
  %2389 = vmatpush2.msra.mxu0 0.0
  %2390 = vmatprep.subr.mxu0 0.0
  %2391 = vmatpush2.msra.mxu0 0.0
  %2392 = vmatprep.subr.mxu0 0.0
  %2393 = vmatpush2.msra.mxu0 0.0
  %2394 = vmatprep.subr.mxu0 0.0
  %2395 = vmatpush2.msra.mxu0 0.0
  %2396 = vmatprep.subr.mxu0 0.0
  %2397 = vmatpush2.msra.mxu0 0.0
  %2398 = vmatprep.subr.mxu0 0.0
  %2399 = vmatpush2.msra.mxu0 0.0
  %2400 = vmatprep.subr.mxu0 0.0
  %2401 = vmatpush2.msra.mxu0 0.0
  %2402 = vmatprep.subr.mxu0 0.0
  %2403 = vmatpush2.msra.mxu0 0.0
  %2404 = vmatprep.subr.mxu0 0.0
  %2405 = vmatpush2.msra.mxu0 0.0
  %2406 = vmatprep.subr.mxu0 0.0
  %2407 = vmatpush2.msra.mxu0 0.0
  %2408 = vmatprep.subr.mxu0 0.0
  %2409 = vmatpush2.msra.mxu0 0.0
  %2410 = vmatprep.subr.mxu0 0.0
  %2411 = vmatpush2.msra.mxu0 0.0
  %2412 = vmatprep.subr.mxu0 0.0
  %2413 = vmatpush2.msra.mxu0 0.0
  %2414 = vmatprep.subr.mxu0 0.0
  %2415 = vmatpush2.msra.mxu0 0.0
  %2416 = vmatprep.mubr.f32.mxu0 0.0
  %2417 = vmatmul.mubr.f32.gmra.mxu0 %v2008
  %v2418 = vpop.f32.mrf.mxu0
  %v2419 = vadd.f32 0.0, %v2418
  %v2420 = vpop.f32.mrf.mxu0
  %2421 = vdwg.mxu0
  %v2422 = vadd.f32 %v2349, %v2419
  %v2423 = vxor.u32 %v2422, 2147483648
  %v2424 = vmul.f32 %v2423, 1.442695
  %v2425 = vpow.pop %v2424
  %v2426 = vadd.f32 %v2425, 1.0
  %v2427 = vrcp.pop %v2426
  %v2428 = vmul.f32 1.0, %v2427
  %v2429 = vmul.f32 %v2428, 2.0
  %v2430 = vsub.f32 %v2429, 1.0
  %v2431 = vmul.f32 %v2428, %v1998
  %2433 = vrot.lane.b32.xlu0 %v2430, 64
  %v2434 = vpop.permute.xlu0 %2433
  %v2436 = vmul.f32 %v2428, %v2434
  %2438 = vrot.lane.b32.xlu0 %v2436, 32
  %v2439 = vpop.permute.xlu0 %2438
  %v2441 = vadd.f32 %v2431, %v2439
  %v2442 = vtanh.pop %v2441
  %2444 = vrot.lane.b32.xlu0 %v2442, 64
  %v2445 = vpop.permute.xlu0 %2444
  %v2447 = vmul.f32 %v2428, %v2445
  %2449 = vrot.lane.b32.xlu0 %v2447, 32
  %v2450 = vpop.permute.xlu0 %2449
  %v2451 = vsel %vm195, %v2450, 0
  %2453 = vmatprep.subr.mxu0 0.0
  %2454 = vmatpush1.msra.mxu0 0.0
  %2455 = vmatprep.subr.mxu0 0.0
  %2456 = vmatpush1.msra.mxu0 0.0
  %2457 = vmatprep.subr.mxu0 0.0
  %2458 = vmatpush1.msra.mxu0 0.0
  %2459 = vmatprep.subr.mxu0 0.0
  %2460 = vmatpush1.msra.mxu0 0.0
  %2461 = vmatprep.subr.mxu0 0.0
  %2462 = vmatpush1.msra.mxu0 0.0
  %2463 = vmatprep.subr.mxu0 0.0
  %2464 = vmatpush1.msra.mxu0 0.0
  %2465 = vmatprep.subr.mxu0 0.0
  %2466 = vmatpush1.msra.mxu0 0.0
  %2467 = vmatprep.subr.mxu0 0.0
  %2468 = vmatpush1.msra.mxu0 0.0
  %2469 = vmatprep.subr.mxu0 0.0
  %2470 = vmatpush1.msra.mxu0 0.0
  %2471 = vmatprep.subr.mxu0 0.0
  %2472 = vmatpush1.msra.mxu0 0.0
  %2473 = vmatprep.subr.mxu0 0.0
  %2474 = vmatpush1.msra.mxu0 0.0
  %2475 = vmatprep.subr.mxu0 0.0
  %2476 = vmatpush1.msra.mxu0 0.0
  %2477 = vmatprep.subr.mxu0 0.0
  %2478 = vmatpush1.msra.mxu0 %v290
  %2479 = vmatprep.subr.mxu0 0.0
  %2480 = vmatpush1.msra.mxu0 %v289
  %2481 = vmatprep.subr.mxu0 0.0
  %2482 = vmatpush1.msra.mxu0 %v288
  %2483 = vmatprep.subr.mxu0 0.0
  %2484 = vmatpush1.msra.mxu0 %v287
  %2485 = vmatprep.subr.mxu0 0.0
  %2486 = vmatpush2.msra.mxu0 0.0
  %2487 = vmatprep.subr.mxu0 0.0
  %2488 = vmatpush2.msra.mxu0 0.0
  %2489 = vmatprep.subr.mxu0 0.0
  %2490 = vmatpush2.msra.mxu0 0.0
  %2491 = vmatprep.subr.mxu0 0.0
  %2492 = vmatpush2.msra.mxu0 0.0
  %2493 = vmatprep.subr.mxu0 0.0
  %2494 = vmatpush2.msra.mxu0 0.0
  %2495 = vmatprep.subr.mxu0 0.0
  %2496 = vmatpush2.msra.mxu0 0.0
  %2497 = vmatprep.subr.mxu0 0.0
  %2498 = vmatpush2.msra.mxu0 0.0
  %2499 = vmatprep.subr.mxu0 0.0
  %2500 = vmatpush2.msra.mxu0 0.0
  %2501 = vmatprep.subr.mxu0 0.0
  %2502 = vmatpush2.msra.mxu0 0.0
  %2503 = vmatprep.subr.mxu0 0.0
  %2504 = vmatpush2.msra.mxu0 0.0
  %2505 = vmatprep.subr.mxu0 0.0
  %2506 = vmatpush2.msra.mxu0 0.0
  %2507 = vmatprep.subr.mxu0 0.0
  %2508 = vmatpush2.msra.mxu0 0.0
  %2509 = vmatprep.subr.mxu0 0.0
  %2510 = vmatpush2.msra.mxu0 0.0
  %2511 = vmatprep.subr.mxu0 0.0
  %2512 = vmatpush2.msra.mxu0 0.0
  %2513 = vmatprep.subr.mxu0 0.0
  %2514 = vmatpush2.msra.mxu0 0.0
  %2515 = vmatprep.subr.mxu0 0.0
  %2516 = vmatpush2.msra.mxu0 0.0
  %2517 = vmatprep.mubr.f32.mxu0 0.0
  %2518 = vmatmul.mubr.f32.gmra.mxu0 %v2451
  %v2519 = vpop.f32.mrf.mxu0
  %v2520 = vadd.f32 %v168, %v2519
  %v2521 = vpop.f32.mrf.mxu0
  %2522 = vdwg.mxu0
  %2524 = vrot.lane.b32.xlu0 %v2180, 32
  %v2525 = vpop.permute.xlu0 %2524
  %v2526 = vsel %vm195, %v2525, 0
  %2528 = vmatprep.subr.mxu0 0.0
  %2529 = vmatpush1.msra.mxu0 0.0
  %2530 = vmatprep.subr.mxu0 0.0
  %2531 = vmatpush1.msra.mxu0 0.0
  %2532 = vmatprep.subr.mxu0 0.0
  %2533 = vmatpush1.msra.mxu0 0.0
  %2534 = vmatprep.subr.mxu0 0.0
  %2535 = vmatpush1.msra.mxu0 0.0
  %2536 = vmatprep.subr.mxu0 0.0
  %2537 = vmatpush1.msra.mxu0 0.0
  %2538 = vmatprep.subr.mxu0 0.0
  %2539 = vmatpush1.msra.mxu0 0.0
  %2540 = vmatprep.subr.mxu0 0.0
  %2541 = vmatpush1.msra.mxu0 0.0
  %2542 = vmatprep.subr.mxu0 0.0
  %2543 = vmatpush1.msra.mxu0 0.0
  %2544 = vmatprep.subr.mxu0 0.0
  %2545 = vmatpush1.msra.mxu0 0.0
  %2546 = vmatprep.subr.mxu0 0.0
  %2547 = vmatpush1.msra.mxu0 0.0
  %2548 = vmatprep.subr.mxu0 0.0
  %2549 = vmatpush1.msra.mxu0 0.0
  %2550 = vmatprep.subr.mxu0 0.0
  %2551 = vmatpush1.msra.mxu0 0.0
  %2552 = vmatprep.subr.mxu0 0.0
  %2553 = vmatpush1.msra.mxu0 %v746
  %2554 = vmatprep.subr.mxu0 0.0
  %2555 = vmatpush1.msra.mxu0 %v745
  %2556 = vmatprep.subr.mxu0 0.0
  %2557 = vmatpush1.msra.mxu0 %v744
  %2558 = vmatprep.subr.mxu0 0.0
  %2559 = vmatpush1.msra.mxu0 %v743
  %2560 = vmatprep.subr.mxu0 0.0
  %2561 = vmatpush2.msra.mxu0 0.0
  %2562 = vmatprep.subr.mxu0 0.0
  %2563 = vmatpush2.msra.mxu0 0.0
  %2564 = vmatprep.subr.mxu0 0.0
  %2565 = vmatpush2.msra.mxu0 0.0
  %2566 = vmatprep.subr.mxu0 0.0
  %2567 = vmatpush2.msra.mxu0 0.0
  %2568 = vmatprep.subr.mxu0 0.0
  %2569 = vmatpush2.msra.mxu0 0.0
  %2570 = vmatprep.subr.mxu0 0.0
  %2571 = vmatpush2.msra.mxu0 0.0
  %2572 = vmatprep.subr.mxu0 0.0
  %2573 = vmatpush2.msra.mxu0 0.0
  %2574 = vmatprep.subr.mxu0 0.0
  %2575 = vmatpush2.msra.mxu0 0.0
  %2576 = vmatprep.subr.mxu0 0.0
  %2577 = vmatpush2.msra.mxu0 0.0
  %2578 = vmatprep.subr.mxu0 0.0
  %2579 = vmatpush2.msra.mxu0 0.0
  %2580 = vmatprep.subr.mxu0 0.0
  %2581 = vmatpush2.msra.mxu0 0.0
  %2582 = vmatprep.subr.mxu0 0.0
  %2583 = vmatpush2.msra.mxu0 0.0
  %2584 = vmatprep.subr.mxu0 0.0
  %2585 = vmatpush2.msra.mxu0 0.0
  %2586 = vmatprep.subr.mxu0 0.0
  %2587 = vmatpush2.msra.mxu0 0.0
  %2588 = vmatprep.subr.mxu0 0.0
  %2589 = vmatpush2.msra.mxu0 0.0
  %2590 = vmatprep.subr.mxu0 0.0
  %2591 = vmatpush2.msra.mxu0 0.0
  %2592 = vmatprep.mubr.f32.mxu0 0.0
  %2593 = vmatmul.mubr.f32.gmra.mxu0 %v2526
  %v2594 = vpop.f32.mrf.mxu0
  %v2595 = vadd.f32 0.0, %v2594
  %v2596 = vpop.f32.mrf.mxu0
  %2597 = vdwg.mxu0
  %v2598 = vadd.f32 %v2520, %v2595
  %v2599 = vxor.u32 %v2598, 2147483648
  %v2600 = vmul.f32 %v2599, 1.442695
  %v2601 = vpow.pop %v2600
  %v2602 = vadd.f32 %v2601, 1.0
  %v2603 = vrcp.pop %v2602
  %v2604 = vmul.f32 1.0, %v2603
  %v2605 = vmul.f32 %v2604, 2.0
  %v2606 = vsub.f32 %v2605, 1.0
  %v2607 = vmul.f32 %v2604, %v2174
  %2609 = vrot.lane.b32.xlu0 %v2606, 64
  %v2610 = vpop.permute.xlu0 %2609
  %v2612 = vmul.f32 %v2604, %v2610
  %2614 = vrot.lane.b32.xlu0 %v2612, 32
  %v2615 = vpop.permute.xlu0 %2614
  %v2617 = vadd.f32 %v2607, %v2615
  %v2618 = vtanh.pop %v2617
  %2620 = vrot.lane.b32.xlu0 %v2618, 64
  %v2621 = vpop.permute.xlu0 %2620
  %v2623 = vmul.f32 %v2604, %v2621
  %2624 = vmatprep.subr.mxu0 0.0
  %2625 = vmatpush1.msra.mxu0 0.0
  %2626 = vmatprep.subr.mxu0 0.0
  %2627 = vmatpush1.msra.mxu0 0.0
  %2628 = vmatprep.subr.mxu0 0.0
  %2629 = vmatpush1.msra.mxu0 0.0
  %2630 = vmatprep.subr.mxu0 0.0
  %2631 = vmatpush1.msra.mxu0 0.0
  %2632 = vmatprep.subr.mxu0 0.0
  %2633 = vmatpush1.msra.mxu0 0.0
  %2634 = vmatprep.subr.mxu0 0.0
  %2635 = vmatpush1.msra.mxu0 0.0
  %2636 = vmatprep.subr.mxu0 0.0
  %2637 = vmatpush1.msra.mxu0 0.0
  %2638 = vmatprep.subr.mxu0 0.0
  %2639 = vmatpush1.msra.mxu0 0.0
  %2640 = vmatprep.subr.mxu0 0.0
  %2641 = vmatpush1.msra.mxu0 0.0
  %2642 = vmatprep.subr.mxu0 0.0
  %2643 = vmatpush1.msra.mxu0 0.0
  %2644 = vmatprep.subr.mxu0 0.0
  %2645 = vmatpush1.msra.mxu0 0.0
  %2646 = vmatprep.subr.mxu0 0.0
  %2647 = vmatpush1.msra.mxu0 0.0
  %2648 = vmatprep.subr.mxu0 0.0
  %2649 = vmatpush1.msra.mxu0 %v388
  %2650 = vmatprep.subr.mxu0 0.0
  %2651 = vmatpush1.msra.mxu0 %v387
  %2652 = vmatprep.subr.mxu0 0.0
  %2653 = vmatpush1.msra.mxu0 %v386
  %2654 = vmatprep.subr.mxu0 0.0
  %2655 = vmatpush1.msra.mxu0 %v385
  %2656 = vmatprep.subr.mxu0 0.0
  %2657 = vmatpush2.msra.mxu0 0.0
  %2658 = vmatprep.subr.mxu0 0.0
  %2659 = vmatpush2.msra.mxu0 0.0
  %2660 = vmatprep.subr.mxu0 0.0
  %2661 = vmatpush2.msra.mxu0 0.0
  %2662 = vmatprep.subr.mxu0 0.0
  %2663 = vmatpush2.msra.mxu0 0.0
  %2664 = vmatprep.subr.mxu0 0.0
  %2665 = vmatpush2.msra.mxu0 0.0
  %2666 = vmatprep.subr.mxu0 0.0
  %2667 = vmatpush2.msra.mxu0 0.0
  %2668 = vmatprep.subr.mxu0 0.0
  %2669 = vmatpush2.msra.mxu0 0.0
  %2670 = vmatprep.subr.mxu0 0.0
  %2671 = vmatpush2.msra.mxu0 0.0
  %2672 = vmatprep.subr.mxu0 0.0
  %2673 = vmatpush2.msra.mxu0 0.0
  %2674 = vmatprep.subr.mxu0 0.0
  %2675 = vmatpush2.msra.mxu0 0.0
  %2676 = vmatprep.subr.mxu0 0.0
  %2677 = vmatpush2.msra.mxu0 0.0
  %2678 = vmatprep.subr.mxu0 0.0
  %2679 = vmatpush2.msra.mxu0 0.0
  %2680 = vmatprep.subr.mxu0 0.0
  %2681 = vmatpush2.msra.mxu0 0.0
  %2682 = vmatprep.subr.mxu0 0.0
  %2683 = vmatpush2.msra.mxu0 0.0
  %2684 = vmatprep.subr.mxu0 0.0
  %2685 = vmatpush2.msra.mxu0 0.0
  %2686 = vmatprep.subr.mxu0 0.0
  %2687 = vmatpush2.msra.mxu0 0.0
  %2688 = vmatprep.mubr.f32.mxu0 0.0
  %2689 = vmatmul.mubr.f32.gmra.mxu0 %v2280
  %v2690 = vpop.f32.mrf.mxu0
  %v2691 = vadd.f32 0.0, %v2690
  %v2692 = vpop.f32.mrf.mxu0
  %2693 = vdwg.mxu0
  %v2694 = vadd.f32 %v151, %v2691
  %v2695 = vxor.u32 %v2694, 2147483648
  %v2696 = vmul.f32 %v2695, 1.442695
  %v2697 = vpow.pop %v2696
  %v2698 = vadd.f32 %v2697, 1.0
  %v2699 = vrcp.pop %v2698
  %v2700 = vmul.f32 1.0, %v2699
  %v2701 = vmul.f32 %v2700, 2.0
  %v2702 = vsub.f32 %v2701, 1.0
  %v2703 = vmul.f32 %v2700, %v2270
  %2705 = vrot.lane.b32.xlu0 %v2702, 64
  %v2706 = vpop.permute.xlu0 %2705
  %v2708 = vmul.f32 %v2700, %v2706
  %2710 = vrot.lane.b32.xlu0 %v2708, 32
  %v2711 = vpop.permute.xlu0 %2710
  %v2713 = vadd.f32 %v2703, %v2711
  %v2714 = vtanh.pop %v2713
  %2716 = vrot.lane.b32.xlu0 %v2714, 64
  %v2717 = vpop.permute.xlu0 %2716
  %v2719 = vmul.f32 %v2700, %v2717
  %2721 = vrot.lane.b32.xlu0 %v2719, 32
  %v2722 = vpop.permute.xlu0 %2721
  %v2723 = vsel %vm195, %v2722, 0
  %2725 = vmatprep.subr.mxu0 0.0
  %2726 = vmatpush1.msra.mxu0 0.0
  %2727 = vmatprep.subr.mxu0 0.0
  %2728 = vmatpush1.msra.mxu0 0.0
  %2729 = vmatprep.subr.mxu0 0.0
  %2730 = vmatpush1.msra.mxu0 0.0
  %2731 = vmatprep.subr.mxu0 0.0
  %2732 = vmatpush1.msra.mxu0 0.0
  %2733 = vmatprep.subr.mxu0 0.0
  %2734 = vmatpush1.msra.mxu0 0.0
  %2735 = vmatprep.subr.mxu0 0.0
  %2736 = vmatpush1.msra.mxu0 0.0
  %2737 = vmatprep.subr.mxu0 0.0
  %2738 = vmatpush1.msra.mxu0 0.0
  %2739 = vmatprep.subr.mxu0 0.0
  %2740 = vmatpush1.msra.mxu0 0.0
  %2741 = vmatprep.subr.mxu0 0.0
  %2742 = vmatpush1.msra.mxu0 0.0
  %2743 = vmatprep.subr.mxu0 0.0
  %2744 = vmatpush1.msra.mxu0 0.0
  %2745 = vmatprep.subr.mxu0 0.0
  %2746 = vmatpush1.msra.mxu0 0.0
  %2747 = vmatprep.subr.mxu0 0.0
  %2748 = vmatpush1.msra.mxu0 0.0
  %2749 = vmatprep.subr.mxu0 0.0
  %2750 = vmatpush1.msra.mxu0 %v191
  %2751 = vmatprep.subr.mxu0 0.0
  %2752 = vmatpush1.msra.mxu0 %v190
  %2753 = vmatprep.subr.mxu0 0.0
  %2754 = vmatpush1.msra.mxu0 %v189
  %2755 = vmatprep.subr.mxu0 0.0
  %2756 = vmatpush1.msra.mxu0 %v188
  %2757 = vmatprep.subr.mxu0 0.0
  %2758 = vmatpush2.msra.mxu0 0.0
  %2759 = vmatprep.subr.mxu0 0.0
  %2760 = vmatpush2.msra.mxu0 0.0
  %2761 = vmatprep.subr.mxu0 0.0
  %2762 = vmatpush2.msra.mxu0 0.0
  %2763 = vmatprep.subr.mxu0 0.0
  %2764 = vmatpush2.msra.mxu0 0.0
  %2765 = vmatprep.subr.mxu0 0.0
  %2766 = vmatpush2.msra.mxu0 0.0
  %2767 = vmatprep.subr.mxu0 0.0
  %2768 = vmatpush2.msra.mxu0 0.0
  %2769 = vmatprep.subr.mxu0 0.0
  %2770 = vmatpush2.msra.mxu0 0.0
  %2771 = vmatprep.subr.mxu0 0.0
  %2772 = vmatpush2.msra.mxu0 0.0
  %2773 = vmatprep.subr.mxu0 0.0
  %2774 = vmatpush2.msra.mxu0 0.0
  %2775 = vmatprep.subr.mxu0 0.0
  %2776 = vmatpush2.msra.mxu0 0.0
  %2777 = vmatprep.subr.mxu0 0.0
  %2778 = vmatpush2.msra.mxu0 0.0
  %2779 = vmatprep.subr.mxu0 0.0
  %2780 = vmatpush2.msra.mxu0 0.0
  %2781 = vmatprep.subr.mxu0 0.0
  %2782 = vmatpush2.msra.mxu0 0.0
  %2783 = vmatprep.subr.mxu0 0.0
  %2784 = vmatpush2.msra.mxu0 0.0
  %2785 = vmatprep.subr.mxu0 0.0
  %2786 = vmatpush2.msra.mxu0 0.0
  %2787 = vmatprep.subr.mxu0 0.0
  %2788 = vmatpush2.msra.mxu0 0.0
  %2789 = vmatprep.mubr.f32.mxu0 0.0
  %2790 = vmatmul.mubr.f32.gmra.mxu0 %v2723
  %v2791 = vpop.f32.mrf.mxu0
  %v2792 = vadd.f32 %v163, %v2791
  %v2793 = vpop.f32.mrf.mxu0
  %2794 = vdwg.mxu0
  %2795 = vmatprep.subr.mxu0 0.0
  %2796 = vmatpush1.msra.mxu0 0.0
  %2797 = vmatprep.subr.mxu0 0.0
  %2798 = vmatpush1.msra.mxu0 0.0
  %2799 = vmatprep.subr.mxu0 0.0
  %2800 = vmatpush1.msra.mxu0 0.0
  %2801 = vmatprep.subr.mxu0 0.0
  %2802 = vmatpush1.msra.mxu0 0.0
  %2803 = vmatprep.subr.mxu0 0.0
  %2804 = vmatpush1.msra.mxu0 0.0
  %2805 = vmatprep.subr.mxu0 0.0
  %2806 = vmatpush1.msra.mxu0 0.0
  %2807 = vmatprep.subr.mxu0 0.0
  %2808 = vmatpush1.msra.mxu0 0.0
  %2809 = vmatprep.subr.mxu0 0.0
  %2810 = vmatpush1.msra.mxu0 0.0
  %2811 = vmatprep.subr.mxu0 0.0
  %2812 = vmatpush1.msra.mxu0 0.0
  %2813 = vmatprep.subr.mxu0 0.0
  %2814 = vmatpush1.msra.mxu0 0.0
  %2815 = vmatprep.subr.mxu0 0.0
  %2816 = vmatpush1.msra.mxu0 0.0
  %2817 = vmatprep.subr.mxu0 0.0
  %2818 = vmatpush1.msra.mxu0 0.0
  %2819 = vmatprep.subr.mxu0 0.0
  %2820 = vmatpush1.msra.mxu0 %v567
  %2821 = vmatprep.subr.mxu0 0.0
  %2822 = vmatpush1.msra.mxu0 %v566
  %2823 = vmatprep.subr.mxu0 0.0
  %2824 = vmatpush1.msra.mxu0 %v565
  %2825 = vmatprep.subr.mxu0 0.0
  %2826 = vmatpush1.msra.mxu0 %v564
  %2827 = vmatprep.subr.mxu0 0.0
  %2828 = vmatpush2.msra.mxu0 0.0
  %2829 = vmatprep.subr.mxu0 0.0
  %2830 = vmatpush2.msra.mxu0 0.0
  %2831 = vmatprep.subr.mxu0 0.0
  %2832 = vmatpush2.msra.mxu0 0.0
  %2833 = vmatprep.subr.mxu0 0.0
  %2834 = vmatpush2.msra.mxu0 0.0
  %2835 = vmatprep.subr.mxu0 0.0
  %2836 = vmatpush2.msra.mxu0 0.0
  %2837 = vmatprep.subr.mxu0 0.0
  %2838 = vmatpush2.msra.mxu0 0.0
  %2839 = vmatprep.subr.mxu0 0.0
  %2840 = vmatpush2.msra.mxu0 0.0
  %2841 = vmatprep.subr.mxu0 0.0
  %2842 = vmatpush2.msra.mxu0 0.0
  %2843 = vmatprep.subr.mxu0 0.0
  %2844 = vmatpush2.msra.mxu0 0.0
  %2845 = vmatprep.subr.mxu0 0.0
  %2846 = vmatpush2.msra.mxu0 0.0
  %2847 = vmatprep.subr.mxu0 0.0
  %2848 = vmatpush2.msra.mxu0 0.0
  %2849 = vmatprep.subr.mxu0 0.0
  %2850 = vmatpush2.msra.mxu0 0.0
  %2851 = vmatprep.subr.mxu0 0.0
  %2852 = vmatpush2.msra.mxu0 0.0
  %2853 = vmatprep.subr.mxu0 0.0
  %2854 = vmatpush2.msra.mxu0 0.0
  %2855 = vmatprep.subr.mxu0 0.0
  %2856 = vmatpush2.msra.mxu0 0.0
  %2857 = vmatprep.subr.mxu0 0.0
  %2858 = vmatpush2.msra.mxu0 0.0
  %2859 = vmatprep.mubr.f32.mxu0 0.0
  %2860 = vmatmul.mubr.f32.gmra.mxu0 %v2451
  %v2861 = vpop.f32.mrf.mxu0
  %v2862 = vadd.f32 0.0, %v2861
  %v2863 = vpop.f32.mrf.mxu0
  %2864 = vdwg.mxu0
  %v2865 = vadd.f32 %v2792, %v2862
  %v2866 = vxor.u32 %v2865, 2147483648
  %v2867 = vmul.f32 %v2866, 1.442695
  %v2868 = vpow.pop %v2867
  %v2869 = vadd.f32 %v2868, 1.0
  %v2870 = vrcp.pop %v2869
  %v2871 = vmul.f32 1.0, %v2870
  %v2872 = vmul.f32 %v2871, 2.0
  %v2873 = vsub.f32 %v2872, 1.0
  %v2874 = vmul.f32 %v2871, %v2441
  %2876 = vrot.lane.b32.xlu0 %v2873, 64
  %v2877 = vpop.permute.xlu0 %2876
  %v2879 = vmul.f32 %v2871, %v2877
  %2881 = vrot.lane.b32.xlu0 %v2879, 32
  %v2882 = vpop.permute.xlu0 %2881
  %v2884 = vadd.f32 %v2874, %v2882
  %v2885 = vtanh.pop %v2884
  %2887 = vrot.lane.b32.xlu0 %v2885, 64
  %v2888 = vpop.permute.xlu0 %2887
  %v2890 = vmul.f32 %v2871, %v2888
  %2892 = vrot.lane.b32.xlu0 %v2890, 32
  %v2893 = vpop.permute.xlu0 %2892
  %v2894 = vsel %vm195, %v2893, 0
  %2896 = vmatprep.subr.mxu0 0.0
  %2897 = vmatpush1.msra.mxu0 0.0
  %2898 = vmatprep.subr.mxu0 0.0
  %2899 = vmatpush1.msra.mxu0 0.0
  %2900 = vmatprep.subr.mxu0 0.0
  %2901 = vmatpush1.msra.mxu0 0.0
  %2902 = vmatprep.subr.mxu0 0.0
  %2903 = vmatpush1.msra.mxu0 0.0
  %2904 = vmatprep.subr.mxu0 0.0
  %2905 = vmatpush1.msra.mxu0 0.0
  %2906 = vmatprep.subr.mxu0 0.0
  %2907 = vmatpush1.msra.mxu0 0.0
  %2908 = vmatprep.subr.mxu0 0.0
  %2909 = vmatpush1.msra.mxu0 0.0
  %2910 = vmatprep.subr.mxu0 0.0
  %2911 = vmatpush1.msra.mxu0 0.0
  %2912 = vmatprep.subr.mxu0 0.0
  %2913 = vmatpush1.msra.mxu0 0.0
  %2914 = vmatprep.subr.mxu0 0.0
  %2915 = vmatpush1.msra.mxu0 0.0
  %2916 = vmatprep.subr.mxu0 0.0
  %2917 = vmatpush1.msra.mxu0 0.0
  %2918 = vmatprep.subr.mxu0 0.0
  %2919 = vmatpush1.msra.mxu0 0.0
  %2920 = vmatprep.subr.mxu0 0.0
  %2921 = vmatpush1.msra.mxu0 %v290
  %2922 = vmatprep.subr.mxu0 0.0
  %2923 = vmatpush1.msra.mxu0 %v289
  %2924 = vmatprep.subr.mxu0 0.0
  %2925 = vmatpush1.msra.mxu0 %v288
  %2926 = vmatprep.subr.mxu0 0.0
  %2927 = vmatpush1.msra.mxu0 %v287
  %2928 = vmatprep.subr.mxu0 0.0
  %2929 = vmatpush2.msra.mxu0 0.0
  %2930 = vmatprep.subr.mxu0 0.0
  %2931 = vmatpush2.msra.mxu0 0.0
  %2932 = vmatprep.subr.mxu0 0.0
  %2933 = vmatpush2.msra.mxu0 0.0
  %2934 = vmatprep.subr.mxu0 0.0
  %2935 = vmatpush2.msra.mxu0 0.0
  %2936 = vmatprep.subr.mxu0 0.0
  %2937 = vmatpush2.msra.mxu0 0.0
  %2938 = vmatprep.subr.mxu0 0.0
  %2939 = vmatpush2.msra.mxu0 0.0
  %2940 = vmatprep.subr.mxu0 0.0
  %2941 = vmatpush2.msra.mxu0 0.0
  %2942 = vmatprep.subr.mxu0 0.0
  %2943 = vmatpush2.msra.mxu0 0.0
  %2944 = vmatprep.subr.mxu0 0.0
  %2945 = vmatpush2.msra.mxu0 0.0
  %2946 = vmatprep.subr.mxu0 0.0
  %2947 = vmatpush2.msra.mxu0 0.0
  %2948 = vmatprep.subr.mxu0 0.0
  %2949 = vmatpush2.msra.mxu0 0.0
  %2950 = vmatprep.subr.mxu0 0.0
  %2951 = vmatpush2.msra.mxu0 0.0
  %2952 = vmatprep.subr.mxu0 0.0
  %2953 = vmatpush2.msra.mxu0 0.0
  %2954 = vmatprep.subr.mxu0 0.0
  %2955 = vmatpush2.msra.mxu0 0.0
  %2956 = vmatprep.subr.mxu0 0.0
  %2957 = vmatpush2.msra.mxu0 0.0
  %2958 = vmatprep.subr.mxu0 0.0
  %2959 = vmatpush2.msra.mxu0 0.0
  %2960 = vmatprep.mubr.f32.mxu0 0.0
  %2961 = vmatmul.mubr.f32.gmra.mxu0 %v2894
  %v2962 = vpop.f32.mrf.mxu0
  %v2963 = vadd.f32 %v168, %v2962
  %v2964 = vpop.f32.mrf.mxu0
  %2965 = vdwg.mxu0
  %2967 = vrot.lane.b32.xlu0 %v2623, 32
  %v2968 = vpop.permute.xlu0 %2967
  %v2969 = vsel %vm195, %v2968, 0
  %2971 = vmatprep.subr.mxu0 0.0
  %2972 = vmatpush1.msra.mxu0 0.0
  %2973 = vmatprep.subr.mxu0 0.0
  %2974 = vmatpush1.msra.mxu0 0.0
  %2975 = vmatprep.subr.mxu0 0.0
  %2976 = vmatpush1.msra.mxu0 0.0
  %2977 = vmatprep.subr.mxu0 0.0
  %2978 = vmatpush1.msra.mxu0 0.0
  %2979 = vmatprep.subr.mxu0 0.0
  %2980 = vmatpush1.msra.mxu0 0.0
  %2981 = vmatprep.subr.mxu0 0.0
  %2982 = vmatpush1.msra.mxu0 0.0
  %2983 = vmatprep.subr.mxu0 0.0
  %2984 = vmatpush1.msra.mxu0 0.0
  %2985 = vmatprep.subr.mxu0 0.0
  %2986 = vmatpush1.msra.mxu0 0.0
  %2987 = vmatprep.subr.mxu0 0.0
  %2988 = vmatpush1.msra.mxu0 0.0
  %2989 = vmatprep.subr.mxu0 0.0
  %2990 = vmatpush1.msra.mxu0 0.0
  %2991 = vmatprep.subr.mxu0 0.0
  %2992 = vmatpush1.msra.mxu0 0.0
  %2993 = vmatprep.subr.mxu0 0.0
  %2994 = vmatpush1.msra.mxu0 0.0
  %2995 = vmatprep.subr.mxu0 0.0
  %2996 = vmatpush1.msra.mxu0 %v746
  %2997 = vmatprep.subr.mxu0 0.0
  %2998 = vmatpush1.msra.mxu0 %v745
  %2999 = vmatprep.subr.mxu0 0.0
  %3000 = vmatpush1.msra.mxu0 %v744
  %3001 = vmatprep.subr.mxu0 0.0
  %3002 = vmatpush1.msra.mxu0 %v743
  %3003 = vmatprep.subr.mxu0 0.0
  %3004 = vmatpush2.msra.mxu0 0.0
  %3005 = vmatprep.subr.mxu0 0.0
  %3006 = vmatpush2.msra.mxu0 0.0
  %3007 = vmatprep.subr.mxu0 0.0
  %3008 = vmatpush2.msra.mxu0 0.0
  %3009 = vmatprep.subr.mxu0 0.0
  %3010 = vmatpush2.msra.mxu0 0.0
  %3011 = vmatprep.subr.mxu0 0.0
  %3012 = vmatpush2.msra.mxu0 0.0
  %3013 = vmatprep.subr.mxu0 0.0
  %3014 = vmatpush2.msra.mxu0 0.0
  %3015 = vmatprep.subr.mxu0 0.0
  %3016 = vmatpush2.msra.mxu0 0.0
  %3017 = vmatprep.subr.mxu0 0.0
  %3018 = vmatpush2.msra.mxu0 0.0
  %3019 = vmatprep.subr.mxu0 0.0
  %3020 = vmatpush2.msra.mxu0 0.0
  %3021 = vmatprep.subr.mxu0 0.0
  %3022 = vmatpush2.msra.mxu0 0.0
  %3023 = vmatprep.subr.mxu0 0.0
  %3024 = vmatpush2.msra.mxu0 0.0
  %3025 = vmatprep.subr.mxu0 0.0
  %3026 = vmatpush2.msra.mxu0 0.0
  %3027 = vmatprep.subr.mxu0 0.0
  %3028 = vmatpush2.msra.mxu0 0.0
  %3029 = vmatprep.subr.mxu0 0.0
  %3030 = vmatpush2.msra.mxu0 0.0
  %3031 = vmatprep.subr.mxu0 0.0
  %3032 = vmatpush2.msra.mxu0 0.0
  %3033 = vmatprep.subr.mxu0 0.0
  %3034 = vmatpush2.msra.mxu0 0.0
  %3035 = vmatprep.mubr.f32.mxu0 0.0
  %3036 = vmatmul.mubr.f32.gmra.mxu0 %v2969
  %v3037 = vpop.f32.mrf.mxu0
  %v3038 = vadd.f32 0.0, %v3037
  %v3039 = vpop.f32.mrf.mxu0
  %3040 = vdwg.mxu0
  %v3041 = vadd.f32 %v2963, %v3038
  %v3042 = vxor.u32 %v3041, 2147483648
  %v3043 = vmul.f32 %v3042, 1.442695
  %v3044 = vpow.pop %v3043
  %v3045 = vadd.f32 %v3044, 1.0
  %v3046 = vrcp.pop %v3045
  %v3047 = vmul.f32 1.0, %v3046
  %v3048 = vmul.f32 %v3047, 2.0
  %v3049 = vsub.f32 %v3048, 1.0
  %v3050 = vmul.f32 %v3047, %v2617
  %3052 = vrot.lane.b32.xlu0 %v3049, 64
  %v3053 = vpop.permute.xlu0 %3052
  %v3055 = vmul.f32 %v3047, %v3053
  %3057 = vrot.lane.b32.xlu0 %v3055, 32
  %v3058 = vpop.permute.xlu0 %3057
  %v3060 = vadd.f32 %v3050, %v3058
  %v3061 = vtanh.pop %v3060
  %3063 = vrot.lane.b32.xlu0 %v3061, 64
  %v3064 = vpop.permute.xlu0 %3063
  %v3066 = vmul.f32 %v3047, %v3064
  %3067 = vmatprep.subr.mxu0 0.0
  %3068 = vmatpush1.msra.mxu0 0.0
  %3069 = vmatprep.subr.mxu0 0.0
  %3070 = vmatpush1.msra.mxu0 0.0
  %3071 = vmatprep.subr.mxu0 0.0
  %3072 = vmatpush1.msra.mxu0 0.0
  %3073 = vmatprep.subr.mxu0 0.0
  %3074 = vmatpush1.msra.mxu0 0.0
  %3075 = vmatprep.subr.mxu0 0.0
  %3076 = vmatpush1.msra.mxu0 0.0
  %3077 = vmatprep.subr.mxu0 0.0
  %3078 = vmatpush1.msra.mxu0 0.0
  %3079 = vmatprep.subr.mxu0 0.0
  %3080 = vmatpush1.msra.mxu0 0.0
  %3081 = vmatprep.subr.mxu0 0.0
  %3082 = vmatpush1.msra.mxu0 0.0
  %3083 = vmatprep.subr.mxu0 0.0
  %3084 = vmatpush1.msra.mxu0 0.0
  %3085 = vmatprep.subr.mxu0 0.0
  %3086 = vmatpush1.msra.mxu0 0.0
  %3087 = vmatprep.subr.mxu0 0.0
  %3088 = vmatpush1.msra.mxu0 0.0
  %3089 = vmatprep.subr.mxu0 0.0
  %3090 = vmatpush1.msra.mxu0 0.0
  %3091 = vmatprep.subr.mxu0 0.0
  %3092 = vmatpush1.msra.mxu0 %v388
  %3093 = vmatprep.subr.mxu0 0.0
  %3094 = vmatpush1.msra.mxu0 %v387
  %3095 = vmatprep.subr.mxu0 0.0
  %3096 = vmatpush1.msra.mxu0 %v386
  %3097 = vmatprep.subr.mxu0 0.0
  %3098 = vmatpush1.msra.mxu0 %v385
  %3099 = vmatprep.subr.mxu0 0.0
  %3100 = vmatpush2.msra.mxu0 0.0
  %3101 = vmatprep.subr.mxu0 0.0
  %3102 = vmatpush2.msra.mxu0 0.0
  %3103 = vmatprep.subr.mxu0 0.0
  %3104 = vmatpush2.msra.mxu0 0.0
  %3105 = vmatprep.subr.mxu0 0.0
  %3106 = vmatpush2.msra.mxu0 0.0
  %3107 = vmatprep.subr.mxu0 0.0
  %3108 = vmatpush2.msra.mxu0 0.0
  %3109 = vmatprep.subr.mxu0 0.0
  %3110 = vmatpush2.msra.mxu0 0.0
  %3111 = vmatprep.subr.mxu0 0.0
  %3112 = vmatpush2.msra.mxu0 0.0
  %3113 = vmatprep.subr.mxu0 0.0
  %3114 = vmatpush2.msra.mxu0 0.0
  %3115 = vmatprep.subr.mxu0 0.0
  %3116 = vmatpush2.msra.mxu0 0.0
  %3117 = vmatprep.subr.mxu0 0.0
  %3118 = vmatpush2.msra.mxu0 0.0
  %3119 = vmatprep.subr.mxu0 0.0
  %3120 = vmatpush2.msra.mxu0 0.0
  %3121 = vmatprep.subr.mxu0 0.0
  %3122 = vmatpush2.msra.mxu0 0.0
  %3123 = vmatprep.subr.mxu0 0.0
  %3124 = vmatpush2.msra.mxu0 0.0
  %3125 = vmatprep.subr.mxu0 0.0
  %3126 = vmatpush2.msra.mxu0 0.0
  %3127 = vmatprep.subr.mxu0 0.0
  %3128 = vmatpush2.msra.mxu0 0.0
  %3129 = vmatprep.subr.mxu0 0.0
  %3130 = vmatpush2.msra.mxu0 0.0
  %3131 = vmatprep.mubr.f32.mxu0 0.0
  %3132 = vmatmul.mubr.f32.gmra.mxu0 %v2723
  %v3133 = vpop.f32.mrf.mxu0
  %v3134 = vadd.f32 0.0, %v3133
  %v3135 = vpop.f32.mrf.mxu0
  %3136 = vdwg.mxu0
  %v3137 = vadd.f32 %v156, %v3134
  %v3138 = vxor.u32 %v3137, 2147483648
  %v3139 = vmul.f32 %v3138, 1.442695
  %v3140 = vpow.pop %v3139
  %v3141 = vadd.f32 %v3140, 1.0
  %v3142 = vrcp.pop %v3141
  %v3143 = vmul.f32 1.0, %v3142
  %v3144 = vmul.f32 %v3143, 2.0
  %v3145 = vsub.f32 %v3144, 1.0
  %v3146 = vmul.f32 %v3143, %v2713
  %3148 = vrot.lane.b32.xlu0 %v3145, 64
  %v3149 = vpop.permute.xlu0 %3148
  %v3151 = vmul.f32 %v3143, %v3149
  %3153 = vrot.lane.b32.xlu0 %v3151, 32
  %v3154 = vpop.permute.xlu0 %3153
  %v3156 = vadd.f32 %v3146, %v3154
  %v3157 = vtanh.pop %v3156
  %3159 = vrot.lane.b32.xlu0 %v3157, 64
  %v3160 = vpop.permute.xlu0 %3159
  %v3162 = vmul.f32 %v3143, %v3160
  %3164 = vrot.lane.b32.xlu0 %v3162, 32
  %v3165 = vpop.permute.xlu0 %3164
  %v3166 = vsel %vm195, %v3165, 0
  %3168 = vmatprep.subr.mxu0 0.0
  %3169 = vmatpush1.msra.mxu0 0.0
  %3170 = vmatprep.subr.mxu0 0.0
  %3171 = vmatpush1.msra.mxu0 0.0
  %3172 = vmatprep.subr.mxu0 0.0
  %3173 = vmatpush1.msra.mxu0 0.0
  %3174 = vmatprep.subr.mxu0 0.0
  %3175 = vmatpush1.msra.mxu0 0.0
  %3176 = vmatprep.subr.mxu0 0.0
  %3177 = vmatpush1.msra.mxu0 0.0
  %3178 = vmatprep.subr.mxu0 0.0
  %3179 = vmatpush1.msra.mxu0 0.0
  %3180 = vmatprep.subr.mxu0 0.0
  %3181 = vmatpush1.msra.mxu0 0.0
  %3182 = vmatprep.subr.mxu0 0.0
  %3183 = vmatpush1.msra.mxu0 0.0
  %3184 = vmatprep.subr.mxu0 0.0
  %3185 = vmatpush1.msra.mxu0 0.0
  %3186 = vmatprep.subr.mxu0 0.0
  %3187 = vmatpush1.msra.mxu0 0.0
  %3188 = vmatprep.subr.mxu0 0.0
  %3189 = vmatpush1.msra.mxu0 0.0
  %3190 = vmatprep.subr.mxu0 0.0
  %3191 = vmatpush1.msra.mxu0 0.0
  %3192 = vmatprep.subr.mxu0 0.0
  %3193 = vmatpush1.msra.mxu0 %v191
  %3194 = vmatprep.subr.mxu0 0.0
  %3195 = vmatpush1.msra.mxu0 %v190
  %3196 = vmatprep.subr.mxu0 0.0
  %3197 = vmatpush1.msra.mxu0 %v189
  %3198 = vmatprep.subr.mxu0 0.0
  %3199 = vmatpush1.msra.mxu0 %v188
  %3200 = vmatprep.subr.mxu0 0.0
  %3201 = vmatpush2.msra.mxu0 0.0
  %3202 = vmatprep.subr.mxu0 0.0
  %3203 = vmatpush2.msra.mxu0 0.0
  %3204 = vmatprep.subr.mxu0 0.0
  %3205 = vmatpush2.msra.mxu0 0.0
  %3206 = vmatprep.subr.mxu0 0.0
  %3207 = vmatpush2.msra.mxu0 0.0
  %3208 = vmatprep.subr.mxu0 0.0
  %3209 = vmatpush2.msra.mxu0 0.0
  %3210 = vmatprep.subr.mxu0 0.0
  %3211 = vmatpush2.msra.mxu0 0.0
  %3212 = vmatprep.subr.mxu0 0.0
  %3213 = vmatpush2.msra.mxu0 0.0
  %3214 = vmatprep.subr.mxu0 0.0
  %3215 = vmatpush2.msra.mxu0 0.0
  %3216 = vmatprep.subr.mxu0 0.0
  %3217 = vmatpush2.msra.mxu0 0.0
  %3218 = vmatprep.subr.mxu0 0.0
  %3219 = vmatpush2.msra.mxu0 0.0
  %3220 = vmatprep.subr.mxu0 0.0
  %3221 = vmatpush2.msra.mxu0 0.0
  %3222 = vmatprep.subr.mxu0 0.0
  %3223 = vmatpush2.msra.mxu0 0.0
  %3224 = vmatprep.subr.mxu0 0.0
  %3225 = vmatpush2.msra.mxu0 0.0
  %3226 = vmatprep.subr.mxu0 0.0
  %3227 = vmatpush2.msra.mxu0 0.0
  %3228 = vmatprep.subr.mxu0 0.0
  %3229 = vmatpush2.msra.mxu0 0.0
  %3230 = vmatprep.subr.mxu0 0.0
  %3231 = vmatpush2.msra.mxu0 0.0
  %3232 = vmatprep.mubr.f32.mxu0 0.0
  %3233 = vmatmul.mubr.f32.gmra.mxu0 %v3166
  %v3234 = vpop.f32.mrf.mxu0
  %v3235 = vadd.f32 %v163, %v3234
  %v3236 = vpop.f32.mrf.mxu0
  %3237 = vdwg.mxu0
  %3238 = vmatprep.subr.mxu0 0.0
  %3239 = vmatpush1.msra.mxu0 0.0
  %3240 = vmatprep.subr.mxu0 0.0
  %3241 = vmatpush1.msra.mxu0 0.0
  %3242 = vmatprep.subr.mxu0 0.0
  %3243 = vmatpush1.msra.mxu0 0.0
  %3244 = vmatprep.subr.mxu0 0.0
  %3245 = vmatpush1.msra.mxu0 0.0
  %3246 = vmatprep.subr.mxu0 0.0
  %3247 = vmatpush1.msra.mxu0 0.0
  %3248 = vmatprep.subr.mxu0 0.0
  %3249 = vmatpush1.msra.mxu0 0.0
  %3250 = vmatprep.subr.mxu0 0.0
  %3251 = vmatpush1.msra.mxu0 0.0
  %3252 = vmatprep.subr.mxu0 0.0
  %3253 = vmatpush1.msra.mxu0 0.0
  %3254 = vmatprep.subr.mxu0 0.0
  %3255 = vmatpush1.msra.mxu0 0.0
  %3256 = vmatprep.subr.mxu0 0.0
  %3257 = vmatpush1.msra.mxu0 0.0
  %3258 = vmatprep.subr.mxu0 0.0
  %3259 = vmatpush1.msra.mxu0 0.0
  %3260 = vmatprep.subr.mxu0 0.0
  %3261 = vmatpush1.msra.mxu0 0.0
  %3262 = vmatprep.subr.mxu0 0.0
  %3263 = vmatpush1.msra.mxu0 %v567
  %3264 = vmatprep.subr.mxu0 0.0
  %3265 = vmatpush1.msra.mxu0 %v566
  %3266 = vmatprep.subr.mxu0 0.0
  %3267 = vmatpush1.msra.mxu0 %v565
  %3268 = vmatprep.subr.mxu0 0.0
  %3269 = vmatpush1.msra.mxu0 %v564
  %3270 = vmatprep.subr.mxu0 0.0
  %3271 = vmatpush2.msra.mxu0 0.0
  %3272 = vmatprep.subr.mxu0 0.0
  %3273 = vmatpush2.msra.mxu0 0.0
  %3274 = vmatprep.subr.mxu0 0.0
  %3275 = vmatpush2.msra.mxu0 0.0
  %3276 = vmatprep.subr.mxu0 0.0
  %3277 = vmatpush2.msra.mxu0 0.0
  %3278 = vmatprep.subr.mxu0 0.0
  %3279 = vmatpush2.msra.mxu0 0.0
  %3280 = vmatprep.subr.mxu0 0.0
  %3281 = vmatpush2.msra.mxu0 0.0
  %3282 = vmatprep.subr.mxu0 0.0
  %3283 = vmatpush2.msra.mxu0 0.0
  %3284 = vmatprep.subr.mxu0 0.0
  %3285 = vmatpush2.msra.mxu0 0.0
  %3286 = vmatprep.subr.mxu0 0.0
  %3287 = vmatpush2.msra.mxu0 0.0
  %3288 = vmatprep.subr.mxu0 0.0
  %3289 = vmatpush2.msra.mxu0 0.0
  %3290 = vmatprep.subr.mxu0 0.0
  %3291 = vmatpush2.msra.mxu0 0.0
  %3292 = vmatprep.subr.mxu0 0.0
  %3293 = vmatpush2.msra.mxu0 0.0
  %3294 = vmatprep.subr.mxu0 0.0
  %3295 = vmatpush2.msra.mxu0 0.0
  %3296 = vmatprep.subr.mxu0 0.0
  %3297 = vmatpush2.msra.mxu0 0.0
  %3298 = vmatprep.subr.mxu0 0.0
  %3299 = vmatpush2.msra.mxu0 0.0
  %3300 = vmatprep.subr.mxu0 0.0
  %3301 = vmatpush2.msra.mxu0 0.0
  %3302 = vmatprep.mubr.f32.mxu0 0.0
  %3303 = vmatmul.mubr.f32.gmra.mxu0 %v2894
  %v3304 = vpop.f32.mrf.mxu0
  %v3305 = vadd.f32 0.0, %v3304
  %v3306 = vpop.f32.mrf.mxu0
  %3307 = vdwg.mxu0
  %v3308 = vadd.f32 %v3235, %v3305
  %v3309 = vxor.u32 %v3308, 2147483648
  %v3310 = vmul.f32 %v3309, 1.442695
  %v3311 = vpow.pop %v3310
  %v3312 = vadd.f32 %v3311, 1.0
  %v3313 = vrcp.pop %v3312
  %v3314 = vmul.f32 1.0, %v3313
  %v3315 = vmul.f32 %v3314, 2.0
  %v3316 = vsub.f32 %v3315, 1.0
  %v3317 = vmul.f32 %v3314, %v2884
  %3319 = vrot.lane.b32.xlu0 %v3316, 64
  %v3320 = vpop.permute.xlu0 %3319
  %v3322 = vmul.f32 %v3314, %v3320
  %3324 = vrot.lane.b32.xlu0 %v3322, 32
  %v3325 = vpop.permute.xlu0 %3324
  %v3327 = vadd.f32 %v3317, %v3325
  %v3328 = vtanh.pop %v3327
  %3330 = vrot.lane.b32.xlu0 %v3328, 64
  %v3331 = vpop.permute.xlu0 %3330
  %v3333 = vmul.f32 %v3314, %v3331
  %3335 = vrot.lane.b32.xlu0 %v3333, 32
  %v3336 = vpop.permute.xlu0 %3335
  %v3337 = vsel %vm195, %v3336, 0
  %3339 = vmatprep.subr.mxu0 0.0
  %3340 = vmatpush1.msra.mxu0 0.0
  %3341 = vmatprep.subr.mxu0 0.0
  %3342 = vmatpush1.msra.mxu0 0.0
  %3343 = vmatprep.subr.mxu0 0.0
  %3344 = vmatpush1.msra.mxu0 0.0
  %3345 = vmatprep.subr.mxu0 0.0
  %3346 = vmatpush1.msra.mxu0 0.0
  %3347 = vmatprep.subr.mxu0 0.0
  %3348 = vmatpush1.msra.mxu0 0.0
  %3349 = vmatprep.subr.mxu0 0.0
  %3350 = vmatpush1.msra.mxu0 0.0
  %3351 = vmatprep.subr.mxu0 0.0
  %3352 = vmatpush1.msra.mxu0 0.0
  %3353 = vmatprep.subr.mxu0 0.0
  %3354 = vmatpush1.msra.mxu0 0.0
  %3355 = vmatprep.subr.mxu0 0.0
  %3356 = vmatpush1.msra.mxu0 0.0
  %3357 = vmatprep.subr.mxu0 0.0
  %3358 = vmatpush1.msra.mxu0 0.0
  %3359 = vmatprep.subr.mxu0 0.0
  %3360 = vmatpush1.msra.mxu0 0.0
  %3361 = vmatprep.subr.mxu0 0.0
  %3362 = vmatpush1.msra.mxu0 0.0
  %3363 = vmatprep.subr.mxu0 0.0
  %3364 = vmatpush1.msra.mxu0 %v290
  %3365 = vmatprep.subr.mxu0 0.0
  %3366 = vmatpush1.msra.mxu0 %v289
  %3367 = vmatprep.subr.mxu0 0.0
  %3368 = vmatpush1.msra.mxu0 %v288
  %3369 = vmatprep.subr.mxu0 0.0
  %3370 = vmatpush1.msra.mxu0 %v287
  %3371 = vmatprep.subr.mxu0 0.0
  %3372 = vmatpush2.msra.mxu0 0.0
  %3373 = vmatprep.subr.mxu0 0.0
  %3374 = vmatpush2.msra.mxu0 0.0
  %3375 = vmatprep.subr.mxu0 0.0
  %3376 = vmatpush2.msra.mxu0 0.0
  %3377 = vmatprep.subr.mxu0 0.0
  %3378 = vmatpush2.msra.mxu0 0.0
  %3379 = vmatprep.subr.mxu0 0.0
  %3380 = vmatpush2.msra.mxu0 0.0
  %3381 = vmatprep.subr.mxu0 0.0
  %3382 = vmatpush2.msra.mxu0 0.0
  %3383 = vmatprep.subr.mxu0 0.0
  %3384 = vmatpush2.msra.mxu0 0.0
  %3385 = vmatprep.subr.mxu0 0.0
  %3386 = vmatpush2.msra.mxu0 0.0
  %3387 = vmatprep.subr.mxu0 0.0
  %3388 = vmatpush2.msra.mxu0 0.0
  %3389 = vmatprep.subr.mxu0 0.0
  %3390 = vmatpush2.msra.mxu0 0.0
  %3391 = vmatprep.subr.mxu0 0.0
  %3392 = vmatpush2.msra.mxu0 0.0
  %3393 = vmatprep.subr.mxu0 0.0
  %3394 = vmatpush2.msra.mxu0 0.0
  %3395 = vmatprep.subr.mxu0 0.0
  %3396 = vmatpush2.msra.mxu0 0.0
  %3397 = vmatprep.subr.mxu0 0.0
  %3398 = vmatpush2.msra.mxu0 0.0
  %3399 = vmatprep.subr.mxu0 0.0
  %3400 = vmatpush2.msra.mxu0 0.0
  %3401 = vmatprep.subr.mxu0 0.0
  %3402 = vmatpush2.msra.mxu0 0.0
  %3403 = vmatprep.mubr.f32.mxu0 0.0
  %3404 = vmatmul.mubr.f32.gmra.mxu0 %v3337
  %v3405 = vpop.f32.mrf.mxu0
  %v3406 = vadd.f32 %v168, %v3405
  %v3407 = vpop.f32.mrf.mxu0
  %3408 = vdwg.mxu0
  %3410 = vrot.lane.b32.xlu0 %v3066, 32
  %v3411 = vpop.permute.xlu0 %3410
  %v3412 = vsel %vm195, %v3411, 0
  %3414 = vmatprep.subr.mxu0 0.0
  %3415 = vmatpush1.msra.mxu0 0.0
  %3416 = vmatprep.subr.mxu0 0.0
  %3417 = vmatpush1.msra.mxu0 0.0
  %3418 = vmatprep.subr.mxu0 0.0
  %3419 = vmatpush1.msra.mxu0 0.0
  %3420 = vmatprep.subr.mxu0 0.0
  %3421 = vmatpush1.msra.mxu0 0.0
  %3422 = vmatprep.subr.mxu0 0.0
  %3423 = vmatpush1.msra.mxu0 0.0
  %3424 = vmatprep.subr.mxu0 0.0
  %3425 = vmatpush1.msra.mxu0 0.0
  %3426 = vmatprep.subr.mxu0 0.0
  %3427 = vmatpush1.msra.mxu0 0.0
  %3428 = vmatprep.subr.mxu0 0.0
  %3429 = vmatpush1.msra.mxu0 0.0
  %3430 = vmatprep.subr.mxu0 0.0
  %3431 = vmatpush1.msra.mxu0 0.0
  %3432 = vmatprep.subr.mxu0 0.0
  %3433 = vmatpush1.msra.mxu0 0.0
  %3434 = vmatprep.subr.mxu0 0.0
  %3435 = vmatpush1.msra.mxu0 0.0
  %3436 = vmatprep.subr.mxu0 0.0
  %3437 = vmatpush1.msra.mxu0 0.0
  %3438 = vmatprep.subr.mxu0 0.0
  %3439 = vmatpush1.msra.mxu0 %v746
  %3440 = vmatprep.subr.mxu0 0.0
  %3441 = vmatpush1.msra.mxu0 %v745
  %3442 = vmatprep.subr.mxu0 0.0
  %3443 = vmatpush1.msra.mxu0 %v744
  %3444 = vmatprep.subr.mxu0 0.0
  %3445 = vmatpush1.msra.mxu0 %v743
  %3446 = vmatprep.subr.mxu0 0.0
  %3447 = vmatpush2.msra.mxu0 0.0
  %3448 = vmatprep.subr.mxu0 0.0
  %3449 = vmatpush2.msra.mxu0 0.0
  %3450 = vmatprep.subr.mxu0 0.0
  %3451 = vmatpush2.msra.mxu0 0.0
  %3452 = vmatprep.subr.mxu0 0.0
  %3453 = vmatpush2.msra.mxu0 0.0
  %3454 = vmatprep.subr.mxu0 0.0
  %3455 = vmatpush2.msra.mxu0 0.0
  %3456 = vmatprep.subr.mxu0 0.0
  %3457 = vmatpush2.msra.mxu0 0.0
  %3458 = vmatprep.subr.mxu0 0.0
  %3459 = vmatpush2.msra.mxu0 0.0
  %3460 = vmatprep.subr.mxu0 0.0
  %3461 = vmatpush2.msra.mxu0 0.0
  %3462 = vmatprep.subr.mxu0 0.0
  %3463 = vmatpush2.msra.mxu0 0.0
  %3464 = vmatprep.subr.mxu0 0.0
  %3465 = vmatpush2.msra.mxu0 0.0
  %3466 = vmatprep.subr.mxu0 0.0
  %3467 = vmatpush2.msra.mxu0 0.0
  %3468 = vmatprep.subr.mxu0 0.0
  %3469 = vmatpush2.msra.mxu0 0.0
  %3470 = vmatprep.subr.mxu0 0.0
  %3471 = vmatpush2.msra.mxu0 0.0
  %3472 = vmatprep.subr.mxu0 0.0
  %3473 = vmatpush2.msra.mxu0 0.0
  %3474 = vmatprep.subr.mxu0 0.0
  %3475 = vmatpush2.msra.mxu0 0.0
  %3476 = vmatprep.subr.mxu0 0.0
  %3477 = vmatpush2.msra.mxu0 0.0
  %3478 = vmatprep.mubr.f32.mxu0 0.0
  %3479 = vmatmul.mubr.f32.gmra.mxu0 %v3412
  %v3480 = vpop.f32.mrf.mxu0
  %v3481 = vadd.f32 0.0, %v3480
  %v3482 = vpop.f32.mrf.mxu0
  %3483 = vdwg.mxu0
  %v3484 = vadd.f32 %v3406, %v3481
  %v3485 = vxor.u32 %v3484, 2147483648
  %v3486 = vmul.f32 %v3485, 1.442695
  %v3487 = vpow.pop %v3486
  %v3488 = vadd.f32 %v3487, 1.0
  %v3489 = vrcp.pop %v3488
  %v3490 = vmul.f32 1.0, %v3489
  %v3491 = vmul.f32 %v3490, 2.0
  %v3492 = vsub.f32 %v3491, 1.0
  %v3493 = vmul.f32 %v3490, %v3060
  %3495 = vrot.lane.b32.xlu0 %v3492, 64
  %v3496 = vpop.permute.xlu0 %3495
  %v3498 = vmul.f32 %v3490, %v3496
  %3500 = vrot.lane.b32.xlu0 %v3498, 32
  %v3501 = vpop.permute.xlu0 %3500
  %v3503 = vadd.f32 %v3493, %v3501
  %v3504 = vtanh.pop %v3503
  %3506 = vrot.lane.b32.xlu0 %v3504, 64
  %v3507 = vpop.permute.xlu0 %3506
  %v3509 = vmul.f32 %v3490, %v3507
  %3511 = vrot.lane.b32.xlu0 %v3509, 32
  %v3512 = vpop.permute.xlu0 %3511
  %v3514 = vsel %vm195, %v3512, 0.0
  %3515 = vadd.xlane.f32.xlu0 %v3514
  %v3516 = vpop.xlane.xlu0 %3515
  %v3517 = vrcp.pop 32.0
  %v3518 = vmul.f32 %v3516, %v3517
  %v3519 = vsub.f32 %v3509, %v3518
  %v3520 = vmul.f32 %v3519, %v3519
  %3522 = vrot.lane.b32.xlu0 %v3520, 32
  %v3523 = vpop.permute.xlu0 %3522
  %v3525 = vsel %vm195, %v3523, 0.0
  %3526 = vadd.xlane.f32.xlu0 %v3525
  %v3527 = vpop.xlane.xlu0 %3526
  %v3528 = vmul.f32 %v3527, %v3517
  %v3529 = vld [vmem:[%s1 + $0xb0] sm:$0x1]
  %v3530 = vld [vmem:[%s1 + $0xb1] sm:$0x1]
  %v3531 = vadd.f32 %v3528, 1e-05
  %v3532 = vrsqrt.pop %v3531
  %v3533 = vmul.f32 %v3519, %v3532
  %v3534 = vlaneseq
  %v3535 = vshrl.u32 %v3534, 7
  %v3536 = vsub.s32 0, %v3535
  %v3537 = vrot.slane %v3529, %v3536
  %3539 = vrot.lane.b32.xlu0 %v3537, 96
  %v3540 = vpop.permute.xlu0 %3539
  %v3542 = vmul.f32 %v3533, %v3540
  %v3543 = vlaneseq
  %v3544 = vshrl.u32 %v3543, 7
  %v3545 = vsub.s32 0, %v3544
  %v3546 = vrot.slane %v3530, %v3545
  %3548 = vrot.lane.b32.xlu0 %v3546, 96
  %v3549 = vpop.permute.xlu0 %3548
  %v3551 = vadd.f32 %v3542, %v3549
  %v3552 = vld [vmem:[%s1 + $0xb8] sm:$0xff]
  %v3553 = vld [vmem:[%s1 + $0xc0] sm:$0xff]
  %v3554 = vld [vmem:[%s1 + $0xc8] sm:$0xff]
  %v3555 = vld [vmem:[%s1 + $0xd0] sm:$0xff]
  %v3556 = vld [vmem:[%s1 + $0xb2] sm:$0x1]
  %v3557 = vlaneseq
  %v3558 = vshrl.u32 %v3557, 7
  %v3559 = vsub.s32 0, %v3558
  %v3560 = vrot.slane %v3556, %v3559
  %3562 = vrot.lane.b32.xlu0 %v3551, 32
  %v3563 = vpop.permute.xlu0 %3562
  %v3564 = vsel %vm195, %v3563, 0
  %3566 = vmatprep.subr.mxu0 0.0
  %3567 = vmatpush1.msra.mxu0 0.0
  %3568 = vmatprep.subr.mxu0 0.0
  %3569 = vmatpush1.msra.mxu0 0.0
  %3570 = vmatprep.subr.mxu0 0.0
  %3571 = vmatpush1.msra.mxu0 0.0
  %3572 = vmatprep.subr.mxu0 0.0
  %3573 = vmatpush1.msra.mxu0 0.0
  %3574 = vmatprep.subr.mxu0 0.0
  %3575 = vmatpush1.msra.mxu0 0.0
  %3576 = vmatprep.subr.mxu0 0.0
  %3577 = vmatpush1.msra.mxu0 0.0
  %3578 = vmatprep.subr.mxu0 0.0
  %3579 = vmatpush1.msra.mxu0 0.0
  %3580 = vmatprep.subr.mxu0 0.0
  %3581 = vmatpush1.msra.mxu0 0.0
  %3582 = vmatprep.subr.mxu0 0.0
  %3583 = vmatpush1.msra.mxu0 0.0
  %3584 = vmatprep.subr.mxu0 0.0
  %3585 = vmatpush1.msra.mxu0 0.0
  %3586 = vmatprep.subr.mxu0 0.0
  %3587 = vmatpush1.msra.mxu0 0.0
  %3588 = vmatprep.subr.mxu0 0.0
  %3589 = vmatpush1.msra.mxu0 0.0
  %3590 = vmatprep.subr.mxu0 0.0
  %3591 = vmatpush1.msra.mxu0 %v3555
  %3592 = vmatprep.subr.mxu0 0.0
  %3593 = vmatpush1.msra.mxu0 %v3554
  %3594 = vmatprep.subr.mxu0 0.0
  %3595 = vmatpush1.msra.mxu0 %v3553
  %3596 = vmatprep.subr.mxu0 0.0
  %3597 = vmatpush1.msra.mxu0 %v3552
  %3598 = vmatprep.subr.mxu0 0.0
  %3599 = vmatpush2.msra.mxu0 0.0
  %3600 = vmatprep.subr.mxu0 0.0
  %3601 = vmatpush2.msra.mxu0 0.0
  %3602 = vmatprep.subr.mxu0 0.0
  %3603 = vmatpush2.msra.mxu0 0.0
  %3604 = vmatprep.subr.mxu0 0.0
  %3605 = vmatpush2.msra.mxu0 0.0
  %3606 = vmatprep.subr.mxu0 0.0
  %3607 = vmatpush2.msra.mxu0 0.0
  %3608 = vmatprep.subr.mxu0 0.0
  %3609 = vmatpush2.msra.mxu0 0.0
  %3610 = vmatprep.subr.mxu0 0.0
  %3611 = vmatpush2.msra.mxu0 0.0
  %3612 = vmatprep.subr.mxu0 0.0
  %3613 = vmatpush2.msra.mxu0 0.0
  %3614 = vmatprep.subr.mxu0 0.0
  %3615 = vmatpush2.msra.mxu0 0.0
  %3616 = vmatprep.subr.mxu0 0.0
  %3617 = vmatpush2.msra.mxu0 0.0
  %3618 = vmatprep.subr.mxu0 0.0
  %3619 = vmatpush2.msra.mxu0 0.0
  %3620 = vmatprep.subr.mxu0 0.0
  %3621 = vmatpush2.msra.mxu0 0.0
  %3622 = vmatprep.subr.mxu0 0.0
  %3623 = vmatpush2.msra.mxu0 0.0
  %3624 = vmatprep.subr.mxu0 0.0
  %3625 = vmatpush2.msra.mxu0 0.0
  %3626 = vmatprep.subr.mxu0 0.0
  %3627 = vmatpush2.msra.mxu0 0.0
  %3628 = vmatprep.subr.mxu0 0.0
  %3629 = vmatpush2.msra.mxu0 0.0
  %3630 = vmatprep.mubr.f32.mxu0 0.0
  %3631 = vmatmul.mubr.f32.gmra.mxu0 %v3564
  %v3632 = vpop.f32.mrf.mxu0
  %v3633 = vadd.f32 %v3560, %v3632
  %v3634 = vpop.f32.mrf.mxu0
  %3635 = vdwg.mxu0
  %3637 = vrot.lane.b32.xlu0 %v3633, 127
  %v3638 = vpop.permute.xlu0 %3637
  %v3640 = vmin.f32 %v3633, %v3638
  %v3641 = vmax.f32 %v3633, %v3638
  %3643 = vrot.lane.b32.xlu0 %v3641, 1
  %v3644 = vpop.permute.xlu0 %3643
  %vm3646 = vcmask 7168
  %v3647 = vsel %vm3646, %v3633, %v3640
  %vm3648 = vcmask 15360
  %v3649 = vsel %vm3648, %v3647, %v3644
  %vm3650 = vcmask 23552
  %3651 = vst.msk [vmem:[%s2] sm:$0xff] %vm3650, %v3649
  // Predicated region
  $region10: #{enhanced_bitcoin_predictor.1} parent=0 // pred_check
    _
  $region11: #{enhanced_bitcoin_predictor.1} parent=0 // pred_check_branch
    %3653 = sbr.rel (0) target = $region13
  $region12: #{enhanced_bitcoin_predictor.1} parent=0 // pred_region
    _
  $region13: #{enhanced_bitcoin_predictor.1} parent=0 // pred_fallthru
    _
  // Predicated region
  $region14: #{enhanced_bitcoin_predictor.1} parent=0 // pred_check
    _
  $region15: #{enhanced_bitcoin_predictor.1} parent=0 // pred_check_branch
    %3655 = sbr.rel (0) target = $region17
  $region16: #{enhanced_bitcoin_predictor.1} parent=0 // pred_region
    _
  $region17: #{enhanced_bitcoin_predictor.1} parent=0 // pred_fallthru
    _

</llo_original>
